<compile_context>
chip_gen: v7x
topology: tpu7x:2x2x1
jax: 0.10.0
libtpu: 0.0.40
codegen_flags: <defaults>
</compile_context>

<pallas_src>
import functools
import math

import jax
import jax.numpy as jnp
from jax.experimental import pallas as pl
from jax.experimental.pallas import tpu as pltpu


def _layer_norm(y, w, b, eps=1e-5):
    mean = jnp.mean(y, axis=-1, keepdims=True)
    var = jnp.mean(jnp.square(y - mean), axis=-1, keepdims=True)
    return (y - mean) * jax.lax.rsqrt(var + eps) * w + b


def _encoder_block_kernel(xq_ref, xkv_ref, mask_ref,
                          wq_ref, wk_ref, wv_ref, wo_ref, bo_ref,
                          ln1w_ref, ln1b_ref,
                          w1_ref, b1_ref, w2_ref, b2_ref,
                          ln2w_ref, ln2b_ref,
                          o_ref, *, heads, d_k):
    f32, bf16 = jnp.float32, jnp.bfloat16
    scale = 1.0 / math.sqrt(d_k)

    x_q = xq_ref[...].astype(f32)        # (Tq, D) query rows / residual path
    x_kv = xkv_ref[...].astype(f32)      # (S,  D) full sequence for K/V

    # Additive mask bias, computed ONCE per grid step (hoisted out of the
    # head loop): 0 where attend, -1e30 where masked (matches masked_fill -inf
    # without producing NaN rows).
    bias = jnp.where(mask_ref[...] == 0.0, jnp.float32(-1e30), jnp.float32(0.0))

    # Fused Q/K/V projections for all heads (bf16 operands, f32 MXU accumulate).
    # The 1/sqrt(d_k) scale is folded into Q once (S*D muls, not H*S^2).
    x_q_bf, x_kv_bf = x_q.astype(bf16), x_kv.astype(bf16)
    q_all = (jnp.dot(x_q_bf, wq_ref[...], preferred_element_type=f32)
             * scale).astype(bf16)                                    # (Tq, D)
    k_all = jnp.dot(x_kv_bf, wk_ref[...], preferred_element_type=f32).astype(bf16)
    v_all = jnp.dot(x_kv_bf, wv_ref[...], preferred_element_type=f32).astype(bf16)

    # Per-head attention. Head contexts are concatenated and fc_out is applied
    # once with contraction depth K=D (full MXU depth) instead of H small
    # K=d_k matmuls.
    # TODO(synk): for large head counts switch to a head-batched dot_general /
    # fori_loop layout (and d_k >= 128 per MXU pass); the static unroll is fine
    # for the small `heads` used here.
    head_ctx = []
    for h in range(heads):
        sl = slice(h * d_k, (h + 1) * d_k)
        scores = jax.lax.dot_general(
            q_all[:, sl], k_all[:, sl], (((1,), (1,)), ((), ())),
            preferred_element_type=f32) + bias                        # (Tq, S)
        m = jnp.max(scores, axis=-1, keepdims=True)
        p = jnp.exp(scores - m)                                       # unnormalized
        l = jnp.sum(p, axis=-1, keepdims=True)
        ctx = jnp.dot(p.astype(bf16), v_all[:, sl],
                      preferred_element_type=f32)                     # (Tq, d_k)
        # Normalize after PV: Tq*d_k muls + EUP reciprocal instead of Tq*S divides.
        head_ctx.append(ctx * pl.reciprocal(l, approx=True))
    concat = jnp.concatenate(head_ctx, axis=-1)                       # (Tq, D)
    attn_out = jnp.dot(concat.astype(bf16), wo_ref[...],
                       preferred_element_type=f32) + bo_ref[...]

    # Residual + LayerNorm 1 (post-norm), all in f32.
    out1 = _layer_norm(attn_out + x_q, ln1w_ref[...], ln1b_ref[...])

    # FFN on this row tile only: h1 is (Tq, 4D), never (S, 4D).
    h1 = jnp.dot(out1.astype(bf16), w1_ref[...],
                 preferred_element_type=f32) + b1_ref[...]
    h1 = jnp.maximum(h1, 0.0)
    ff = jnp.dot(h1.astype(bf16), w2_ref[...],
                 preferred_element_type=f32) + b2_ref[...]

    # Residual + LayerNorm 2.
    out2 = _layer_norm(ff + out1, ln2w_ref[...], ln2b_ref[...])

    # TODO(synk): nn.Dropout is identity in eval/inference mode; training-mode
    # dropout (pltpu.prng_* masking + rescale) is intentionally not implemented.
    o_ref[...] = out2.astype(o_ref.dtype)


def _vmem_limit_bytes():
    # Leave headroom under physical VMEM (64 MiB/core on v7x, 128 MiB on
    # v5e/v6e) for Mosaic internal scratch and the pipelined x/out blocks.
    try:
        cap = pltpu.get_tpu_info().vmem_capacity_bytes
    except Exception:
        cap = 64 * 1024 * 1024
    return int(cap * 0.85)


def encoder_block_forward(x, mask, params, *, heads, q_tile=None):
    """x: (B, S, D) f32; mask: shared (S, S) f32 (1=attend, 0=masked)."""
    B, S, D = x.shape
    if D % heads != 0:
        raise ValueError(f"d_model={D} must be divisible by heads={heads}")
    d_k = D // heads
    d_ff = params["w1"].shape[1]

    if q_tile is None:
        q_tile = S
        for cand in (512, 256, 128):     # sequence tile for realistic S
            if S % cand == 0:
                q_tile = cand
                break
    n_q = S // q_tile

    bf16 = jnp.bfloat16
    # Matmul operands in bf16 (weights stored/passed bf16); biases & LN params
    # stay f32 so every elementwise op runs in f32 (v5e has no bf16 VPU/EUP).
    wq, wk, wv, wo = (params[k].astype(bf16) for k in ("wq", "wk", "wv", "wo"))
    w1, w2 = params["w1"].astype(bf16), params["w2"].astype(bf16)

    kernel = functools.partial(_encoder_block_kernel, heads=heads, d_k=d_k)

    def weight_spec(shape, pm):
        n = len(shape)
        if pm is None:
            return pl.BlockSpec(shape, lambda b, q: (0,) * n)
        # Constant block index -> a single VMEM buffer is enough (halves the
        # resident weight footprint vs default double-buffering).
        return pl.BlockSpec(shape, lambda b, q: (0,) * n, pipeline_mode=pm)

    def build(pm):
        return pl.pallas_call(
            kernel,
            out_shape=jax.ShapeDtypeStruct((B, S, D), x.dtype),
            grid_spec=pltpu.PrefetchScalarGridSpec(
                num_scalar_prefetch=0,
                grid=(B, n_q),                                   # batch x q-row tiles
                in_specs=[
                    pl.BlockSpec((None, q_tile, D), lambda b, q: (b, q, 0)),  # x (Q rows)
                    pl.BlockSpec((None, S, D), lambda b, q: (b, 0, 0)),       # x (K/V rows)
                    pl.BlockSpec((q_tile, S), lambda b, q: (q, 0)),           # shared mask rows
                    weight_spec((D, D), pm),      # wq (heads stacked)
                    weight_spec((D, D), pm),      # wk
                    weight_spec((D, D), pm),      # wv
                    weight_spec((D, D), pm),      # wo (fc_out weight, pre-transposed)
                    weight_spec((1, D), pm),      # bo
                    weight_spec((1, D), pm),      # norm1 weight
                    weight_spec((1, D), pm),      # norm1 bias
                    weight_spec((D, d_ff), pm),   # ffn w1
                    weight_spec((1, d_ff), pm),   # ffn b1
                    weight_spec((d_ff, D), pm),   # ffn w2
                    weight_spec((1, D), pm),      # ffn b2
                    weight_spec((1, D), pm),      # norm2 weight
                    weight_spec((1, D), pm),      # norm2 bias
                ],
                out_specs=pl.BlockSpec((None, q_tile, D), lambda b, q: (b, q, 0)),
            ),
            compiler_params=pltpu.CompilerParams(
                dimension_semantics=("parallel", "parallel"),
                vmem_limit_bytes=_vmem_limit_bytes(),
            ),
        )

    args = (x, x, mask, wq, wk, wv, wo, params["bo"],
            params["ln1w"], params["ln1b"],
            w1, params["b1"], w2, params["b2"],
            params["ln2w"], params["ln2b"])

    try:
        return build(pl.Buffered(1))(*args)
    except Exception:
        # pipeline_mode=pl.Buffered(1) unsupported in this JAX build; fall back
        # to default double-buffering (pure VMEM-footprint optimization).
        return build(None)(*args)


def init_params(key, d_model, heads):
    """Random parameters with the same shapes/roles as the PyTorch module."""
    d_ff = 4 * d_model
    ks = jax.random.split(key, 9)
    s = 1.0 / math.sqrt(d_model)
    return dict(
        wq=jax.random.normal(ks[0], (d_model, d_model), jnp.float32) * s,
        wk=jax.random.normal(ks[1], (d_model, d_model), jnp.float32) * s,
        wv=jax.random.normal(ks[2], (d_model, d_model), jnp.float32) * s,
        wo=jax.random.normal(ks[3], (d_model, d_model), jnp.float32) * s,
        bo=jax.random.normal(ks[4], (1, d_model), jnp.float32) * 0.01,
        ln1w=jnp.ones((1, d_model), jnp.float32),
        ln1b=jnp.zeros((1, d_model), jnp.float32),
        w1=jax.random.normal(ks[5], (d_model, d_ff), jnp.float32) * s,
        b1=jax.random.normal(ks[6], (1, d_ff), jnp.float32) * 0.01,
        w2=jax.random.normal(ks[7], (d_ff, d_model), jnp.float32) * (1.0 / math.sqrt(d_ff)),
        b2=jax.random.normal(ks[8], (1, d_model), jnp.float32) * 0.01,
        ln2w=jnp.ones((1, d_model), jnp.float32),
        ln2b=jnp.zeros((1, d_model), jnp.float32),
    )


def encoder_block_reference(x, mask, params, *, heads):
    """Pure-JAX reference mirroring the PyTorch EncoderBlock.forward (eval mode)."""
    D = x.shape[-1]
    d_k = D // heads
    q_all = x @ params["wq"]
    k_all = x @ params["wk"]
    v_all = x @ params["wv"]
    head_outs = []
    for h in range(heads):
        sl = slice(h * d_k, (h + 1) * d_k)
        q, k, v = q_all[..., sl], k_all[..., sl], v_all[..., sl]
        s = jnp.einsum("bqd,bkd->bqk", q, k) / math.sqrt(d_k)
        s = jnp.where(mask == 0.0, -1e30, s)
        p = jax.nn.softmax(s, axis=-1)
        head_outs.append(jnp.einsum("bqk,bkd->bqd", p, v))
    attn = jnp.concatenate(head_outs, axis=-1)
    attn_out = attn @ params["wo"] + params["bo"]

    def ln(y, w, b, eps=1e-5):
        mean = y.mean(-1, keepdims=True)
        var = ((y - mean) ** 2).mean(-1, keepdims=True)
        return (y - mean) / jnp.sqrt(var + eps) * w + b

    out1 = ln(attn_out + x, params["ln1w"], params["ln1b"])
    h1 = jax.nn.relu(out1 @ params["w1"] + params["b1"])
    ff = h1 @ params["w2"] + params["b2"]
    return ln(ff + out1, params["ln2w"], params["ln2b"])


if __name__ == "__main__":
    d_model, heads = 32, 4
    batch, seq = 2, 8

    key = jax.random.PRNGKey(0)
    kx, kp = jax.random.split(key)
    x = jax.random.normal(kx, (batch, seq, d_model), dtype=jnp.float32)

    # Shared causal src_mask (1 = attend, 0 = masked); single (S, S) copy.
    mask = jnp.tril(jnp.ones((seq, seq), jnp.float32))

    params = init_params(kp, d_model, heads)

    out = encoder_block_forward(x, mask, params, heads=heads)
    out = jax.block_until_ready(out)

    ref = encoder_block_reference(x, mask, params, heads=heads)
    assert out.shape == (batch, seq, d_model)
    err = float(jnp.max(jnp.abs(out - ref)))
    # bf16 matmul operands (f32 accumulation) vs the f32 reference -> looser tol.
    assert jnp.allclose(out, ref, atol=5e-2, rtol=5e-2), \
        f"mismatch vs reference, max abs err={err}"

    print("KERNEL_OK")
</pallas_src>

<mosaic_0001>
module attributes {stable_mosaic.version = 11 : i64} {
  func.func @_encoder_block_kernel(%arg0: i32, %arg1: i32, %arg2: memref<1x8x32xf32, #tpu.memory_space<vmem>>, %arg3: memref<1x8x32xf32, #tpu.memory_space<vmem>>, %arg4: memref<8x8xf32, #tpu.memory_space<vmem>>, %arg5: memref<32x32xbf16, #tpu.memory_space<vmem>>, %arg6: memref<32x32xbf16, #tpu.memory_space<vmem>>, %arg7: memref<32x32xbf16, #tpu.memory_space<vmem>>, %arg8: memref<32x32xbf16, #tpu.memory_space<vmem>>, %arg9: memref<1x32xf32, #tpu.memory_space<vmem>>, %arg10: memref<1x32xf32, #tpu.memory_space<vmem>>, %arg11: memref<1x32xf32, #tpu.memory_space<vmem>>, %arg12: memref<32x128xbf16, #tpu.memory_space<vmem>>, %arg13: memref<1x128xf32, #tpu.memory_space<vmem>>, %arg14: memref<128x32xbf16, #tpu.memory_space<vmem>>, %arg15: memref<1x32xf32, #tpu.memory_space<vmem>>, %arg16: memref<1x32xf32, #tpu.memory_space<vmem>>, %arg17: memref<1x32xf32, #tpu.memory_space<vmem>>, %arg18: memref<1x8x32xf32, #tpu.memory_space<vmem>>) attributes {dimension_semantics = [#tpu.dimension_semantics<parallel>, #tpu.dimension_semantics<parallel>], iteration_bounds = array<i64: 2, 1>, scalar_prefetch = 0 : i64, scratch_operands = 0 : i64, tpu.core_type = #tpu.core_type<tc>, window_params = [{transform_indices = @transform_0, window_bounds = array<i64: 1, 8, 32>}, {transform_indices = @transform_1, window_bounds = array<i64: 1, 8, 32>}, {transform_indices = @transform_2, window_bounds = array<i64: 8, 8>}, {pipeline_mode = #tpu.pipeline_mode<synchronous>, transform_indices = @transform_3, window_bounds = array<i64: 32, 32>}, {pipeline_mode = #tpu.pipeline_mode<synchronous>, transform_indices = @transform_4, window_bounds = array<i64: 32, 32>}, {pipeline_mode = #tpu.pipeline_mode<synchronous>, transform_indices = @transform_5, window_bounds = array<i64: 32, 32>}, {pipeline_mode = #tpu.pipeline_mode<synchronous>, transform_indices = @transform_6, window_bounds = array<i64: 32, 32>}, {pipeline_mode = #tpu.pipeline_mode<synchronous>, transform_indices = @transform_7, window_bounds = array<i64: 1, 32>}, {pipeline_mode = #tpu.pipeline_mode<synchronous>, transform_indices = @transform_8, window_bounds = array<i64: 1, 32>}, {pipeline_mode = #tpu.pipeline_mode<synchronous>, transform_indices = @transform_9, window_bounds = array<i64: 1, 32>}, {pipeline_mode = #tpu.pipeline_mode<synchronous>, transform_indices = @transform_10, window_bounds = array<i64: 32, 128>}, {pipeline_mode = #tpu.pipeline_mode<synchronous>, transform_indices = @transform_11, window_bounds = array<i64: 1, 128>}, {pipeline_mode = #tpu.pipeline_mode<synchronous>, transform_indices = @transform_12, window_bounds = array<i64: 128, 32>}, {pipeline_mode = #tpu.pipeline_mode<synchronous>, transform_indices = @transform_13, window_bounds = array<i64: 1, 32>}, {pipeline_mode = #tpu.pipeline_mode<synchronous>, transform_indices = @transform_14, window_bounds = array<i64: 1, 32>}, {pipeline_mode = #tpu.pipeline_mode<synchronous>, transform_indices = @transform_15, window_bounds = array<i64: 1, 32>}, {transform_indices = @transform_16, window_bounds = array<i64: 1, 8, 32>}]} {
    %c0 = arith.constant 0 : index
    %c0_0 = arith.constant 0 : index
    %c0_1 = arith.constant 0 : index
    %0 = vector.load %arg2[%c0, %c0_0, %c0_1] : memref<1x8x32xf32, #tpu.memory_space<vmem>>, vector<1x8x32xf32>
    %1 = vector.shape_cast %0 : vector<1x8x32xf32> to vector<8x32xf32>
    %c0_2 = arith.constant 0 : index
    %c0_3 = arith.constant 0 : index
    %c0_4 = arith.constant 0 : index
    %2 = vector.load %arg3[%c0_2, %c0_3, %c0_4] : memref<1x8x32xf32, #tpu.memory_space<vmem>>, vector<1x8x32xf32>
    %3 = vector.shape_cast %2 : vector<1x8x32xf32> to vector<8x32xf32>
    %c0_5 = arith.constant 0 : index
    %c0_6 = arith.constant 0 : index
    %4 = vector.load %arg4[%c0_5, %c0_6] : memref<8x8xf32, #tpu.memory_space<vmem>>, vector<8x8xf32>
    %cst = arith.constant 0.000000e+00 : f32
    %5 = vector.broadcast %cst : f32 to vector<8x8xf32>
    %6 = arith.cmpf oeq, %4, %5 : vector<8x8xf32>
    %cst_7 = arith.constant -1.000000e+30 : f32
    %cst_8 = arith.constant 0.000000e+00 : f32
    %7 = vector.broadcast %cst_7 : f32 to vector<8x8xf32>
    %8 = vector.broadcast %cst_8 : f32 to vector<8x8xf32>
    %9 = arith.select %6, %7, %8 : vector<8x8xi1>, vector<8x8xf32>
    %10 = arith.truncf %1 : vector<8x32xf32> to vector<8x32xbf16>
    %11 = arith.truncf %3 : vector<8x32xf32> to vector<8x32xbf16>
    %c0_9 = arith.constant 0 : index
    %c0_10 = arith.constant 0 : index
    %12 = vector.load %arg5[%c0_9, %c0_10] : memref<32x32xbf16, #tpu.memory_space<vmem>>, vector<32x32xbf16>
    %cst_11 = arith.constant dense<0.000000e+00> : vector<8x32xf32>
    %13 = tpu.matmul %10, %12, %cst_11 {dimension_numbers = #tpu.dot_dimension_numbers<[1], [0], [0], [1], [0, 0, 1, 1], [], []>} : vector<8x32xbf16>, vector<32x32xbf16>, vector<8x32xf32> -> vector<8x32xf32>
    %cst_12 = arith.constant 0.353553385 : f32
    %14 = vector.broadcast %cst_12 : f32 to vector<8x32xf32>
    %15 = arith.mulf %13, %14 : vector<8x32xf32>
    %16 = arith.truncf %15 : vector<8x32xf32> to vector<8x32xbf16>
    %c0_13 = arith.constant 0 : index
    %c0_14 = arith.constant 0 : index
    %17 = vector.load %arg6[%c0_13, %c0_14] : memref<32x32xbf16, #tpu.memory_space<vmem>>, vector<32x32xbf16>
    %cst_15 = arith.constant dense<0.000000e+00> : vector<8x32xf32>
    %18 = tpu.matmul %11, %17, %cst_15 {dimension_numbers = #tpu.dot_dimension_numbers<[1], [0], [0], [1], [0, 0, 1, 1], [], []>} : vector<8x32xbf16>, vector<32x32xbf16>, vector<8x32xf32> -> vector<8x32xf32>
    %19 = arith.truncf %18 : vector<8x32xf32> to vector<8x32xbf16>
    %c0_16 = arith.constant 0 : index
    %c0_17 = arith.constant 0 : index
    %20 = vector.load %arg7[%c0_16, %c0_17] : memref<32x32xbf16, #tpu.memory_space<vmem>>, vector<32x32xbf16>
    %cst_18 = arith.constant dense<0.000000e+00> : vector<8x32xf32>
    %21 = tpu.matmul %11, %20, %cst_18 {dimension_numbers = #tpu.dot_dimension_numbers<[1], [0], [0], [1], [0, 0, 1, 1], [], []>} : vector<8x32xbf16>, vector<32x32xbf16>, vector<8x32xf32> -> vector<8x32xf32>
    %22 = arith.truncf %21 : vector<8x32xf32> to vector<8x32xbf16>
    %23 = vector.extract_strided_slice %16 {offsets = [0, 0], sizes = [8, 8], strides = [1, 1]} : vector<8x32xbf16> to vector<8x8xbf16>
    %24 = vector.extract_strided_slice %19 {offsets = [0, 0], sizes = [8, 8], strides = [1, 1]} : vector<8x32xbf16> to vector<8x8xbf16>
    %cst_19 = arith.constant dense<0.000000e+00> : vector<8x8xf32>
    %25 = tpu.matmul %23, %24, %cst_19 {dimension_numbers = #tpu.dot_dimension_numbers<[1], [1], [0], [0], [0, 0, 1, 0], [], []>} : vector<8x8xbf16>, vector<8x8xbf16>, vector<8x8xf32> -> vector<8x8xf32>
    %26 = arith.addf %25, %9 : vector<8x8xf32>
    %cst_20 = arith.constant dense<0xFF800000> : vector<8xf32>
    %27 = vector.multi_reduction <maximumf>, %26, %cst_20 [1] : vector<8x8xf32> to vector<8xf32>
    %28 = vector.shape_cast %27 : vector<8xf32> to vector<8x1xf32>
    %29 = vector.broadcast %28 : vector<8x1xf32> to vector<8x8xf32>
    %30 = arith.subf %26, %29 : vector<8x8xf32>
    %31 = math.exp %30 : vector<8x8xf32>
    %cst_21 = arith.constant dense<0.000000e+00> : vector<8xf32>
    %32 = vector.multi_reduction <add>, %31, %cst_21 [1] : vector<8x8xf32> to vector<8xf32>
    %33 = vector.shape_cast %32 : vector<8xf32> to vector<8x1xf32>
    %34 = arith.truncf %31 : vector<8x8xf32> to vector<8x8xbf16>
    %35 = vector.extract_strided_slice %22 {offsets = [0, 0], sizes = [8, 8], strides = [1, 1]} : vector<8x32xbf16> to vector<8x8xbf16>
    %cst_22 = arith.constant dense<0.000000e+00> : vector<8x8xf32>
    %36 = tpu.matmul %34, %35, %cst_22 {dimension_numbers = #tpu.dot_dimension_numbers<[1], [0], [0], [1], [0, 0, 1, 1], [], []>} : vector<8x8xbf16>, vector<8x8xbf16>, vector<8x8xf32> -> vector<8x8xf32>
    %37 = tpu.reciprocal %33 {approx = true} : vector<8x1xf32> -> vector<8x1xf32>
    %38 = vector.broadcast %37 : vector<8x1xf32> to vector<8x8xf32>
    %39 = arith.mulf %36, %38 : vector<8x8xf32>
    %40 = vector.extract_strided_slice %16 {offsets = [0, 8], sizes = [8, 8], strides = [1, 1]} : vector<8x32xbf16> to vector<8x8xbf16>
    %41 = vector.extract_strided_slice %19 {offsets = [0, 8], sizes = [8, 8], strides = [1, 1]} : vector<8x32xbf16> to vector<8x8xbf16>
    %cst_23 = arith.constant dense<0.000000e+00> : vector<8x8xf32>
    %42 = tpu.matmul %40, %41, %cst_23 {dimension_numbers = #tpu.dot_dimension_numbers<[1], [1], [0], [0], [0, 0, 1, 0], [], []>} : vector<8x8xbf16>, vector<8x8xbf16>, vector<8x8xf32> -> vector<8x8xf32>
    %43 = arith.addf %42, %9 : vector<8x8xf32>
    %cst_24 = arith.constant dense<0xFF800000> : vector<8xf32>
    %44 = vector.multi_reduction <maximumf>, %43, %cst_24 [1] : vector<8x8xf32> to vector<8xf32>
    %45 = vector.shape_cast %44 : vector<8xf32> to vector<8x1xf32>
    %46 = vector.broadcast %45 : vector<8x1xf32> to vector<8x8xf32>
    %47 = arith.subf %43, %46 : vector<8x8xf32>
    %48 = math.exp %47 : vector<8x8xf32>
    %cst_25 = arith.constant dense<0.000000e+00> : vector<8xf32>
    %49 = vector.multi_reduction <add>, %48, %cst_25 [1] : vector<8x8xf32> to vector<8xf32>
    %50 = vector.shape_cast %49 : vector<8xf32> to vector<8x1xf32>
    %51 = arith.truncf %48 : vector<8x8xf32> to vector<8x8xbf16>
    %52 = vector.extract_strided_slice %22 {offsets = [0, 8], sizes = [8, 8], strides = [1, 1]} : vector<8x32xbf16> to vector<8x8xbf16>
    %cst_26 = arith.constant dense<0.000000e+00> : vector<8x8xf32>
    %53 = tpu.matmul %51, %52, %cst_26 {dimension_numbers = #tpu.dot_dimension_numbers<[1], [0], [0], [1], [0, 0, 1, 1], [], []>} : vector<8x8xbf16>, vector<8x8xbf16>, vector<8x8xf32> -> vector<8x8xf32>
    %54 = tpu.reciprocal %50 {approx = true} : vector<8x1xf32> -> vector<8x1xf32>
    %55 = vector.broadcast %54 : vector<8x1xf32> to vector<8x8xf32>
    %56 = arith.mulf %53, %55 : vector<8x8xf32>
    %57 = vector.extract_strided_slice %16 {offsets = [0, 16], sizes = [8, 8], strides = [1, 1]} : vector<8x32xbf16> to vector<8x8xbf16>
    %58 = vector.extract_strided_slice %19 {offsets = [0, 16], sizes = [8, 8], strides = [1, 1]} : vector<8x32xbf16> to vector<8x8xbf16>
    %cst_27 = arith.constant dense<0.000000e+00> : vector<8x8xf32>
    %59 = tpu.matmul %57, %58, %cst_27 {dimension_numbers = #tpu.dot_dimension_numbers<[1], [1], [0], [0], [0, 0, 1, 0], [], []>} : vector<8x8xbf16>, vector<8x8xbf16>, vector<8x8xf32> -> vector<8x8xf32>
    %60 = arith.addf %59, %9 : vector<8x8xf32>
    %cst_28 = arith.constant dense<0xFF800000> : vector<8xf32>
    %61 = vector.multi_reduction <maximumf>, %60, %cst_28 [1] : vector<8x8xf32> to vector<8xf32>
    %62 = vector.shape_cast %61 : vector<8xf32> to vector<8x1xf32>
    %63 = vector.broadcast %62 : vector<8x1xf32> to vector<8x8xf32>
    %64 = arith.subf %60, %63 : vector<8x8xf32>
    %65 = math.exp %64 : vector<8x8xf32>
    %cst_29 = arith.constant dense<0.000000e+00> : vector<8xf32>
    %66 = vector.multi_reduction <add>, %65, %cst_29 [1] : vector<8x8xf32> to vector<8xf32>
    %67 = vector.shape_cast %66 : vector<8xf32> to vector<8x1xf32>
    %68 = arith.truncf %65 : vector<8x8xf32> to vector<8x8xbf16>
    %69 = vector.extract_strided_slice %22 {offsets = [0, 16], sizes = [8, 8], strides = [1, 1]} : vector<8x32xbf16> to vector<8x8xbf16>
    %cst_30 = arith.constant dense<0.000000e+00> : vector<8x8xf32>
    %70 = tpu.matmul %68, %69, %cst_30 {dimension_numbers = #tpu.dot_dimension_numbers<[1], [0], [0], [1], [0, 0, 1, 1], [], []>} : vector<8x8xbf16>, vector<8x8xbf16>, vector<8x8xf32> -> vector<8x8xf32>
    %71 = tpu.reciprocal %67 {approx = true} : vector<8x1xf32> -> vector<8x1xf32>
    %72 = vector.broadcast %71 : vector<8x1xf32> to vector<8x8xf32>
    %73 = arith.mulf %70, %72 : vector<8x8xf32>
    %74 = vector.extract_strided_slice %16 {offsets = [0, 24], sizes = [8, 8], strides = [1, 1]} : vector<8x32xbf16> to vector<8x8xbf16>
    %75 = vector.extract_strided_slice %19 {offsets = [0, 24], sizes = [8, 8], strides = [1, 1]} : vector<8x32xbf16> to vector<8x8xbf16>
    %cst_31 = arith.constant dense<0.000000e+00> : vector<8x8xf32>
    %76 = tpu.matmul %74, %75, %cst_31 {dimension_numbers = #tpu.dot_dimension_numbers<[1], [1], [0], [0], [0, 0, 1, 0], [], []>} : vector<8x8xbf16>, vector<8x8xbf16>, vector<8x8xf32> -> vector<8x8xf32>
    %77 = arith.addf %76, %9 : vector<8x8xf32>
    %cst_32 = arith.constant dense<0xFF800000> : vector<8xf32>
    %78 = vector.multi_reduction <maximumf>, %77, %cst_32 [1] : vector<8x8xf32> to vector<8xf32>
    %79 = vector.shape_cast %78 : vector<8xf32> to vector<8x1xf32>
    %80 = vector.broadcast %79 : vector<8x1xf32> to vector<8x8xf32>
    %81 = arith.subf %77, %80 : vector<8x8xf32>
    %82 = math.exp %81 : vector<8x8xf32>
    %cst_33 = arith.constant dense<0.000000e+00> : vector<8xf32>
    %83 = vector.multi_reduction <add>, %82, %cst_33 [1] : vector<8x8xf32> to vector<8xf32>
    %84 = vector.shape_cast %83 : vector<8xf32> to vector<8x1xf32>
    %85 = arith.truncf %82 : vector<8x8xf32> to vector<8x8xbf16>
    %86 = vector.extract_strided_slice %22 {offsets = [0, 24], sizes = [8, 8], strides = [1, 1]} : vector<8x32xbf16> to vector<8x8xbf16>
    %cst_34 = arith.constant dense<0.000000e+00> : vector<8x8xf32>
    %87 = tpu.matmul %85, %86, %cst_34 {dimension_numbers = #tpu.dot_dimension_numbers<[1], [0], [0], [1], [0, 0, 1, 1], [], []>} : vector<8x8xbf16>, vector<8x8xbf16>, vector<8x8xf32> -> vector<8x8xf32>
    %88 = tpu.reciprocal %84 {approx = true} : vector<8x1xf32> -> vector<8x1xf32>
    %89 = vector.broadcast %88 : vector<8x1xf32> to vector<8x8xf32>
    %90 = arith.mulf %87, %89 : vector<8x8xf32>
    %91 = tpu.concatenate %39, %56, %73, %90 in 1 : vector<8x8xf32>, vector<8x8xf32>, vector<8x8xf32>, vector<8x8xf32> -> vector<8x32xf32>
    %92 = arith.truncf %91 : vector<8x32xf32> to vector<8x32xbf16>
    %c0_35 = arith.constant 0 : index
    %c0_36 = arith.constant 0 : index
    %93 = vector.load %arg8[%c0_35, %c0_36] : memref<32x32xbf16, #tpu.memory_space<vmem>>, vector<32x32xbf16>
    %cst_37 = arith.constant dense<0.000000e+00> : vector<8x32xf32>
    %94 = tpu.matmul %92, %93, %cst_37 {dimension_numbers = #tpu.dot_dimension_numbers<[1], [0], [0], [1], [0, 0, 1, 1], [], []>} : vector<8x32xbf16>, vector<32x32xbf16>, vector<8x32xf32> -> vector<8x32xf32>
    %c0_38 = arith.constant 0 : index
    %c0_39 = arith.constant 0 : index
    %95 = vector.load %arg9[%c0_38, %c0_39] : memref<1x32xf32, #tpu.memory_space<vmem>>, vector<1x32xf32>
    %96 = vector.broadcast %95 : vector<1x32xf32> to vector<8x32xf32>
    %97 = arith.addf %94, %96 : vector<8x32xf32>
    %98 = arith.addf %97, %1 : vector<8x32xf32>
    %c0_40 = arith.constant 0 : index
    %c0_41 = arith.constant 0 : index
    %99 = vector.load %arg10[%c0_40, %c0_41] : memref<1x32xf32, #tpu.memory_space<vmem>>, vector<1x32xf32>
    %c0_42 = arith.constant 0 : index
    %c0_43 = arith.constant 0 : index
    %100 = vector.load %arg11[%c0_42, %c0_43] : memref<1x32xf32, #tpu.memory_space<vmem>>, vector<1x32xf32>
    %cst_44 = arith.constant dense<0.000000e+00> : vector<8xf32>
    %101 = vector.multi_reduction <add>, %98, %cst_44 [1] : vector<8x32xf32> to vector<8xf32>
    %102 = vector.shape_cast %101 : vector<8xf32> to vector<8x1xf32>
    %cst_45 = arith.constant 3.200000e+01 : f32
    %103 = vector.broadcast %cst_45 : f32 to vector<8x1xf32>
    %104 = arith.divf %102, %103 : vector<8x1xf32>
    %105 = vector.broadcast %104 : vector<8x1xf32> to vector<8x32xf32>
    %106 = arith.subf %98, %105 : vector<8x32xf32>
    %107 = arith.mulf %106, %106 : vector<8x32xf32>
    %cst_46 = arith.constant dense<0.000000e+00> : vector<8xf32>
    %108 = vector.multi_reduction <add>, %107, %cst_46 [1] : vector<8x32xf32> to vector<8xf32>
    %109 = vector.shape_cast %108 : vector<8xf32> to vector<8x1xf32>
    %cst_47 = arith.constant 3.200000e+01 : f32
    %110 = vector.broadcast %cst_47 : f32 to vector<8x1xf32>
    %111 = arith.divf %109, %110 : vector<8x1xf32>
    %112 = vector.broadcast %104 : vector<8x1xf32> to vector<8x32xf32>
    %113 = arith.subf %98, %112 : vector<8x32xf32>
    %cst_48 = arith.constant 9.99999974E-6 : f32
    %114 = vector.broadcast %cst_48 : f32 to vector<8x1xf32>
    %115 = arith.addf %111, %114 : vector<8x1xf32>
    %116 = math.rsqrt %115 : vector<8x1xf32>
    %117 = vector.broadcast %116 : vector<8x1xf32> to vector<8x32xf32>
    %118 = arith.mulf %113, %117 : vector<8x32xf32>
    %119 = vector.broadcast %99 : vector<1x32xf32> to vector<8x32xf32>
    %120 = arith.mulf %118, %119 : vector<8x32xf32>
    %121 = vector.broadcast %100 : vector<1x32xf32> to vector<8x32xf32>
    %122 = arith.addf %120, %121 : vector<8x32xf32>
    %123 = arith.truncf %122 : vector<8x32xf32> to vector<8x32xbf16>
    %c0_49 = arith.constant 0 : index
    %c0_50 = arith.constant 0 : index
    %124 = vector.load %arg12[%c0_49, %c0_50] : memref<32x128xbf16, #tpu.memory_space<vmem>>, vector<32x128xbf16>
    %cst_51 = arith.constant dense<0.000000e+00> : vector<8x128xf32>
    %125 = tpu.matmul %123, %124, %cst_51 {dimension_numbers = #tpu.dot_dimension_numbers<[1], [0], [0], [1], [0, 0, 1, 1], [], []>} : vector<8x32xbf16>, vector<32x128xbf16>, vector<8x128xf32> -> vector<8x128xf32>
    %c0_52 = arith.constant 0 : index
    %c0_53 = arith.constant 0 : index
    %126 = vector.load %arg13[%c0_52, %c0_53] : memref<1x128xf32, #tpu.memory_space<vmem>>, vector<1x128xf32>
    %127 = vector.broadcast %126 : vector<1x128xf32> to vector<8x128xf32>
    %128 = arith.addf %125, %127 : vector<8x128xf32>
    %cst_54 = arith.constant 0.000000e+00 : f32
    %129 = vector.broadcast %cst_54 : f32 to vector<8x128xf32>
    %130 = arith.maximumf %128, %129 : vector<8x128xf32>
    %131 = arith.truncf %130 : vector<8x128xf32> to vector<8x128xbf16>
    %c0_55 = arith.constant 0 : index
    %c0_56 = arith.constant 0 : index
    %132 = vector.load %arg14[%c0_55, %c0_56] : memref<128x32xbf16, #tpu.memory_space<vmem>>, vector<128x32xbf16>
    %cst_57 = arith.constant dense<0.000000e+00> : vector<8x32xf32>
    %133 = tpu.matmul %131, %132, %cst_57 {dimension_numbers = #tpu.dot_dimension_numbers<[1], [0], [0], [1], [0, 0, 1, 1], [], []>} : vector<8x128xbf16>, vector<128x32xbf16>, vector<8x32xf32> -> vector<8x32xf32>
    %c0_58 = arith.constant 0 : index
    %c0_59 = arith.constant 0 : index
    %134 = vector.load %arg15[%c0_58, %c0_59] : memref<1x32xf32, #tpu.memory_space<vmem>>, vector<1x32xf32>
    %135 = vector.broadcast %134 : vector<1x32xf32> to vector<8x32xf32>
    %136 = arith.addf %133, %135 : vector<8x32xf32>
    %137 = arith.addf %136, %122 : vector<8x32xf32>
    %c0_60 = arith.constant 0 : index
    %c0_61 = arith.constant 0 : index
    %138 = vector.load %arg16[%c0_60, %c0_61] : memref<1x32xf32, #tpu.memory_space<vmem>>, vector<1x32xf32>
    %c0_62 = arith.constant 0 : index
    %c0_63 = arith.constant 0 : index
    %139 = vector.load %arg17[%c0_62, %c0_63] : memref<1x32xf32, #tpu.memory_space<vmem>>, vector<1x32xf32>
    %cst_64 = arith.constant dense<0.000000e+00> : vector<8xf32>
    %140 = vector.multi_reduction <add>, %137, %cst_64 [1] : vector<8x32xf32> to vector<8xf32>
    %141 = vector.shape_cast %140 : vector<8xf32> to vector<8x1xf32>
    %cst_65 = arith.constant 3.200000e+01 : f32
    %142 = vector.broadcast %cst_65 : f32 to vector<8x1xf32>
    %143 = arith.divf %141, %142 : vector<8x1xf32>
    %144 = vector.broadcast %143 : vector<8x1xf32> to vector<8x32xf32>
    %145 = arith.subf %137, %144 : vector<8x32xf32>
    %146 = arith.mulf %145, %145 : vector<8x32xf32>
    %cst_66 = arith.constant dense<0.000000e+00> : vector<8xf32>
    %147 = vector.multi_reduction <add>, %146, %cst_66 [1] : vector<8x32xf32> to vector<8xf32>
    %148 = vector.shape_cast %147 : vector<8xf32> to vector<8x1xf32>
    %cst_67 = arith.constant 3.200000e+01 : f32
    %149 = vector.broadcast %cst_67 : f32 to vector<8x1xf32>
    %150 = arith.divf %148, %149 : vector<8x1xf32>
    %151 = vector.broadcast %143 : vector<8x1xf32> to vector<8x32xf32>
    %152 = arith.subf %137, %151 : vector<8x32xf32>
    %cst_68 = arith.constant 9.99999974E-6 : f32
    %153 = vector.broadcast %cst_68 : f32 to vector<8x1xf32>
    %154 = arith.addf %150, %153 : vector<8x1xf32>
    %155 = math.rsqrt %154 : vector<8x1xf32>
    %156 = vector.broadcast %155 : vector<8x1xf32> to vector<8x32xf32>
    %157 = arith.mulf %152, %156 : vector<8x32xf32>
    %158 = vector.broadcast %138 : vector<1x32xf32> to vector<8x32xf32>
    %159 = arith.mulf %157, %158 : vector<8x32xf32>
    %160 = vector.broadcast %139 : vector<1x32xf32> to vector<8x32xf32>
    %161 = arith.addf %159, %160 : vector<8x32xf32>
    %c0_69 = arith.constant 0 : index
    %c0_70 = arith.constant 0 : index
    %c0_71 = arith.constant 0 : index
    %162 = vector.load %arg18[%c0_69, %c0_70, %c0_71] : memref<1x8x32xf32, #tpu.memory_space<vmem>>, vector<1x8x32xf32>
    %163 = vector.shape_cast %162 : vector<1x8x32xf32> to vector<8x32xf32>
    %164 = vector.shape_cast %161 : vector<8x32xf32> to vector<1x8x32xf32>
    tpu.vector_store %arg18[%c0_69, %c0_70, %c0_71], %164 {strides = array<i32>} : memref<1x8x32xf32, #tpu.memory_space<vmem>>, vector<1x8x32xf32>,
    return
  }
  func.func @transform_0(%arg0: i32, %arg1: i32) -> (i32, i32, i32) {
    %c0_i32 = arith.constant 0 : i32
    %c0_i32_0 = arith.constant 0 : i32
    return %arg0, %arg1, %c0_i32 : i32, i32, i32
  }
  func.func @transform_1(%arg0: i32, %arg1: i32) -> (i32, i32, i32) {
    %c0_i32 = arith.constant 0 : i32
    %c0_i32_0 = arith.constant 0 : i32
    %c0_i32_1 = arith.constant 0 : i32
    return %arg0, %c0_i32, %c0_i32_0 : i32, i32, i32
  }
  func.func @transform_2(%arg0: i32, %arg1: i32) -> (i32, i32) {
    %c0_i32 = arith.constant 0 : i32
    %c0_i32_0 = arith.constant 0 : i32
    return %arg1, %c0_i32 : i32, i32
  }
  func.func @transform_3(%arg0: i32, %arg1: i32) -> (i32, i32) {
    %c0_i32 = arith.constant 0 : i32
    %c0_i32_0 = arith.constant 0 : i32
    %c0_i32_1 = arith.constant 0 : i32
    return %c0_i32, %c0_i32_0 : i32, i32
  }
  func.func @transform_4(%arg0: i32, %arg1: i32) -> (i32, i32) {
    %c0_i32 = arith.constant 0 : i32
    %c0_i32_0 = arith.constant 0 : i32
    %c0_i32_1 = arith.constant 0 : i32
    return %c0_i32, %c0_i32_0 : i32, i32
  }
  func.func @transform_5(%arg0: i32, %arg1: i32) -> (i32, i32) {
    %c0_i32 = arith.constant 0 : i32
    %c0_i32_0 = arith.constant 0 : i32
    %c0_i32_1 = arith.constant 0 : i32
    return %c0_i32, %c0_i32_0 : i32, i32
  }
  func.func @transform_6(%arg0: i32, %arg1: i32) -> (i32, i32) {
    %c0_i32 = arith.constant 0 : i32
    %c0_i32_0 = arith.constant 0 : i32
    %c0_i32_1 = arith.constant 0 : i32
    return %c0_i32, %c0_i32_0 : i32, i32
  }
  func.func @transform_7(%arg0: i32, %arg1: i32) -> (i32, i32) {
    %c0_i32 = arith.constant 0 : i32
    %c0_i32_0 = arith.constant 0 : i32
    %c0_i32_1 = arith.constant 0 : i32
    return %c0_i32, %c0_i32_0 : i32, i32
  }
  func.func @transform_8(%arg0: i32, %arg1: i32) -> (i32, i32) {
    %c0_i32 = arith.constant 0 : i32
    %c0_i32_0 = arith.constant 0 : i32
    %c0_i32_1 = arith.constant 0 : i32
    return %c0_i32, %c0_i32_0 : i32, i32
  }
  func.func @transform_9(%arg0: i32, %arg1: i32) -> (i32, i32) {
    %c0_i32 = arith.constant 0 : i32
    %c0_i32_0 = arith.constant 0 : i32
    %c0_i32_1 = arith.constant 0 : i32
    return %c0_i32, %c0_i32_0 : i32, i32
  }
  func.func @transform_10(%arg0: i32, %arg1: i32) -> (i32, i32) {
    %c0_i32 = arith.constant 0 : i32
    %c0_i32_0 = arith.constant 0 : i32
    %c0_i32_1 = arith.constant 0 : i32
    return %c0_i32, %c0_i32_0 : i32, i32
  }
  func.func @transform_11(%arg0: i32, %arg1: i32) -> (i32, i32) {
    %c0_i32 = arith.constant 0 : i32
    %c0_i32_0 = arith.constant 0 : i32
    %c0_i32_1 = arith.constant 0 : i32
    return %c0_i32, %c0_i32_0 : i32, i32
  }
  func.func @transform_12(%arg0: i32, %arg1: i32) -> (i32, i32) {
    %c0_i32 = arith.constant 0 : i32
    %c0_i32_0 = arith.constant 0 : i32
    %c0_i32_1 = arith.constant 0 : i32
    return %c0_i32, %c0_i32_0 : i32, i32
  }
  func.func @transform_13(%arg0: i32, %arg1: i32) -> (i32, i32) {
    %c0_i32 = arith.constant 0 : i32
    %c0_i32_0 = arith.constant 0 : i32
    %c0_i32_1 = arith.constant 0 : i32
    return %c0_i32, %c0_i32_0 : i32, i32
  }
  func.func @transform_14(%arg0: i32, %arg1: i32) -> (i32, i32) {
    %c0_i32 = arith.constant 0 : i32
    %c0_i32_0 = arith.constant 0 : i32
    %c0_i32_1 = arith.constant 0 : i32
    return %c0_i32, %c0_i32_0 : i32, i32
  }
  func.func @transform_15(%arg0: i32, %arg1: i32) -> (i32, i32) {
    %c0_i32 = arith.constant 0 : i32
    %c0_i32_0 = arith.constant 0 : i32
    %c0_i32_1 = arith.constant 0 : i32
    return %c0_i32, %c0_i32_0 : i32, i32
  }
  func.func @transform_16(%arg0: i32, %arg1: i32) -> (i32, i32, i32) {
    %c0_i32 = arith.constant 0 : i32
    %c0_i32_0 = arith.constant 0 : i32
    return %arg0, %arg1, %c0_i32 : i32, i32, i32
  }
}

module attributes {stable_mosaic.version = 11 : i64} {
  func.func @_encoder_block_kernel(%arg0: i32, %arg1: i32, %arg2: memref<1x8x32xf32, #tpu.memory_space<vmem>>, %arg3: memref<1x8x32xf32, #tpu.memory_space<vmem>>, %arg4: memref<8x8xf32, #tpu.memory_space<vmem>>, %arg5: memref<32x32xbf16, #tpu.memory_space<vmem>>, %arg6: memref<32x32xbf16, #tpu.memory_space<vmem>>, %arg7: memref<32x32xbf16, #tpu.memory_space<vmem>>, %arg8: memref<32x32xbf16, #tpu.memory_space<vmem>>, %arg9: memref<1x32xf32, #tpu.memory_space<vmem>>, %arg10: memref<1x32xf32, #tpu.memory_space<vmem>>, %arg11: memref<1x32xf32, #tpu.memory_space<vmem>>, %arg12: memref<32x128xbf16, #tpu.memory_space<vmem>>, %arg13: memref<1x128xf32, #tpu.memory_space<vmem>>, %arg14: memref<128x32xbf16, #tpu.memory_space<vmem>>, %arg15: memref<1x32xf32, #tpu.memory_space<vmem>>, %arg16: memref<1x32xf32, #tpu.memory_space<vmem>>, %arg17: memref<1x32xf32, #tpu.memory_space<vmem>>, %arg18: memref<1x8x32xf32, #tpu.memory_space<vmem>>) attributes {dimension_semantics = [#tpu.dimension_semantics<parallel>, #tpu.dimension_semantics<parallel>], iteration_bounds = array<i64: 2, 1>, scalar_prefetch = 0 : i64, scratch_operands = 0 : i64, tpu.core_type = #tpu.core_type<tc>, window_params = [{transform_indices = @transform_0, window_bounds = array<i64: 1, 8, 32>}, {transform_indices = @transform_1, window_bounds = array<i64: 1, 8, 32>}, {transform_indices = @transform_2, window_bounds = array<i64: 8, 8>}, {pipeline_mode = #tpu.pipeline_mode<synchronous>, transform_indices = @transform_3, window_bounds = array<i64: 32, 32>}, {pipeline_mode = #tpu.pipeline_mode<synchronous>, transform_indices = @transform_4, window_bounds = array<i64: 32, 32>}, {pipeline_mode = #tpu.pipeline_mode<synchronous>, transform_indices = @transform_5, window_bounds = array<i64: 32, 32>}, {pipeline_mode = #tpu.pipeline_mode<synchronous>, transform_indices = @transform_6, window_bounds = array<i64: 32, 32>}, {pipeline_mode = #tpu.pipeline_mode<synchronous>, transform_indices = @transform_7, window_bounds = array<i64: 1, 32>}, {pipeline_mode = #tpu.pipeline_mode<synchronous>, transform_indices = @transform_8, window_bounds = array<i64: 1, 32>}, {pipeline_mode = #tpu.pipeline_mode<synchronous>, transform_indices = @transform_9, window_bounds = array<i64: 1, 32>}, {pipeline_mode = #tpu.pipeline_mode<synchronous>, transform_indices = @transform_10, window_bounds = array<i64: 32, 128>}, {pipeline_mode = #tpu.pipeline_mode<synchronous>, transform_indices = @transform_11, window_bounds = array<i64: 1, 128>}, {pipeline_mode = #tpu.pipeline_mode<synchronous>, transform_indices = @transform_12, window_bounds = array<i64: 128, 32>}, {pipeline_mode = #tpu.pipeline_mode<synchronous>, transform_indices = @transform_13, window_bounds = array<i64: 1, 32>}, {pipeline_mode = #tpu.pipeline_mode<synchronous>, transform_indices = @transform_14, window_bounds = array<i64: 1, 32>}, {pipeline_mode = #tpu.pipeline_mode<synchronous>, transform_indices = @transform_15, window_bounds = array<i64: 1, 32>}, {transform_indices = @transform_16, window_bounds = array<i64: 1, 8, 32>}]} {
    %c0 = arith.constant 0 : index
    %c0_0 = arith.constant 0 : index
    %c0_1 = arith.constant 0 : index
    %0 = vector.load %arg2[%c0, %c0_0, %c0_1] : memref<1x8x32xf32, #tpu.memory_space<vmem>>, vector<1x8x32xf32>
    %1 = vector.shape_cast %0 : vector<1x8x32xf32> to vector<8x32xf32>
    %c0_2 = arith.constant 0 : index
    %c0_3 = arith.constant 0 : index
    %c0_4 = arith.constant 0 : index
    %2 = vector.load %arg3[%c0_2, %c0_3, %c0_4] : memref<1x8x32xf32, #tpu.memory_space<vmem>>, vector<1x8x32xf32>
    %3 = vector.shape_cast %2 : vector<1x8x32xf32> to vector<8x32xf32>
    %c0_5 = arith.constant 0 : index
    %c0_6 = arith.constant 0 : index
    %4 = vector.load %arg4[%c0_5, %c0_6] : memref<8x8xf32, #tpu.memory_space<vmem>>, vector<8x8xf32>
    %cst = arith.constant 0.000000e+00 : f32
    %5 = vector.broadcast %cst : f32 to vector<8x8xf32>
    %6 = arith.cmpf oeq, %4, %5 : vector<8x8xf32>
    %cst_7 = arith.constant -1.000000e+30 : f32
    %cst_8 = arith.constant 0.000000e+00 : f32
    %7 = vector.broadcast %cst_7 : f32 to vector<8x8xf32>
    %8 = vector.broadcast %cst_8 : f32 to vector<8x8xf32>
    %9 = arith.select %6, %7, %8 : vector<8x8xi1>, vector<8x8xf32>
    %10 = arith.truncf %1 : vector<8x32xf32> to vector<8x32xbf16>
    %11 = arith.truncf %3 : vector<8x32xf32> to vector<8x32xbf16>
    %c0_9 = arith.constant 0 : index
    %c0_10 = arith.constant 0 : index
    %12 = vector.load %arg5[%c0_9, %c0_10] : memref<32x32xbf16, #tpu.memory_space<vmem>>, vector<32x32xbf16>
    %cst_11 = arith.constant dense<0.000000e+00> : vector<8x32xf32>
    %13 = tpu.matmul %10, %12, %cst_11 {dimension_numbers = #tpu.dot_dimension_numbers<[1], [0], [0], [1], [0, 0, 1, 1], [], []>} : vector<8x32xbf16>, vector<32x32xbf16>, vector<8x32xf32> -> vector<8x32xf32>
    %cst_12 = arith.constant 0.353553385 : f32
    %14 = vector.broadcast %cst_12 : f32 to vector<8x32xf32>
    %15 = arith.mulf %13, %14 : vector<8x32xf32>
    %16 = arith.truncf %15 : vector<8x32xf32> to vector<8x32xbf16>
    %c0_13 = arith.constant 0 : index
    %c0_14 = arith.constant 0 : index
    %17 = vector.load %arg6[%c0_13, %c0_14] : memref<32x32xbf16, #tpu.memory_space<vmem>>, vector<32x32xbf16>
    %cst_15 = arith.constant dense<0.000000e+00> : vector<8x32xf32>
    %18 = tpu.matmul %11, %17, %cst_15 {dimension_numbers = #tpu.dot_dimension_numbers<[1], [0], [0], [1], [0, 0, 1, 1], [], []>} : vector<8x32xbf16>, vector<32x32xbf16>, vector<8x32xf32> -> vector<8x32xf32>
    %19 = arith.truncf %18 : vector<8x32xf32> to vector<8x32xbf16>
    %c0_16 = arith.constant 0 : index
    %c0_17 = arith.constant 0 : index
    %20 = vector.load %arg7[%c0_16, %c0_17] : memref<32x32xbf16, #tpu.memory_space<vmem>>, vector<32x32xbf16>
    %cst_18 = arith.constant dense<0.000000e+00> : vector<8x32xf32>
    %21 = tpu.matmul %11, %20, %cst_18 {dimension_numbers = #tpu.dot_dimension_numbers<[1], [0], [0], [1], [0, 0, 1, 1], [], []>} : vector<8x32xbf16>, vector<32x32xbf16>, vector<8x32xf32> -> vector<8x32xf32>
    %22 = arith.truncf %21 : vector<8x32xf32> to vector<8x32xbf16>
    %23 = vector.extract_strided_slice %16 {offsets = [0, 0], sizes = [8, 8], strides = [1, 1]} : vector<8x32xbf16> to vector<8x8xbf16>
    %24 = vector.extract_strided_slice %19 {offsets = [0, 0], sizes = [8, 8], strides = [1, 1]} : vector<8x32xbf16> to vector<8x8xbf16>
    %cst_19 = arith.constant dense<0.000000e+00> : vector<8x8xf32>
    %25 = tpu.matmul %23, %24, %cst_19 {dimension_numbers = #tpu.dot_dimension_numbers<[1], [1], [0], [0], [0, 0, 1, 0], [], []>} : vector<8x8xbf16>, vector<8x8xbf16>, vector<8x8xf32> -> vector<8x8xf32>
    %26 = arith.addf %25, %9 : vector<8x8xf32>
    %cst_20 = arith.constant dense<0xFF800000> : vector<8xf32>
    %27 = vector.multi_reduction <maximumf>, %26, %cst_20 [1] : vector<8x8xf32> to vector<8xf32>
    %28 = vector.shape_cast %27 : vector<8xf32> to vector<8x1xf32>
    %29 = vector.broadcast %28 : vector<8x1xf32> to vector<8x8xf32>
    %30 = arith.subf %26, %29 : vector<8x8xf32>
    %31 = math.exp %30 : vector<8x8xf32>
    %cst_21 = arith.constant dense<0.000000e+00> : vector<8xf32>
    %32 = vector.multi_reduction <add>, %31, %cst_21 [1] : vector<8x8xf32> to vector<8xf32>
    %33 = vector.shape_cast %32 : vector<8xf32> to vector<8x1xf32>
    %34 = arith.truncf %31 : vector<8x8xf32> to vector<8x8xbf16>
    %35 = vector.extract_strided_slice %22 {offsets = [0, 0], sizes = [8, 8], strides = [1, 1]} : vector<8x32xbf16> to vector<8x8xbf16>
    %cst_22 = arith.constant dense<0.000000e+00> : vector<8x8xf32>
    %36 = tpu.matmul %34, %35, %cst_22 {dimension_numbers = #tpu.dot_dimension_numbers<[1], [0], [0], [1], [0, 0, 1, 1], [], []>} : vector<8x8xbf16>, vector<8x8xbf16>, vector<8x8xf32> -> vector<8x8xf32>
    %37 = tpu.reciprocal %33 {approx = true} : vector<8x1xf32> -> vector<8x1xf32>
    %38 = vector.broadcast %37 : vector<8x1xf32> to vector<8x8xf32>
    %39 = arith.mulf %36, %38 : vector<8x8xf32>
    %40 = vector.extract_strided_slice %16 {offsets = [0, 8], sizes = [8, 8], strides = [1, 1]} : vector<8x32xbf16> to vector<8x8xbf16>
    %41 = vector.extract_strided_slice %19 {offsets = [0, 8], sizes = [8, 8], strides = [1, 1]} : vector<8x32xbf16> to vector<8x8xbf16>
    %cst_23 = arith.constant dense<0.000000e+00> : vector<8x8xf32>
    %42 = tpu.matmul %40, %41, %cst_23 {dimension_numbers = #tpu.dot_dimension_numbers<[1], [1], [0], [0], [0, 0, 1, 0], [], []>} : vector<8x8xbf16>, vector<8x8xbf16>, vector<8x8xf32> -> vector<8x8xf32>
    %43 = arith.addf %42, %9 : vector<8x8xf32>
    %cst_24 = arith.constant dense<0xFF800000> : vector<8xf32>
    %44 = vector.multi_reduction <maximumf>, %43, %cst_24 [1] : vector<8x8xf32> to vector<8xf32>
    %45 = vector.shape_cast %44 : vector<8xf32> to vector<8x1xf32>
    %46 = vector.broadcast %45 : vector<8x1xf32> to vector<8x8xf32>
    %47 = arith.subf %43, %46 : vector<8x8xf32>
    %48 = math.exp %47 : vector<8x8xf32>
    %cst_25 = arith.constant dense<0.000000e+00> : vector<8xf32>
    %49 = vector.multi_reduction <add>, %48, %cst_25 [1] : vector<8x8xf32> to vector<8xf32>
    %50 = vector.shape_cast %49 : vector<8xf32> to vector<8x1xf32>
    %51 = arith.truncf %48 : vector<8x8xf32> to vector<8x8xbf16>
    %52 = vector.extract_strided_slice %22 {offsets = [0, 8], sizes = [8, 8], strides = [1, 1]} : vector<8x32xbf16> to vector<8x8xbf16>
    %cst_26 = arith.constant dense<0.000000e+00> : vector<8x8xf32>
    %53 = tpu.matmul %51, %52, %cst_26 {dimension_numbers = #tpu.dot_dimension_numbers<[1], [0], [0], [1], [0, 0, 1, 1], [], []>} : vector<8x8xbf16>, vector<8x8xbf16>, vector<8x8xf32> -> vector<8x8xf32>
    %54 = tpu.reciprocal %50 {approx = true} : vector<8x1xf32> -> vector<8x1xf32>
    %55 = vector.broadcast %54 : vector<8x1xf32> to vector<8x8xf32>
    %56 = arith.mulf %53, %55 : vector<8x8xf32>
    %57 = vector.extract_strided_slice %16 {offsets = [0, 16], sizes = [8, 8], strides = [1, 1]} : vector<8x32xbf16> to vector<8x8xbf16>
    %58 = vector.extract_strided_slice %19 {offsets = [0, 16], sizes = [8, 8], strides = [1, 1]} : vector<8x32xbf16> to vector<8x8xbf16>
    %cst_27 = arith.constant dense<0.000000e+00> : vector<8x8xf32>
    %59 = tpu.matmul %57, %58, %cst_27 {dimension_numbers = #tpu.dot_dimension_numbers<[1], [1], [0], [0], [0, 0, 1, 0], [], []>} : vector<8x8xbf16>, vector<8x8xbf16>, vector<8x8xf32> -> vector<8x8xf32>
    %60 = arith.addf %59, %9 : vector<8x8xf32>
    %cst_28 = arith.constant dense<0xFF800000> : vector<8xf32>
    %61 = vector.multi_reduction <maximumf>, %60, %cst_28 [1] : vector<8x8xf32> to vector<8xf32>
    %62 = vector.shape_cast %61 : vector<8xf32> to vector<8x1xf32>
    %63 = vector.broadcast %62 : vector<8x1xf32> to vector<8x8xf32>
    %64 = arith.subf %60, %63 : vector<8x8xf32>
    %65 = math.exp %64 : vector<8x8xf32>
    %cst_29 = arith.constant dense<0.000000e+00> : vector<8xf32>
    %66 = vector.multi_reduction <add>, %65, %cst_29 [1] : vector<8x8xf32> to vector<8xf32>
    %67 = vector.shape_cast %66 : vector<8xf32> to vector<8x1xf32>
    %68 = arith.truncf %65 : vector<8x8xf32> to vector<8x8xbf16>
    %69 = vector.extract_strided_slice %22 {offsets = [0, 16], sizes = [8, 8], strides = [1, 1]} : vector<8x32xbf16> to vector<8x8xbf16>
    %cst_30 = arith.constant dense<0.000000e+00> : vector<8x8xf32>
    %70 = tpu.matmul %68, %69, %cst_30 {dimension_numbers = #tpu.dot_dimension_numbers<[1], [0], [0], [1], [0, 0, 1, 1], [], []>} : vector<8x8xbf16>, vector<8x8xbf16>, vector<8x8xf32> -> vector<8x8xf32>
    %71 = tpu.reciprocal %67 {approx = true} : vector<8x1xf32> -> vector<8x1xf32>
    %72 = vector.broadcast %71 : vector<8x1xf32> to vector<8x8xf32>
    %73 = arith.mulf %70, %72 : vector<8x8xf32>
    %74 = vector.extract_strided_slice %16 {offsets = [0, 24], sizes = [8, 8], strides = [1, 1]} : vector<8x32xbf16> to vector<8x8xbf16>
    %75 = vector.extract_strided_slice %19 {offsets = [0, 24], sizes = [8, 8], strides = [1, 1]} : vector<8x32xbf16> to vector<8x8xbf16>
    %cst_31 = arith.constant dense<0.000000e+00> : vector<8x8xf32>
    %76 = tpu.matmul %74, %75, %cst_31 {dimension_numbers = #tpu.dot_dimension_numbers<[1], [1], [0], [0], [0, 0, 1, 0], [], []>} : vector<8x8xbf16>, vector<8x8xbf16>, vector<8x8xf32> -> vector<8x8xf32>
    %77 = arith.addf %76, %9 : vector<8x8xf32>
    %cst_32 = arith.constant dense<0xFF800000> : vector<8xf32>
    %78 = vector.multi_reduction <maximumf>, %77, %cst_32 [1] : vector<8x8xf32> to vector<8xf32>
    %79 = vector.shape_cast %78 : vector<8xf32> to vector<8x1xf32>
    %80 = vector.broadcast %79 : vector<8x1xf32> to vector<8x8xf32>
    %81 = arith.subf %77, %80 : vector<8x8xf32>
    %82 = math.exp %81 : vector<8x8xf32>
    %cst_33 = arith.constant dense<0.000000e+00> : vector<8xf32>
    %83 = vector.multi_reduction <add>, %82, %cst_33 [1] : vector<8x8xf32> to vector<8xf32>
    %84 = vector.shape_cast %83 : vector<8xf32> to vector<8x1xf32>
    %85 = arith.truncf %82 : vector<8x8xf32> to vector<8x8xbf16>
    %86 = vector.extract_strided_slice %22 {offsets = [0, 24], sizes = [8, 8], strides = [1, 1]} : vector<8x32xbf16> to vector<8x8xbf16>
    %cst_34 = arith.constant dense<0.000000e+00> : vector<8x8xf32>
    %87 = tpu.matmul %85, %86, %cst_34 {dimension_numbers = #tpu.dot_dimension_numbers<[1], [0], [0], [1], [0, 0, 1, 1], [], []>} : vector<8x8xbf16>, vector<8x8xbf16>, vector<8x8xf32> -> vector<8x8xf32>
    %88 = tpu.reciprocal %84 {approx = true} : vector<8x1xf32> -> vector<8x1xf32>
    %89 = vector.broadcast %88 : vector<8x1xf32> to vector<8x8xf32>
    %90 = arith.mulf %87, %89 : vector<8x8xf32>
    %91 = tpu.concatenate %39, %56, %73, %90 in 1 : vector<8x8xf32>, vector<8x8xf32>, vector<8x8xf32>, vector<8x8xf32> -> vector<8x32xf32>
    %92 = arith.truncf %91 : vector<8x32xf32> to vector<8x32xbf16>
    %c0_35 = arith.constant 0 : index
    %c0_36 = arith.constant 0 : index
    %93 = vector.load %arg8[%c0_35, %c0_36] : memref<32x32xbf16, #tpu.memory_space<vmem>>, vector<32x32xbf16>
    %cst_37 = arith.constant dense<0.000000e+00> : vector<8x32xf32>
    %94 = tpu.matmul %92, %93, %cst_37 {dimension_numbers = #tpu.dot_dimension_numbers<[1], [0], [0], [1], [0, 0, 1, 1], [], []>} : vector<8x32xbf16>, vector<32x32xbf16>, vector<8x32xf32> -> vector<8x32xf32>
    %c0_38 = arith.constant 0 : index
    %c0_39 = arith.constant 0 : index
    %95 = vector.load %arg9[%c0_38, %c0_39] : memref<1x32xf32, #tpu.memory_space<vmem>>, vector<1x32xf32>
    %96 = vector.broadcast %95 : vector<1x32xf32> to vector<8x32xf32>
    %97 = arith.addf %94, %96 : vector<8x32xf32>
    %98 = arith.addf %97, %1 : vector<8x32xf32>
    %c0_40 = arith.constant 0 : index
    %c0_41 = arith.constant 0 : index
    %99 = vector.load %arg10[%c0_40, %c0_41] : memref<1x32xf32, #tpu.memory_space<vmem>>, vector<1x32xf32>
    %c0_42 = arith.constant 0 : index
    %c0_43 = arith.constant 0 : index
    %100 = vector.load %arg11[%c0_42, %c0_43] : memref<1x32xf32, #tpu.memory_space<vmem>>, vector<1x32xf32>
    %cst_44 = arith.constant dense<0.000000e+00> : vector<8xf32>
    %101 = vector.multi_reduction <add>, %98, %cst_44 [1] : vector<8x32xf32> to vector<8xf32>
    %102 = vector.shape_cast %101 : vector<8xf32> to vector<8x1xf32>
    %cst_45 = arith.constant 3.200000e+01 : f32
    %103 = vector.broadcast %cst_45 : f32 to vector<8x1xf32>
    %104 = arith.divf %102, %103 : vector<8x1xf32>
    %105 = vector.broadcast %104 : vector<8x1xf32> to vector<8x32xf32>
    %106 = arith.subf %98, %105 : vector<8x32xf32>
    %107 = arith.mulf %106, %106 : vector<8x32xf32>
    %cst_46 = arith.constant dense<0.000000e+00> : vector<8xf32>
    %108 = vector.multi_reduction <add>, %107, %cst_46 [1] : vector<8x32xf32> to vector<8xf32>
    %109 = vector.shape_cast %108 : vector<8xf32> to vector<8x1xf32>
    %cst_47 = arith.constant 3.200000e+01 : f32
    %110 = vector.broadcast %cst_47 : f32 to vector<8x1xf32>
    %111 = arith.divf %109, %110 : vector<8x1xf32>
    %112 = vector.broadcast %104 : vector<8x1xf32> to vector<8x32xf32>
    %113 = arith.subf %98, %112 : vector<8x32xf32>
    %cst_48 = arith.constant 9.99999974E-6 : f32
    %114 = vector.broadcast %cst_48 : f32 to vector<8x1xf32>
    %115 = arith.addf %111, %114 : vector<8x1xf32>
    %116 = math.rsqrt %115 : vector<8x1xf32>
    %117 = vector.broadcast %116 : vector<8x1xf32> to vector<8x32xf32>
    %118 = arith.mulf %113, %117 : vector<8x32xf32>
    %119 = vector.broadcast %99 : vector<1x32xf32> to vector<8x32xf32>
    %120 = arith.mulf %118, %119 : vector<8x32xf32>
    %121 = vector.broadcast %100 : vector<1x32xf32> to vector<8x32xf32>
    %122 = arith.addf %120, %121 : vector<8x32xf32>
    %123 = arith.truncf %122 : vector<8x32xf32> to vector<8x32xbf16>
    %c0_49 = arith.constant 0 : index
    %c0_50 = arith.constant 0 : index
    %124 = vector.load %arg12[%c0_49, %c0_50] : memref<32x128xbf16, #tpu.memory_space<vmem>>, vector<32x128xbf16>
    %cst_51 = arith.constant dense<0.000000e+00> : vector<8x128xf32>
    %125 = tpu.matmul %123, %124, %cst_51 {dimension_numbers = #tpu.dot_dimension_numbers<[1], [0], [0], [1], [0, 0, 1, 1], [], []>} : vector<8x32xbf16>, vector<32x128xbf16>, vector<8x128xf32> -> vector<8x128xf32>
    %c0_52 = arith.constant 0 : index
    %c0_53 = arith.constant 0 : index
    %126 = vector.load %arg13[%c0_52, %c0_53] : memref<1x128xf32, #tpu.memory_space<vmem>>, vector<1x128xf32>
    %127 = vector.broadcast %126 : vector<1x128xf32> to vector<8x128xf32>
    %128 = arith.addf %125, %127 : vector<8x128xf32>
    %cst_54 = arith.constant 0.000000e+00 : f32
    %129 = vector.broadcast %cst_54 : f32 to vector<8x128xf32>
    %130 = arith.maximumf %128, %129 : vector<8x128xf32>
    %131 = arith.truncf %130 : vector<8x128xf32> to vector<8x128xbf16>
    %c0_55 = arith.constant 0 : index
    %c0_56 = arith.constant 0 : index
    %132 = vector.load %arg14[%c0_55, %c0_56] : memref<128x32xbf16, #tpu.memory_space<vmem>>, vector<128x32xbf16>
    %cst_57 = arith.constant dense<0.000000e+00> : vector<8x32xf32>
    %133 = tpu.matmul %131, %132, %cst_57 {dimension_numbers = #tpu.dot_dimension_numbers<[1], [0], [0], [1], [0, 0, 1, 1], [], []>} : vector<8x128xbf16>, vector<128x32xbf16>, vector<8x32xf32> -> vector<8x32xf32>
    %c0_58 = arith.constant 0 : index
    %c0_59 = arith.constant 0 : index
    %134 = vector.load %arg15[%c0_58, %c0_59] : memref<1x32xf32, #tpu.memory_space<vmem>>, vector<1x32xf32>
    %135 = vector.broadcast %134 : vector<1x32xf32> to vector<8x32xf32>
    %136 = arith.addf %133, %135 : vector<8x32xf32>
    %137 = arith.addf %136, %122 : vector<8x32xf32>
    %c0_60 = arith.constant 0 : index
    %c0_61 = arith.constant 0 : index
    %138 = vector.load %arg16[%c0_60, %c0_61] : memref<1x32xf32, #tpu.memory_space<vmem>>, vector<1x32xf32>
    %c0_62 = arith.constant 0 : index
    %c0_63 = arith.constant 0 : index
    %139 = vector.load %arg17[%c0_62, %c0_63] : memref<1x32xf32, #tpu.memory_space<vmem>>, vector<1x32xf32>
    %cst_64 = arith.constant dense<0.000000e+00> : vector<8xf32>
    %140 = vector.multi_reduction <add>, %137, %cst_64 [1] : vector<8x32xf32> to vector<8xf32>
    %141 = vector.shape_cast %140 : vector<8xf32> to vector<8x1xf32>
    %cst_65 = arith.constant 3.200000e+01 : f32
    %142 = vector.broadcast %cst_65 : f32 to vector<8x1xf32>
    %143 = arith.divf %141, %142 : vector<8x1xf32>
    %144 = vector.broadcast %143 : vector<8x1xf32> to vector<8x32xf32>
    %145 = arith.subf %137, %144 : vector<8x32xf32>
    %146 = arith.mulf %145, %145 : vector<8x32xf32>
    %cst_66 = arith.constant dense<0.000000e+00> : vector<8xf32>
    %147 = vector.multi_reduction <add>, %146, %cst_66 [1] : vector<8x32xf32> to vector<8xf32>
    %148 = vector.shape_cast %147 : vector<8xf32> to vector<8x1xf32>
    %cst_67 = arith.constant 3.200000e+01 : f32
    %149 = vector.broadcast %cst_67 : f32 to vector<8x1xf32>
    %150 = arith.divf %148, %149 : vector<8x1xf32>
    %151 = vector.broadcast %143 : vector<8x1xf32> to vector<8x32xf32>
    %152 = arith.subf %137, %151 : vector<8x32xf32>
    %cst_68 = arith.constant 9.99999974E-6 : f32
    %153 = vector.broadcast %cst_68 : f32 to vector<8x1xf32>
    %154 = arith.addf %150, %153 : vector<8x1xf32>
    %155 = math.rsqrt %154 : vector<8x1xf32>
    %156 = vector.broadcast %155 : vector<8x1xf32> to vector<8x32xf32>
    %157 = arith.mulf %152, %156 : vector<8x32xf32>
    %158 = vector.broadcast %138 : vector<1x32xf32> to vector<8x32xf32>
    %159 = arith.mulf %157, %158 : vector<8x32xf32>
    %160 = vector.broadcast %139 : vector<1x32xf32> to vector<8x32xf32>
    %161 = arith.addf %159, %160 : vector<8x32xf32>
    %c0_69 = arith.constant 0 : index
    %c0_70 = arith.constant 0 : index
    %c0_71 = arith.constant 0 : index
    %162 = vector.load %arg18[%c0_69, %c0_70, %c0_71] : memref<1x8x32xf32, #tpu.memory_space<vmem>>, vector<1x8x32xf32>
    %163 = vector.shape_cast %162 : vector<1x8x32xf32> to vector<8x32xf32>
    %164 = vector.shape_cast %161 : vector<8x32xf32> to vector<1x8x32xf32>
    tpu.vector_store %arg18[%c0_69, %c0_70, %c0_71], %164 {strides = array<i32>} : memref<1x8x32xf32, #tpu.memory_space<vmem>>, vector<1x8x32xf32>,
    return
  }
  func.func @transform_0(%arg0: i32, %arg1: i32) -> (i32, i32, i32) {
    %c0_i32 = arith.constant 0 : i32
    %c0_i32_0 = arith.constant 0 : i32
    return %arg0, %arg1, %c0_i32 : i32, i32, i32
  }
  func.func @transform_1(%arg0: i32, %arg1: i32) -> (i32, i32, i32) {
    %c0_i32 = arith.constant 0 : i32
    %c0_i32_0 = arith.constant 0 : i32
    %c0_i32_1 = arith.constant 0 : i32
    return %arg0, %c0_i32, %c0_i32_0 : i32, i32, i32
  }
  func.func @transform_2(%arg0: i32, %arg1: i32) -> (i32, i32) {
    %c0_i32 = arith.constant 0 : i32
    %c0_i32_0 = arith.constant 0 : i32
    return %arg1, %c0_i32 : i32, i32
  }
  func.func @transform_3(%arg0: i32, %arg1: i32) -> (i32, i32) {
    %c0_i32 = arith.constant 0 : i32
    %c0_i32_0 = arith.constant 0 : i32
    %c0_i32_1 = arith.constant 0 : i32
    return %c0_i32, %c0_i32_0 : i32, i32
  }
  func.func @transform_4(%arg0: i32, %arg1: i32) -> (i32, i32) {
    %c0_i32 = arith.constant 0 : i32
    %c0_i32_0 = arith.constant 0 : i32
    %c0_i32_1 = arith.constant 0 : i32
    return %c0_i32, %c0_i32_0 : i32, i32
  }
  func.func @transform_5(%arg0: i32, %arg1: i32) -> (i32, i32) {
    %c0_i32 = arith.constant 0 : i32
    %c0_i32_0 = arith.constant 0 : i32
    %c0_i32_1 = arith.constant 0 : i32
    return %c0_i32, %c0_i32_0 : i32, i32
  }
  func.func @transform_6(%arg0: i32, %arg1: i32) -> (i32, i32) {
    %c0_i32 = arith.constant 0 : i32
    %c0_i32_0 = arith.constant 0 : i32
    %c0_i32_1 = arith.constant 0 : i32
    return %c0_i32, %c0_i32_0 : i32, i32
  }
  func.func @transform_7(%arg0: i32, %arg1: i32) -> (i32, i32) {
    %c0_i32 = arith.constant 0 : i32
    %c0_i32_0 = arith.constant 0 : i32
    %c0_i32_1 = arith.constant 0 : i32
    return %c0_i32, %c0_i32_0 : i32, i32
  }
  func.func @transform_8(%arg0: i32, %arg1: i32) -> (i32, i32) {
    %c0_i32 = arith.constant 0 : i32
    %c0_i32_0 = arith.constant 0 : i32
    %c0_i32_1 = arith.constant 0 : i32
    return %c0_i32, %c0_i32_0 : i32, i32
  }
  func.func @transform_9(%arg0: i32, %arg1: i32) -> (i32, i32) {
    %c0_i32 = arith.constant 0 : i32
    %c0_i32_0 = arith.constant 0 : i32
    %c0_i32_1 = arith.constant 0 : i32
    return %c0_i32, %c0_i32_0 : i32, i32
  }
  func.func @transform_10(%arg0: i32, %arg1: i32) -> (i32, i32) {
    %c0_i32 = arith.constant 0 : i32
    %c0_i32_0 = arith.constant 0 : i32
    %c0_i32_1 = arith.constant 0 : i32
    return %c0_i32, %c0_i32_0 : i32, i32
  }
  func.func @transform_11(%arg0: i32, %arg1: i32) -> (i32, i32) {
    %c0_i32 = arith.constant 0 : i32
    %c0_i32_0 = arith.constant 0 : i32
    %c0_i32_1 = arith.constant 0 : i32
    return %c0_i32, %c0_i32_0 : i32, i32
  }
  func.func @transform_12(%arg0: i32, %arg1: i32) -> (i32, i32) {
    %c0_i32 = arith.constant 0 : i32
    %c0_i32_0 = arith.constant 0 : i32
    %c0_i32_1 = arith.constant 0 : i32
    return %c0_i32, %c0_i32_0 : i32, i32
  }
  func.func @transform_13(%arg0: i32, %arg1: i32) -> (i32, i32) {
    %c0_i32 = arith.constant 0 : i32
    %c0_i32_0 = arith.constant 0 : i32
    %c0_i32_1 = arith.constant 0 : i32
    return %c0_i32, %c0_i32_0 : i32, i32
  }
  func.func @transform_14(%arg0: i32, %arg1: i32) -> (i32, i32) {
    %c0_i32 = arith.constant 0 : i32
    %c0_i32_0 = arith.constant 0 : i32
    %c0_i32_1 = arith.constant 0 : i32
    return %c0_i32, %c0_i32_0 : i32, i32
  }
  func.func @transform_15(%arg0: i32, %arg1: i32) -> (i32, i32) {
    %c0_i32 = arith.constant 0 : i32
    %c0_i32_0 = arith.constant 0 : i32
    %c0_i32_1 = arith.constant 0 : i32
    return %c0_i32, %c0_i32_0 : i32, i32
  }
  func.func @transform_16(%arg0: i32, %arg1: i32) -> (i32, i32, i32) {
    %c0_i32 = arith.constant 0 : i32
    %c0_i32_0 = arith.constant 0 : i32
    return %arg0, %arg1, %c0_i32 : i32, i32, i32
  }
}

</mosaic_0001>

<llo_original>
// kernel: tpu_custom_call.1
$region0: #{tpu_custom_call.1}
  #allocation0 [shape = 'u32[]', space=smem, size = 0x4, offset = 0x4, fixed_abs, tag = 'smem constant byte address 0x4 - core index']
  #allocation1 [shape = 'u32[144,128]{1,0:T(1,128)}', space=vmem, size = 0x12000, scoped, tag = 'internal scratch']
  %s0 = inlined_call_operand.vmem [shape: f32[2,8,32], index: 0, kind: input, shape index: {}]
  %s1 = inlined_call_operand.vmem [shape: f32[2,8,32], index: 1, kind: input, shape index: {}]
  %s2 = inlined_call_operand.hbm [shape: f32[8,8], index: 2, kind: input, shape index: {}]
  %s3 = inlined_call_operand.vmem [shape: bf16[32,32], index: 3, kind: input, shape index: {}]
  %s4 = inlined_call_operand.vmem [shape: bf16[32,32], index: 4, kind: input, shape index: {}]
  %s5 = inlined_call_operand.vmem [shape: bf16[32,32], index: 5, kind: input, shape index: {}]
  %s6 = inlined_call_operand.hbm [shape: bf16[32,32], index: 6, kind: input, shape index: {}]
  %s7 = inlined_call_operand.vmem [shape: f32[1,32], index: 7, kind: input, shape index: {}]
  %s8 = inlined_call_operand.vmem [shape: f32[1,32], index: 8, kind: input, shape index: {}]
  %s9 = inlined_call_operand.hbm [shape: f32[1,32], index: 9, kind: input, shape index: {}]
  %s10 = inlined_call_operand.vmem [shape: bf16[32,128], index: 10, kind: input, shape index: {}]
  %s11 = inlined_call_operand.vmem [shape: f32[1,128], index: 11, kind: input, shape index: {}]
  %s12 = inlined_call_operand.vmem [shape: bf16[128,32], index: 12, kind: input, shape index: {}]
  %s13 = inlined_call_operand.vmem [shape: f32[1,32], index: 13, kind: input, shape index: {}]
  %s14 = inlined_call_operand.vmem [shape: f32[1,32], index: 14, kind: input, shape index: {}]
  %s15 = inlined_call_operand.vmem [shape: f32[1,32], index: 15, kind: input, shape index: {}]
  %s16 = inlined_call_operand.hbm [shape: f32[2,8,32], index: 16, kind: output, shape index: {}]
  %s17 = sld [smem:[#allocation0]]
  $region109: #{tpu_custom_call.1} parent=0
    _
  %s19 = ssub.s32 1, %s17
  %s20 = scalar_select 0, %s19, %s17
  $region1: #{tpu_custom_call.1} parent=0
    #allocation2 [shape = 'u8[4096]{0}', space=vmem, size = 0x1000, scoped, tag = 'input window, operand 2, single buffered']
    #allocation3 [shape = 's32[2]{0}', space=sflag, size = 0x8, scoped, tag = 'scoped memory for tpu_custom_call.1']
    #allocation4 [shape = 's32[2]{0}', space=sflag, size = 0x8, scoped, tag = 'scoped memory for tpu_custom_call.1']
    #allocation5 [shape = 'u8[8192]{0}', space=vmem, size = 0x2000, scoped, tag = 'input window, operand 6, single buffered']
    #allocation6 [shape = 's32[1]{0}', space=sflag, size = 0x4, scoped, tag = 'scoped memory for tpu_custom_call.1']
    #allocation7 [shape = 'u8[512]{0}', space=vmem, size = 0x400, scoped, tag = 'input window, operand 9, single buffered']
    #allocation8 [shape = 'u8[8192]{0}', space=vmem, size = 0x2000, scoped, tag = 'output window, operand 0']
    %21 = vsyncpa [#allocation3], 0
    %22 = vsyncpa [#allocation6], 0
    %23 = vsyncpa [#allocation4], 0
    %s24 = scalar_lea.sflag [#allocation4], 1
    %25 = vsyncpa %s24, 0
    loop: start=0, step=1, limit=4
    $region2: #{tpu_custom_call.1} parent=1 // loop_pre_header
      _
    $region3: #{tpu_custom_call.1} parent=1 // loop_header
      %s27 = sphi 0, %s31
      %p28 = scmp.ge.s32.totalorder %s27, 4
      %s34 = sphi 0, %s46
      %s35 = sphi 0, %s42
      %s36 = sphi 0, %s34
      %s37 = sphi 0, %s35
      %s38 = sphi 0, %s36
      %s39 = sphi 0, %s37
      %s51 = sphi 0, %s53
      %s54 = sphi 0, %s51
      %s55 = sphi 0, %s54
      %s71 = sphi 0, %s55
      %s77 = sphi 0, %s79
      %s80 = sphi 0, %s77
      %s81 = sphi 0, %s80
      %s97 = sphi 0, %s81
      %s103 = sphi 0, %s105
      %s106 = sphi 0, %s103
      %s107 = sphi 0, %s106
      %s123 = sphi 0, %s107
      %s127 = sphi 0, %s127
      %s129 = sphi 0, %s127
      %s130 = sphi 0, %s129
      %s144 = sphi 0, %s130
      %s148 = sphi 0, %s148
      %s150 = sphi 0, %s148
      %s151 = sphi 0, %s150
      %s165 = sphi 0, %s151
      %s169 = sphi 0, %s169
      %s171 = sphi 0, %s169
      %s172 = sphi 0, %s171
      %s186 = sphi 0, %s172
      %s190 = sphi 0, %s190
      %s192 = sphi 0, %s190
      %s193 = sphi 0, %s192
      %s207 = sphi 0, %s193
      %s211 = sphi 0, %s211
      %s213 = sphi 0, %s211
      %s214 = sphi 0, %s213
      %s228 = sphi 0, %s214
      %s232 = sphi 0, %s232
      %s234 = sphi 0, %s232
      %s235 = sphi 0, %s234
      %s249 = sphi 0, %s235
      %s253 = sphi 0, %s253
      %s255 = sphi 0, %s253
      %s256 = sphi 0, %s255
      %s270 = sphi 0, %s256
      %s274 = sphi 0, %s274
      %s276 = sphi 0, %s274
      %s277 = sphi 0, %s276
      %s291 = sphi 0, %s277
      %s295 = sphi 0, %s295
      %s297 = sphi 0, %s295
      %s298 = sphi 0, %s297
      %s312 = sphi 0, %s298
      %s316 = sphi 0, %s316
      %s318 = sphi 0, %s316
      %s319 = sphi 0, %s318
      %s333 = sphi 0, %s319
      %s337 = sphi 0, %s337
      %s339 = sphi 0, %s337
      %s340 = sphi 0, %s339
      %s354 = sphi 0, %s340
      %s358 = sphi 0, %s358
      %s360 = sphi 0, %s358
      %s361 = sphi 0, %s360
      %s375 = sphi 0, %s361
      %s379 = sphi 0, %s379
      %s381 = sphi 0, %s379
      %s382 = sphi 0, %s381
      %s396 = sphi 0, %s382
      %s404 = sphi 0, %s406
      %s407 = sphi 0, %s404
      %s408 = sphi 0, %s407
      %s424 = sphi 0, %s408
    $region4: #{tpu_custom_call.1} parent=1 // loop_header_branch
      %30 = sbr.rel (%p28) target = $region8
    $region5: #{tpu_custom_call.1} parent=1 // loop_body
      %s32 = ssub.s32 %s27, 1
      %s33 = ssub.s32 %s27, 2
      %s40 = sadd.s32 1, %s35
      %p41 = scmp.ge.s32.totalorder %s40, 1
      %s42 = scalar_select %p41, 0, %s40
      %s43 = sadd.s32 1, %s34
      %s44 = scalar_select %p41, %s43, %s34
      %p45 = scmp.ge.s32.totalorder %s44, 2
      %s46 = scalar_select %p45, 0, %s44
      %s47 = ssub.s32 %s34, %s46
      %s48 = ssub.s32 %s35, %s42
      %s49 = sor.u32 %s47, %s48
      %p50 = scmp.eq.s32.totalorder %s49, 0
      %s52 = sadd.s32 %s51, 1
      %s53 = scalar_select %p50, %s51, %s52
      %p56 = pneg %p50
      %p57 = scmp.eq.s32.totalorder %s27, 1
      %p58 = por %p56, %p57
      %p59 = scmp.ne.s32.totalorder %s51, %s54
      %p60 = scmp.eq.s32.totalorder %s27, 0
      %p61 = por %p59, %p60
      %p62 = scmp.ne.s32.totalorder %s51, %s54
      %p63 = scmp.eq.s32.totalorder %s32, 1
      %p64 = por %p62, %p63
      %p65 = scmp.ne.s32.totalorder %s54, %s55
      %p66 = scmp.eq.s32.totalorder %s32, 0
      %p67 = por %p65, %p66
      %p68 = scmp.ne.s32.totalorder %s54, %s55
      %p69 = scmp.eq.s32.totalorder %s33, 1
      %p70 = por %p68, %p69
      %p72 = scmp.ne.s32.totalorder %s55, %s71
      %p73 = scmp.eq.s32.totalorder %s33, 0
      %p74 = por %p72, %p73
      %s75 = ssub.s32 %s34, %s46
      %p76 = scmp.eq.s32.totalorder %s75, 0
      %s78 = sadd.s32 %s77, 1
      %s79 = scalar_select %p76, %s77, %s78
      %p82 = pneg %p76
      %p83 = scmp.eq.s32.totalorder %s27, 1
      %p84 = por %p82, %p83
      %p85 = scmp.ne.s32.totalorder %s77, %s80
      %p86 = scmp.eq.s32.totalorder %s27, 0
      %p87 = por %p85, %p86
      %p88 = scmp.ne.s32.totalorder %s77, %s80
      %p89 = scmp.eq.s32.totalorder %s32, 1
      %p90 = por %p88, %p89
      %p91 = scmp.ne.s32.totalorder %s80, %s81
      %p92 = scmp.eq.s32.totalorder %s32, 0
      %p93 = por %p91, %p92
      %p94 = scmp.ne.s32.totalorder %s80, %s81
      %p95 = scmp.eq.s32.totalorder %s33, 1
      %p96 = por %p94, %p95
      %p98 = scmp.ne.s32.totalorder %s81, %s97
      %p99 = scmp.eq.s32.totalorder %s33, 0
      %p100 = por %p98, %p99
      %s101 = ssub.s32 %s35, %s42
      %p102 = scmp.eq.s32.totalorder %s101, 0
      %s104 = sadd.s32 %s103, 1
      %s105 = scalar_select %p102, %s103, %s104
      %p108 = pneg %p102
      %p109 = scmp.eq.s32.totalorder %s27, 1
      %p110 = por %p108, %p109
      %p111 = scmp.ne.s32.totalorder %s103, %s106
      %p112 = scmp.eq.s32.totalorder %s27, 0
      %p113 = por %p111, %p112
      %p114 = scmp.ne.s32.totalorder %s103, %s106
      %p115 = scmp.eq.s32.totalorder %s32, 1
      %p116 = por %p114, %p115
      %p117 = scmp.ne.s32.totalorder %s106, %s107
      %p118 = scmp.eq.s32.totalorder %s32, 0
      %p119 = por %p117, %p118
      %p120 = scmp.ne.s32.totalorder %s106, %s107
      %p121 = scmp.eq.s32.totalorder %s33, 1
      %p122 = por %p120, %p121
      %p124 = scmp.ne.s32.totalorder %s107, %s123
      %p125 = scmp.eq.s32.totalorder %s33, 0
      %p126 = por %p124, %p125
      %s128 = sadd.s32 %s127, 1
      %p131 = scmp.eq.s32.totalorder %s27, 1
      %p132 = scmp.ne.s32.totalorder %s127, %s129
      %p133 = scmp.eq.s32.totalorder %s27, 0
      %p134 = por %p132, %p133
      %p135 = scmp.ne.s32.totalorder %s127, %s129
      %p136 = scmp.eq.s32.totalorder %s32, 1
      %p137 = por %p135, %p136
      %p138 = scmp.ne.s32.totalorder %s129, %s130
      %p139 = scmp.eq.s32.totalorder %s32, 0
      %p140 = por %p138, %p139
      %p141 = scmp.ne.s32.totalorder %s129, %s130
      %p142 = scmp.eq.s32.totalorder %s33, 1
      %p143 = por %p141, %p142
      %p145 = scmp.ne.s32.totalorder %s130, %s144
      %p146 = scmp.eq.s32.totalorder %s33, 0
      %p147 = por %p145, %p146
      %s149 = sadd.s32 %s148, 1
      %p152 = scmp.eq.s32.totalorder %s27, 1
      %p153 = scmp.ne.s32.totalorder %s148, %s150
      %p154 = scmp.eq.s32.totalorder %s27, 0
      %p155 = por %p153, %p154
      %p156 = scmp.ne.s32.totalorder %s148, %s150
      %p157 = scmp.eq.s32.totalorder %s32, 1
      %p158 = por %p156, %p157
      %p159 = scmp.ne.s32.totalorder %s150, %s151
      %p160 = scmp.eq.s32.totalorder %s32, 0
      %p161 = por %p159, %p160
      %p162 = scmp.ne.s32.totalorder %s150, %s151
      %p163 = scmp.eq.s32.totalorder %s33, 1
      %p164 = por %p162, %p163
      %p166 = scmp.ne.s32.totalorder %s151, %s165
      %p167 = scmp.eq.s32.totalorder %s33, 0
      %p168 = por %p166, %p167
      %s170 = sadd.s32 %s169, 1
      %p173 = scmp.eq.s32.totalorder %s27, 1
      %p174 = scmp.ne.s32.totalorder %s169, %s171
      %p175 = scmp.eq.s32.totalorder %s27, 0
      %p176 = por %p174, %p175
      %p177 = scmp.ne.s32.totalorder %s169, %s171
      %p178 = scmp.eq.s32.totalorder %s32, 1
      %p179 = por %p177, %p178
      %p180 = scmp.ne.s32.totalorder %s171, %s172
      %p181 = scmp.eq.s32.totalorder %s32, 0
      %p182 = por %p180, %p181
      %p183 = scmp.ne.s32.totalorder %s171, %s172
      %p184 = scmp.eq.s32.totalorder %s33, 1
      %p185 = por %p183, %p184
      %p187 = scmp.ne.s32.totalorder %s172, %s186
      %p188 = scmp.eq.s32.totalorder %s33, 0
      %p189 = por %p187, %p188
      %s191 = sadd.s32 %s190, 1
      %p194 = scmp.eq.s32.totalorder %s27, 1
      %p195 = scmp.ne.s32.totalorder %s190, %s192
      %p196 = scmp.eq.s32.totalorder %s27, 0
      %p197 = por %p195, %p196
      %p198 = scmp.ne.s32.totalorder %s190, %s192
      %p199 = scmp.eq.s32.totalorder %s32, 1
      %p200 = por %p198, %p199
      %p201 = scmp.ne.s32.totalorder %s192, %s193
      %p202 = scmp.eq.s32.totalorder %s32, 0
      %p203 = por %p201, %p202
      %p204 = scmp.ne.s32.totalorder %s192, %s193
      %p205 = scmp.eq.s32.totalorder %s33, 1
      %p206 = por %p204, %p205
      %p208 = scmp.ne.s32.totalorder %s193, %s207
      %p209 = scmp.eq.s32.totalorder %s33, 0
      %p210 = por %p208, %p209
      %s212 = sadd.s32 %s211, 1
      %p215 = scmp.eq.s32.totalorder %s27, 1
      %p216 = scmp.ne.s32.totalorder %s211, %s213
      %p217 = scmp.eq.s32.totalorder %s27, 0
      %p218 = por %p216, %p217
      %p219 = scmp.ne.s32.totalorder %s211, %s213
      %p220 = scmp.eq.s32.totalorder %s32, 1
      %p221 = por %p219, %p220
      %p222 = scmp.ne.s32.totalorder %s213, %s214
      %p223 = scmp.eq.s32.totalorder %s32, 0
      %p224 = por %p222, %p223
      %p225 = scmp.ne.s32.totalorder %s213, %s214
      %p226 = scmp.eq.s32.totalorder %s33, 1
      %p227 = por %p225, %p226
      %p229 = scmp.ne.s32.totalorder %s214, %s228
      %p230 = scmp.eq.s32.totalorder %s33, 0
      %p231 = por %p229, %p230
      %s233 = sadd.s32 %s232, 1
      %p236 = scmp.eq.s32.totalorder %s27, 1
      %p237 = scmp.ne.s32.totalorder %s232, %s234
      %p238 = scmp.eq.s32.totalorder %s27, 0
      %p239 = por %p237, %p238
      %p240 = scmp.ne.s32.totalorder %s232, %s234
      %p241 = scmp.eq.s32.totalorder %s32, 1
      %p242 = por %p240, %p241
      %p243 = scmp.ne.s32.totalorder %s234, %s235
      %p244 = scmp.eq.s32.totalorder %s32, 0
      %p245 = por %p243, %p244
      %p246 = scmp.ne.s32.totalorder %s234, %s235
      %p247 = scmp.eq.s32.totalorder %s33, 1
      %p248 = por %p246, %p247
      %p250 = scmp.ne.s32.totalorder %s235, %s249
      %p251 = scmp.eq.s32.totalorder %s33, 0
      %p252 = por %p250, %p251
      %s254 = sadd.s32 %s253, 1
      %p257 = scmp.eq.s32.totalorder %s27, 1
      %p258 = scmp.ne.s32.totalorder %s253, %s255
      %p259 = scmp.eq.s32.totalorder %s27, 0
      %p260 = por %p258, %p259
      %p261 = scmp.ne.s32.totalorder %s253, %s255
      %p262 = scmp.eq.s32.totalorder %s32, 1
      %p263 = por %p261, %p262
      %p264 = scmp.ne.s32.totalorder %s255, %s256
      %p265 = scmp.eq.s32.totalorder %s32, 0
      %p266 = por %p264, %p265
      %p267 = scmp.ne.s32.totalorder %s255, %s256
      %p268 = scmp.eq.s32.totalorder %s33, 1
      %p269 = por %p267, %p268
      %p271 = scmp.ne.s32.totalorder %s256, %s270
      %p272 = scmp.eq.s32.totalorder %s33, 0
      %p273 = por %p271, %p272
      %s275 = sadd.s32 %s274, 1
      %p278 = scmp.eq.s32.totalorder %s27, 1
      %p279 = scmp.ne.s32.totalorder %s274, %s276
      %p280 = scmp.eq.s32.totalorder %s27, 0
      %p281 = por %p279, %p280
      %p282 = scmp.ne.s32.totalorder %s274, %s276
      %p283 = scmp.eq.s32.totalorder %s32, 1
      %p284 = por %p282, %p283
      %p285 = scmp.ne.s32.totalorder %s276, %s277
      %p286 = scmp.eq.s32.totalorder %s32, 0
      %p287 = por %p285, %p286
      %p288 = scmp.ne.s32.totalorder %s276, %s277
      %p289 = scmp.eq.s32.totalorder %s33, 1
      %p290 = por %p288, %p289
      %p292 = scmp.ne.s32.totalorder %s277, %s291
      %p293 = scmp.eq.s32.totalorder %s33, 0
      %p294 = por %p292, %p293
      %s296 = sadd.s32 %s295, 1
      %p299 = scmp.eq.s32.totalorder %s27, 1
      %p300 = scmp.ne.s32.totalorder %s295, %s297
      %p301 = scmp.eq.s32.totalorder %s27, 0
      %p302 = por %p300, %p301
      %p303 = scmp.ne.s32.totalorder %s295, %s297
      %p304 = scmp.eq.s32.totalorder %s32, 1
      %p305 = por %p303, %p304
      %p306 = scmp.ne.s32.totalorder %s297, %s298
      %p307 = scmp.eq.s32.totalorder %s32, 0
      %p308 = por %p306, %p307
      %p309 = scmp.ne.s32.totalorder %s297, %s298
      %p310 = scmp.eq.s32.totalorder %s33, 1
      %p311 = por %p309, %p310
      %p313 = scmp.ne.s32.totalorder %s298, %s312
      %p314 = scmp.eq.s32.totalorder %s33, 0
      %p315 = por %p313, %p314
      %s317 = sadd.s32 %s316, 1
      %p320 = scmp.eq.s32.totalorder %s27, 1
      %p321 = scmp.ne.s32.totalorder %s316, %s318
      %p322 = scmp.eq.s32.totalorder %s27, 0
      %p323 = por %p321, %p322
      %p324 = scmp.ne.s32.totalorder %s316, %s318
      %p325 = scmp.eq.s32.totalorder %s32, 1
      %p326 = por %p324, %p325
      %p327 = scmp.ne.s32.totalorder %s318, %s319
      %p328 = scmp.eq.s32.totalorder %s32, 0
      %p329 = por %p327, %p328
      %p330 = scmp.ne.s32.totalorder %s318, %s319
      %p331 = scmp.eq.s32.totalorder %s33, 1
      %p332 = por %p330, %p331
      %p334 = scmp.ne.s32.totalorder %s319, %s333
      %p335 = scmp.eq.s32.totalorder %s33, 0
      %p336 = por %p334, %p335
      %s338 = sadd.s32 %s337, 1
      %p341 = scmp.eq.s32.totalorder %s27, 1
      %p342 = scmp.ne.s32.totalorder %s337, %s339
      %p343 = scmp.eq.s32.totalorder %s27, 0
      %p344 = por %p342, %p343
      %p345 = scmp.ne.s32.totalorder %s337, %s339
      %p346 = scmp.eq.s32.totalorder %s32, 1
      %p347 = por %p345, %p346
      %p348 = scmp.ne.s32.totalorder %s339, %s340
      %p349 = scmp.eq.s32.totalorder %s32, 0
      %p350 = por %p348, %p349
      %p351 = scmp.ne.s32.totalorder %s339, %s340
      %p352 = scmp.eq.s32.totalorder %s33, 1
      %p353 = por %p351, %p352
      %p355 = scmp.ne.s32.totalorder %s340, %s354
      %p356 = scmp.eq.s32.totalorder %s33, 0
      %p357 = por %p355, %p356
      %s359 = sadd.s32 %s358, 1
      %p362 = scmp.eq.s32.totalorder %s27, 1
      %p363 = scmp.ne.s32.totalorder %s358, %s360
      %p364 = scmp.eq.s32.totalorder %s27, 0
      %p365 = por %p363, %p364
      %p366 = scmp.ne.s32.totalorder %s358, %s360
      %p367 = scmp.eq.s32.totalorder %s32, 1
      %p368 = por %p366, %p367
      %p369 = scmp.ne.s32.totalorder %s360, %s361
      %p370 = scmp.eq.s32.totalorder %s32, 0
      %p371 = por %p369, %p370
      %p372 = scmp.ne.s32.totalorder %s360, %s361
      %p373 = scmp.eq.s32.totalorder %s33, 1
      %p374 = por %p372, %p373
      %p376 = scmp.ne.s32.totalorder %s361, %s375
      %p377 = scmp.eq.s32.totalorder %s33, 0
      %p378 = por %p376, %p377
      %s380 = sadd.s32 %s379, 1
      %p383 = scmp.eq.s32.totalorder %s27, 1
      %p384 = scmp.ne.s32.totalorder %s379, %s381
      %p385 = scmp.eq.s32.totalorder %s27, 0
      %p386 = por %p384, %p385
      %p387 = scmp.ne.s32.totalorder %s379, %s381
      %p388 = scmp.eq.s32.totalorder %s32, 1
      %p389 = por %p387, %p388
      %p390 = scmp.ne.s32.totalorder %s381, %s382
      %p391 = scmp.eq.s32.totalorder %s32, 0
      %p392 = por %p390, %p391
      %p393 = scmp.ne.s32.totalorder %s381, %s382
      %p394 = scmp.eq.s32.totalorder %s33, 1
      %p395 = por %p393, %p394
      %p397 = scmp.ne.s32.totalorder %s382, %s396
      %p398 = scmp.eq.s32.totalorder %s33, 0
      %p399 = por %p397, %p398
      %s400 = ssub.s32 %s34, %s46
      %s401 = ssub.s32 %s35, %s42
      %s402 = sor.u32 %s400, %s401
      %p403 = scmp.eq.s32.totalorder %s402, 0
      %s405 = sadd.s32 %s404, 1
      %s406 = scalar_select %p403, %s404, %s405
      %p409 = pneg %p403
      %p410 = scmp.eq.s32.totalorder %s27, 1
      %p411 = por %p409, %p410
      %p412 = scmp.ne.s32.totalorder %s404, %s407
      %p413 = scmp.eq.s32.totalorder %s27, 0
      %p414 = por %p412, %p413
      %p415 = scmp.ne.s32.totalorder %s404, %s407
      %p416 = scmp.eq.s32.totalorder %s32, 1
      %p417 = por %p415, %p416
      %p418 = scmp.ne.s32.totalorder %s407, %s408
      %p419 = scmp.eq.s32.totalorder %s32, 0
      %p420 = por %p418, %p419
      %p421 = scmp.ne.s32.totalorder %s407, %s408
      %p422 = scmp.eq.s32.totalorder %s33, 1
      %p423 = por %p421, %p422
      %p425 = scmp.ne.s32.totalorder %s408, %s424
      %p426 = scmp.eq.s32.totalorder %s33, 0
      %p427 = por %p425, %p426
      %p428 = scmp.le.s32.totalorder 1, %s27
      %p429 = scmp.lt.s32.totalorder %s27, 3
      %p430 = pnand %p428, %p429
      %p431 = pneg %p430
      // Predicated region
      $region9: #{tpu_custom_call.1} parent=5 // pred_check
        _
      $region10: #{tpu_custom_call.1} parent=5 // pred_check_branch
        %433 = sbr.rel (%p430) target = $region12
      $region11: #{tpu_custom_call.1} parent=5 // pred_region
        %s434 = ssub.s32 %s27, 1
        // Predicated region
        $region13: #{tpu_custom_call.1} parent=11 // pred_check
          %p435 = pneg %p119
        $region14: #{tpu_custom_call.1} parent=11 // pred_check_branch
          %437 = sbr.rel (%p435) target = $region16
        $region15: #{tpu_custom_call.1} parent=11 // pred_region
          %s439 = ssub.s32 128, 128
          %440 = vsyncadd [#allocation3], %s439
          %s441 = smul.addr %s37, 128
          %s442 = scalar_lea.hbm %s2, %s441
          %s444 = sshll.u32 [#allocation2], 4
          %s445 = int_to_ptr.vmem [resolvable:$true] %s444
          %447 = dma.hbm_to_vmem [thread:$0]  %s442, 128, %s445, [#allocation3]
        $region16: #{tpu_custom_call.1} parent=11 // pred_fallthru
          _
        // Predicated region
        $region17: #{tpu_custom_call.1} parent=11 // pred_check
          %p448 = pneg %p140
        $region18: #{tpu_custom_call.1} parent=11 // pred_check_branch
          %450 = sbr.rel (%p448) target = $region20
        $region19: #{tpu_custom_call.1} parent=11 // pred_region
          _
        $region20: #{tpu_custom_call.1} parent=11 // pred_fallthru
          _
        // Predicated region
        $region21: #{tpu_custom_call.1} parent=11 // pred_check
          %p451 = pneg %p161
        $region22: #{tpu_custom_call.1} parent=11 // pred_check_branch
          %453 = sbr.rel (%p451) target = $region24
        $region23: #{tpu_custom_call.1} parent=11 // pred_region
          _
        $region24: #{tpu_custom_call.1} parent=11 // pred_fallthru
          _
        // Predicated region
        $region25: #{tpu_custom_call.1} parent=11 // pred_check
          %p454 = pneg %p182
        $region26: #{tpu_custom_call.1} parent=11 // pred_check_branch
          %456 = sbr.rel (%p454) target = $region28
        $region27: #{tpu_custom_call.1} parent=11 // pred_region
          _
        $region28: #{tpu_custom_call.1} parent=11 // pred_fallthru
          _
        // Predicated region
        $region29: #{tpu_custom_call.1} parent=11 // pred_check
          %p457 = pneg %p203
        $region30: #{tpu_custom_call.1} parent=11 // pred_check_branch
          %459 = sbr.rel (%p457) target = $region32
        $region31: #{tpu_custom_call.1} parent=11 // pred_region
          %s461 = ssub.s32 256, 256
          %462 = vsyncadd [#allocation6], %s461
          %s463 = sshll.u32 [#allocation5], 4
          %s464 = int_to_ptr.vmem [resolvable:$true] %s463
          %469 = dma.hbm_to_vmem [thread:$0]  %s6, 256, %s464, [#allocation6], 64, 64, 4
        $region32: #{tpu_custom_call.1} parent=11 // pred_fallthru
          _
        // Predicated region
        $region33: #{tpu_custom_call.1} parent=11 // pred_check
          %p470 = pneg %p224
        $region34: #{tpu_custom_call.1} parent=11 // pred_check_branch
          %472 = sbr.rel (%p470) target = $region36
        $region35: #{tpu_custom_call.1} parent=11 // pred_region
          _
        $region36: #{tpu_custom_call.1} parent=11 // pred_fallthru
          _
        // Predicated region
        $region37: #{tpu_custom_call.1} parent=11 // pred_check
          %p473 = pneg %p245
        $region38: #{tpu_custom_call.1} parent=11 // pred_check_branch
          %475 = sbr.rel (%p473) target = $region40
        $region39: #{tpu_custom_call.1} parent=11 // pred_region
          _
        $region40: #{tpu_custom_call.1} parent=11 // pred_fallthru
          _
        // Predicated region
        $region41: #{tpu_custom_call.1} parent=11 // pred_check
          %p476 = pneg %p266
        $region42: #{tpu_custom_call.1} parent=11 // pred_check_branch
          %478 = sbr.rel (%p476) target = $region44
        $region43: #{tpu_custom_call.1} parent=11 // pred_region
          %s480 = ssub.s32 16, 16
          %481 = vsyncadd [#allocation6], %s480
          %s483 = sshll.u32 [#allocation7], 4
          %s484 = int_to_ptr.vmem [resolvable:$true] %s483
          %486 = dma.hbm_to_vmem [thread:$0]  %s9, 16, %s484, [#allocation6]
        $region44: #{tpu_custom_call.1} parent=11 // pred_fallthru
          _
        // Predicated region
        $region45: #{tpu_custom_call.1} parent=11 // pred_check
          %p487 = pneg %p287
        $region46: #{tpu_custom_call.1} parent=11 // pred_check_branch
          %489 = sbr.rel (%p487) target = $region48
        $region47: #{tpu_custom_call.1} parent=11 // pred_region
          _
        $region48: #{tpu_custom_call.1} parent=11 // pred_fallthru
          _
        // Predicated region
        $region49: #{tpu_custom_call.1} parent=11 // pred_check
          %p490 = pneg %p308
        $region50: #{tpu_custom_call.1} parent=11 // pred_check_branch
          %492 = sbr.rel (%p490) target = $region52
        $region51: #{tpu_custom_call.1} parent=11 // pred_region
          _
        $region52: #{tpu_custom_call.1} parent=11 // pred_fallthru
          _
        // Predicated region
        $region53: #{tpu_custom_call.1} parent=11 // pred_check
          %p493 = pneg %p329
        $region54: #{tpu_custom_call.1} parent=11 // pred_check_branch
          %495 = sbr.rel (%p493) target = $region56
        $region55: #{tpu_custom_call.1} parent=11 // pred_region
          _
        $region56: #{tpu_custom_call.1} parent=11 // pred_fallthru
          _
        // Predicated region
        $region57: #{tpu_custom_call.1} parent=11 // pred_check
          %p496 = pneg %p350
        $region58: #{tpu_custom_call.1} parent=11 // pred_check_branch
          %498 = sbr.rel (%p496) target = $region60
        $region59: #{tpu_custom_call.1} parent=11 // pred_region
          _
        $region60: #{tpu_custom_call.1} parent=11 // pred_fallthru
          _
        // Predicated region
        $region61: #{tpu_custom_call.1} parent=11 // pred_check
          %p499 = pneg %p371
        $region62: #{tpu_custom_call.1} parent=11 // pred_check_branch
          %501 = sbr.rel (%p499) target = $region64
        $region63: #{tpu_custom_call.1} parent=11 // pred_region
          _
        $region64: #{tpu_custom_call.1} parent=11 // pred_fallthru
          _
        // Predicated region
        $region65: #{tpu_custom_call.1} parent=11 // pred_check
          %p502 = pneg %p392
        $region66: #{tpu_custom_call.1} parent=11 // pred_check_branch
          %504 = sbr.rel (%p502) target = $region68
        $region67: #{tpu_custom_call.1} parent=11 // pred_region
          _
        $region68: #{tpu_custom_call.1} parent=11 // pred_fallthru
          _
      $region12: #{tpu_custom_call.1} parent=5 // pred_fallthru
        _
      %p505 = scmp.lt.s32.totalorder %s27, 2
      // Predicated region
      $region69: #{tpu_custom_call.1} parent=5 // pred_check
        %p506 = pneg %p505
      $region70: #{tpu_custom_call.1} parent=5 // pred_check_branch
        %508 = sbr.rel (%p506) target = $region72
      $region71: #{tpu_custom_call.1} parent=5 // pred_region
        // Predicated region
        $region73: #{tpu_custom_call.1} parent=71 // pred_check
          %p509 = pneg %p61
        $region74: #{tpu_custom_call.1} parent=71 // pred_check_branch
          %511 = sbr.rel (%p509) target = $region76
        $region75: #{tpu_custom_call.1} parent=71 // pred_region
          %p512 = scmp.lt.s32.totalorder %s34, 1
          %s513 = scalar_select %p512, %s34, 1
          %p514 = scmp.lt.s32.totalorder %s35, 0
          %s515 = scalar_select %p514, %s35, 0
          %s516 = sadd.s32 %s515, %s513
          %s517 = smul.addr %s516, 8
          %s518 = scalar_lea.vmem %s0, %s517
        $region76: #{tpu_custom_call.1} parent=71 // pred_fallthru
          _
        // Predicated region
        $region77: #{tpu_custom_call.1} parent=71 // pred_check
          %p519 = pneg %p87
        $region78: #{tpu_custom_call.1} parent=71 // pred_check_branch
          %521 = sbr.rel (%p519) target = $region80
        $region79: #{tpu_custom_call.1} parent=71 // pred_region
          %p522 = scmp.lt.s32.totalorder %s34, 1
          %s523 = scalar_select %p522, %s34, 1
          %s524 = smul.addr %s523, 8
          %s525 = scalar_lea.vmem %s1, %s524
        $region80: #{tpu_custom_call.1} parent=71 // pred_fallthru
          _
      $region72: #{tpu_custom_call.1} parent=5 // pred_fallthru
        _
      %p526 = scmp.le.s32.totalorder 1, %s27
      %p527 = scmp.lt.s32.totalorder %s27, 3
      %p528 = pnand %p526, %p527
      %p529 = pneg %p528
      // Predicated region
      $region81: #{tpu_custom_call.1} parent=5 // pred_check
        _
      $region82: #{tpu_custom_call.1} parent=5 // pred_check_branch
        %531 = sbr.rel (%p528) target = $region84
      $region83: #{tpu_custom_call.1} parent=5 // pred_region
        %s532 = ssub.s32 %s27, 1
        // Predicated region
        $region85: #{tpu_custom_call.1} parent=83 // pred_check
          %p533 = pneg %p119
        $region86: #{tpu_custom_call.1} parent=83 // pred_check_branch
          %535 = sbr.rel (%p533) target = $region88
        $region87: #{tpu_custom_call.1} parent=83 // pred_region
          %536 = dma.done [#allocation3], 128
        $region88: #{tpu_custom_call.1} parent=83 // pred_fallthru
          _
        // Predicated region
        $region89: #{tpu_custom_call.1} parent=83 // pred_check
          %p537 = pneg %p203
        $region90: #{tpu_custom_call.1} parent=83 // pred_check_branch
          %539 = sbr.rel (%p537) target = $region92
        $region91: #{tpu_custom_call.1} parent=83 // pred_region
          %540 = dma.done [#allocation6], 256
        $region92: #{tpu_custom_call.1} parent=83 // pred_fallthru
          _
        // Predicated region
        $region93: #{tpu_custom_call.1} parent=83 // pred_check
          %p541 = pneg %p266
        $region94: #{tpu_custom_call.1} parent=83 // pred_check_branch
          %543 = sbr.rel (%p541) target = $region96
        $region95: #{tpu_custom_call.1} parent=83 // pred_region
          %544 = dma.done [#allocation6], 16
        $region96: #{tpu_custom_call.1} parent=83 // pred_fallthru
          _
        %p545 = scmp.lt.s32.totalorder %s36, 1
        %s546 = scalar_select %p545, %s36, 1
        %p547 = scmp.lt.s32.totalorder %s37, 0
        %s548 = scalar_select %p547, %s37, 0
        %s549 = sadd.s32 %s548, %s546
        %s550 = smul.addr %s549, 8
        %s551 = scalar_lea.vmem %s0, %s550
        %p552 = pneg %p67
        %p553 = pneg %p64
        %p554 = scmp.lt.s32.totalorder %s36, 1
        %s555 = scalar_select %p554, %s36, 1
        %s556 = smul.addr %s555, 8
        %s557 = scalar_lea.vmem %s1, %s556
        %p558 = pneg %p93
        %p559 = pneg %p90
        %p560 = pneg %p119
        %p561 = pneg %p116
        %p562 = pneg %p140
        %p563 = pneg %p137
        %p564 = pneg %p161
        %p565 = pneg %p158
        %p566 = pneg %p182
        %p567 = pneg %p179
        %p568 = pneg %p203
        %p569 = pneg %p200
        %p570 = pneg %p224
        %p571 = pneg %p221
        %p572 = pneg %p245
        %p573 = pneg %p242
        %p574 = pneg %p266
        %p575 = pneg %p263
        %p576 = pneg %p287
        %p577 = pneg %p284
        %p578 = pneg %p308
        %p579 = pneg %p305
        %p580 = pneg %p329
        %p581 = pneg %p326
        %p582 = pneg %p350
        %p583 = pneg %p347
        %p584 = pneg %p371
        %p585 = pneg %p368
        %p586 = pneg %p392
        %p587 = pneg %p389
        %p588 = pneg %p420
        %p589 = pneg %p417
        %s590 = sand.u32 %s407, 1
        %s591 = scalar_lea.sflag [#allocation4], %s590
        %s592 = sand.u32 %s407, 1
        %s593 = smul.addr %s592, 8
        %s594 = scalar_lea.vmem [#allocation8], %s593
        %p595 = scmp.lt.s32.totalorder %s36, 1
        %s596 = scalar_select %p595, %s36, 1
        %p597 = scmp.lt.s32.totalorder %s37, 0
        %s598 = scalar_select %p597, %s37, 0
        %s599 = sadd.s32 %s598, %s596
        %s600 = smul.addr %s599, 8
        %s601 = scalar_lea.vmem %s0, %s600
        %p602 = scmp.lt.s32.totalorder %s36, 1
        %s603 = scalar_select %p602, %s36, 1
        %s604 = smul.addr %s603, 8
        %s605 = scalar_lea.vmem %s1, %s604
        %v607 = vld [vmem:[%s601] sm:$0xff]
        %v608 = vld [vmem:[%s605] sm:$0xff]
        %v609 = vld [vmem:[#allocation2] sm:$0xff]
        %vm610 = vcmp.eq.f32.partialorder %v609, 0.0
        %v611 = vsel %vm610, -1e+30, 0.0
        %v612 = vpack.c.bf16 %v607, %v607
        %v613 = vpack.c.bf16 %v608, %v608
        %v614 = vld [vmem:[%s3] sm:$0xf]
        %v615 = vld [vmem:[%s3 + $0x4] sm:$0xf]
        %v616 = vld [vmem:[%s3 + $0x8] sm:$0xf]
        %v617 = vld [vmem:[%s3 + $0xc] sm:$0xf]
        %v622 = vunpack.c.l.b16 %v614
        %v623 = vunpack.c.l.b16 %v615
        %v624 = vunpack.c.l.b16 %v616
        %v625 = vunpack.c.l.b16 %v617
        %v626 = vpack.c.b16 %v623, %v622
        %v627 = vpack.c.b16 %v625, %v624
        %vm630 = vcmask 261120
        %v632 = vsel %vm630, %v612, 0
        %634 = vmatprep.subr.bf16.mxu0 0
        %635 = vmatpush1.bf16.msra.mxu0 %v626
        %636 = vmatprep.subr.bf16.mxu0 0
        %637 = vmatpush1.bf16.msra.mxu0 %v627
        %638 = vmatprep.subr.bf16.mxu0 0
        %639 = vmatpush1.bf16.msra.mxu0 0
        %640 = vmatprep.subr.bf16.mxu0 0
        %641 = vmatpush1.bf16.msra.mxu0 0
        %642 = vmatprep.subr.bf16.mxu0 0
        %643 = vmatpush1.bf16.msra.mxu0 0
        %644 = vmatprep.subr.bf16.mxu0 0
        %645 = vmatpush1.bf16.msra.mxu0 0
        %646 = vmatprep.subr.bf16.mxu0 0
        %647 = vmatpush1.bf16.msra.mxu0 0
        %648 = vmatprep.subr.bf16.mxu0 0
        %649 = vmatpush1.bf16.msra.mxu0 0
        %650 = vmatprep.subr.bf16.mxu0 0
        %651 = vmatpush1.bf16.msra.mxu0 0
        %652 = vmatprep.subr.bf16.mxu0 0
        %653 = vmatpush1.bf16.msra.mxu0 0
        %654 = vmatprep.subr.bf16.mxu0 0
        %655 = vmatpush1.bf16.msra.mxu0 0
        %656 = vmatprep.subr.bf16.mxu0 0
        %657 = vmatpush1.bf16.msra.mxu0 0
        %658 = vmatprep.subr.bf16.mxu0 0
        %659 = vmatpush1.bf16.msra.mxu0 0
        %660 = vmatprep.subr.bf16.mxu0 0
        %661 = vmatpush1.bf16.msra.mxu0 0
        %662 = vmatprep.subr.bf16.mxu0 0
        %663 = vmatpush1.bf16.msra.mxu0 0
        %664 = vmatprep.subr.bf16.mxu0 0
        %665 = vmatpush1.bf16.msra.mxu0 0
        %666 = vmatprep.mubr.bf16.mxu0 0
        %667 = vmatmul.mubr.bf16.gmra.mrb[0].mxu0 %v632
        %v668 = vpop.f32.mrb[0].mxu0
        %v669 = vadd.f32 0.0, %v668
        %v670 = vpop.f32.mrb[0].mxu0
        %v671 = vpop.f32.mrb[0].mxu0
        %v672 = vpop.f32.mrb[0].mxu0
        %673 = vdwg.mxu0
        %v674 = vmul.f32 %v669, 0.35355338
        %v675 = vpack.c.bf16 %v674, %v674
        %v676 = vld [vmem:[%s4] sm:$0xf]
        %v677 = vld [vmem:[%s4 + $0x4] sm:$0xf]
        %v678 = vld [vmem:[%s4 + $0x8] sm:$0xf]
        %v679 = vld [vmem:[%s4 + $0xc] sm:$0xf]
        %v684 = vunpack.c.l.b16 %v676
        %v685 = vunpack.c.l.b16 %v677
        %v686 = vunpack.c.l.b16 %v678
        %v687 = vunpack.c.l.b16 %v679
        %v688 = vpack.c.b16 %v685, %v684
        %v689 = vpack.c.b16 %v687, %v686
        %v693 = vsel %vm630, %v613, 0
        %695 = vmatprep.subr.bf16.mxu0 0
        %696 = vmatpush1.bf16.msra.mxu0 %v688
        %697 = vmatprep.subr.bf16.mxu0 0
        %698 = vmatpush1.bf16.msra.mxu0 %v689
        %699 = vmatprep.subr.bf16.mxu0 0
        %700 = vmatpush1.bf16.msra.mxu0 0
        %701 = vmatprep.subr.bf16.mxu0 0
        %702 = vmatpush1.bf16.msra.mxu0 0
        %703 = vmatprep.subr.bf16.mxu0 0
        %704 = vmatpush1.bf16.msra.mxu0 0
        %705 = vmatprep.subr.bf16.mxu0 0
        %706 = vmatpush1.bf16.msra.mxu0 0
        %707 = vmatprep.subr.bf16.mxu0 0
        %708 = vmatpush1.bf16.msra.mxu0 0
        %709 = vmatprep.subr.bf16.mxu0 0
        %710 = vmatpush1.bf16.msra.mxu0 0
        %711 = vmatprep.subr.bf16.mxu0 0
        %712 = vmatpush1.bf16.msra.mxu0 0
        %713 = vmatprep.subr.bf16.mxu0 0
        %714 = vmatpush1.bf16.msra.mxu0 0
        %715 = vmatprep.subr.bf16.mxu0 0
        %716 = vmatpush1.bf16.msra.mxu0 0
        %717 = vmatprep.subr.bf16.mxu0 0
        %718 = vmatpush1.bf16.msra.mxu0 0
        %719 = vmatprep.subr.bf16.mxu0 0
        %720 = vmatpush1.bf16.msra.mxu0 0
        %721 = vmatprep.subr.bf16.mxu0 0
        %722 = vmatpush1.bf16.msra.mxu0 0
        %723 = vmatprep.subr.bf16.mxu0 0
        %724 = vmatpush1.bf16.msra.mxu0 0
        %725 = vmatprep.subr.bf16.mxu0 0
        %726 = vmatpush1.bf16.msra.mxu0 0
        %727 = vmatprep.mubr.bf16.mxu0 0
        %728 = vmatmul.mubr.bf16.gmra.mrb[0].mxu0 %v693
        %v729 = vpop.f32.mrb[0].mxu0
        %v730 = vadd.f32 0.0, %v729
        %v731 = vpop.f32.mrb[0].mxu0
        %v732 = vpop.f32.mrb[0].mxu0
        %v733 = vpop.f32.mrb[0].mxu0
        %734 = vdwg.mxu0
        %v735 = vpack.c.bf16 %v730, %v730
        %v736 = vld [vmem:[%s5] sm:$0xf]
        %v737 = vld [vmem:[%s5 + $0x4] sm:$0xf]
        %v738 = vld [vmem:[%s5 + $0x8] sm:$0xf]
        %v739 = vld [vmem:[%s5 + $0xc] sm:$0xf]
        %v744 = vunpack.c.l.b16 %v736
        %v745 = vunpack.c.l.b16 %v737
        %v746 = vunpack.c.l.b16 %v738
        %v747 = vunpack.c.l.b16 %v739
        %v748 = vpack.c.b16 %v745, %v744
        %v749 = vpack.c.b16 %v747, %v746
        %752 = vmatprep.subr.bf16.mxu0 0
        %753 = vmatpush1.bf16.msra.mxu0 %v748
        %754 = vmatprep.subr.bf16.mxu0 0
        %755 = vmatpush1.bf16.msra.mxu0 %v749
        %756 = vmatprep.subr.bf16.mxu0 0
        %757 = vmatpush1.bf16.msra.mxu0 0
        %758 = vmatprep.subr.bf16.mxu0 0
        %759 = vmatpush1.bf16.msra.mxu0 0
        %760 = vmatprep.subr.bf16.mxu0 0
        %761 = vmatpush1.bf16.msra.mxu0 0
        %762 = vmatprep.subr.bf16.mxu0 0
        %763 = vmatpush1.bf16.msra.mxu0 0
        %764 = vmatprep.subr.bf16.mxu0 0
        %765 = vmatpush1.bf16.msra.mxu0 0
        %766 = vmatprep.subr.bf16.mxu0 0
        %767 = vmatpush1.bf16.msra.mxu0 0
        %768 = vmatprep.subr.bf16.mxu0 0
        %769 = vmatpush1.bf16.msra.mxu0 0
        %770 = vmatprep.subr.bf16.mxu0 0
        %771 = vmatpush1.bf16.msra.mxu0 0
        %772 = vmatprep.subr.bf16.mxu0 0
        %773 = vmatpush1.bf16.msra.mxu0 0
        %774 = vmatprep.subr.bf16.mxu0 0
        %775 = vmatpush1.bf16.msra.mxu0 0
        %776 = vmatprep.subr.bf16.mxu0 0
        %777 = vmatpush1.bf16.msra.mxu0 0
        %778 = vmatprep.subr.bf16.mxu0 0
        %779 = vmatpush1.bf16.msra.mxu0 0
        %780 = vmatprep.subr.bf16.mxu0 0
        %781 = vmatpush1.bf16.msra.mxu0 0
        %782 = vmatprep.subr.bf16.mxu0 0
        %783 = vmatpush1.bf16.msra.mxu0 0
        %784 = vmatprep.mubr.bf16.mxu0 0
        %785 = vmatmul.mubr.bf16.gmra.mrb[0].mxu0 %v693
        %v786 = vpop.f32.mrb[0].mxu0
        %v787 = vadd.f32 0.0, %v786
        %v788 = vpop.f32.mrb[0].mxu0
        %v789 = vpop.f32.mrb[0].mxu0
        %v790 = vpop.f32.mrb[0].mxu0
        %791 = vdwg.mxu0
        %v792 = vpack.c.bf16 %v787, %v787
        %vm793 = vcmask 64512
        %v795 = vsel %vm793, %v675, 0
        %v798 = vsel %vm793, %v735, 0
        %800 = vmatprep.subr.bf16.mxu0 0
        %801 = vmatpush1.bf16.xpose.msra.mxu0 %v798
        %802 = vmatprep.subr.bf16.mxu0 0
        %803 = vmatpush1.bf16.xpose.msra.mxu0 0
        %804 = vmatprep.subr.bf16.mxu0 0
        %805 = vmatpush1.bf16.xpose.msra.mxu0 0
        %806 = vmatprep.subr.bf16.mxu0 0
        %807 = vmatpush1.bf16.xpose.msra.mxu0 0
        %808 = vmatprep.subr.bf16.mxu0 0
        %809 = vmatpush1.bf16.xpose.msra.mxu0 0
        %810 = vmatprep.subr.bf16.mxu0 0
        %811 = vmatpush1.bf16.xpose.msra.mxu0 0
        %812 = vmatprep.subr.bf16.mxu0 0
        %813 = vmatpush1.bf16.xpose.msra.mxu0 0
        %814 = vmatprep.subr.bf16.mxu0 0
        %815 = vmatpush1.bf16.xpose.msra.mxu0 0
        %816 = vmatprep.subr.bf16.mxu0 0
        %817 = vmatpush1.bf16.xpose.msra.mxu0 0
        %818 = vmatprep.subr.bf16.mxu0 0
        %819 = vmatpush1.bf16.xpose.msra.mxu0 0
        %820 = vmatprep.subr.bf16.mxu0 0
        %821 = vmatpush1.bf16.xpose.msra.mxu0 0
        %822 = vmatprep.subr.bf16.mxu0 0
        %823 = vmatpush1.bf16.xpose.msra.mxu0 0
        %824 = vmatprep.subr.bf16.mxu0 0
        %825 = vmatpush1.bf16.xpose.msra.mxu0 0
        %826 = vmatprep.subr.bf16.mxu0 0
        %827 = vmatpush1.bf16.xpose.msra.mxu0 0
        %828 = vmatprep.subr.bf16.mxu0 0
        %829 = vmatpush1.bf16.xpose.msra.mxu0 0
        %830 = vmatprep.subr.bf16.mxu0 0
        %831 = vmatpush1.bf16.xpose.msra.mxu0 0
        %832 = vmatprep.mubr.bf16.mxu0 0
        %833 = vmatmul.mubr.bf16.gmra.mrb[0].mxu0 %v795
        %v834 = vpop.f32.mrb[0].mxu0
        %v835 = vadd.f32 %v611, %v834
        %v836 = vpop.f32.mrb[0].mxu0
        %v837 = vpop.f32.mrb[0].mxu0
        %v838 = vpop.f32.mrb[0].mxu0
        %839 = vdwg.mxu0
        %v840 = vsel %vm793, %v835, -inf
        %841 = vmax.xlane.f32.xlu0 %v840
        %v842 = vpop.xlane.xlu0 %841
        %v843 = vsub.f32 %v835, %v842
        %v844 = vmul.f32 %v843, 1.442695
        %v845 = vpow.pop %v844
        %v846 = vsel %vm793, %v845, 0.0
        %847 = vadd.xlane.f32.xlu0 %v846
        %v848 = vpop.xlane.xlu0 %847
        %v849 = vpack.c.bf16 %v845, %v845
        %v851 = vsel %vm793, %v849, 0
        %vm853 = vcmask 1043456
        %v855 = vsel %vm853, %v792, 0
        %857 = vmatprep.subr.bf16.mxu0 0
        %858 = vmatpush1.bf16.msra.mxu0 %v855
        %859 = vmatprep.subr.bf16.mxu0 0
        %860 = vmatpush1.bf16.msra.mxu0 0
        %861 = vmatprep.subr.bf16.mxu0 0
        %862 = vmatpush1.bf16.msra.mxu0 0
        %863 = vmatprep.subr.bf16.mxu0 0
        %864 = vmatpush1.bf16.msra.mxu0 0
        %865 = vmatprep.subr.bf16.mxu0 0
        %866 = vmatpush1.bf16.msra.mxu0 0
        %867 = vmatprep.subr.bf16.mxu0 0
        %868 = vmatpush1.bf16.msra.mxu0 0
        %869 = vmatprep.subr.bf16.mxu0 0
        %870 = vmatpush1.bf16.msra.mxu0 0
        %871 = vmatprep.subr.bf16.mxu0 0
        %872 = vmatpush1.bf16.msra.mxu0 0
        %873 = vmatprep.subr.bf16.mxu0 0
        %874 = vmatpush1.bf16.msra.mxu0 0
        %875 = vmatprep.subr.bf16.mxu0 0
        %876 = vmatpush1.bf16.msra.mxu0 0
        %877 = vmatprep.subr.bf16.mxu0 0
        %878 = vmatpush1.bf16.msra.mxu0 0
        %879 = vmatprep.subr.bf16.mxu0 0
        %880 = vmatpush1.bf16.msra.mxu0 0
        %881 = vmatprep.subr.bf16.mxu0 0
        %882 = vmatpush1.bf16.msra.mxu0 0
        %883 = vmatprep.subr.bf16.mxu0 0
        %884 = vmatpush1.bf16.msra.mxu0 0
        %885 = vmatprep.subr.bf16.mxu0 0
        %886 = vmatpush1.bf16.msra.mxu0 0
        %887 = vmatprep.subr.bf16.mxu0 0
        %888 = vmatpush1.bf16.msra.mxu0 0
        %889 = vmatprep.mubr.bf16.mxu0 0
        %890 = vmatmul.mubr.bf16.gmra.mrb[0].mxu0 %v851
        %v891 = vpop.f32.mrb[0].mxu0
        %v892 = vadd.f32 0.0, %v891
        %v893 = vpop.f32.mrb[0].mxu0
        %v894 = vpop.f32.mrb[0].mxu0
        %v895 = vpop.f32.mrb[0].mxu0
        %896 = vdwg.mxu0
        %v897 = vrcp.pop %v848
        %v898 = vmul.f32 %v892, %v897
        %900 = vrot.lane.b32.xlu0 %v675, 120
        %v901 = vpop.permute.xlu0 %900
        %903 = vrot.lane.b32.xlu0 %v735, 120
        %v904 = vpop.permute.xlu0 %903
        %v906 = vsel %vm793, %v901, 0
        %v909 = vsel %vm793, %v904, 0
        %911 = vmatprep.subr.bf16.mxu0 0
        %912 = vmatpush1.bf16.xpose.msra.mxu0 %v909
        %913 = vmatprep.subr.bf16.mxu0 0
        %914 = vmatpush1.bf16.xpose.msra.mxu0 0
        %915 = vmatprep.subr.bf16.mxu0 0
        %916 = vmatpush1.bf16.xpose.msra.mxu0 0
        %917 = vmatprep.subr.bf16.mxu0 0
        %918 = vmatpush1.bf16.xpose.msra.mxu0 0
        %919 = vmatprep.subr.bf16.mxu0 0
        %920 = vmatpush1.bf16.xpose.msra.mxu0 0
        %921 = vmatprep.subr.bf16.mxu0 0
        %922 = vmatpush1.bf16.xpose.msra.mxu0 0
        %923 = vmatprep.subr.bf16.mxu0 0
        %924 = vmatpush1.bf16.xpose.msra.mxu0 0
        %925 = vmatprep.subr.bf16.mxu0 0
        %926 = vmatpush1.bf16.xpose.msra.mxu0 0
        %927 = vmatprep.subr.bf16.mxu0 0
        %928 = vmatpush1.bf16.xpose.msra.mxu0 0
        %929 = vmatprep.subr.bf16.mxu0 0
        %930 = vmatpush1.bf16.xpose.msra.mxu0 0
        %931 = vmatprep.subr.bf16.mxu0 0
        %932 = vmatpush1.bf16.xpose.msra.mxu0 0
        %933 = vmatprep.subr.bf16.mxu0 0
        %934 = vmatpush1.bf16.xpose.msra.mxu0 0
        %935 = vmatprep.subr.bf16.mxu0 0
        %936 = vmatpush1.bf16.xpose.msra.mxu0 0
        %937 = vmatprep.subr.bf16.mxu0 0
        %938 = vmatpush1.bf16.xpose.msra.mxu0 0
        %939 = vmatprep.subr.bf16.mxu0 0
        %940 = vmatpush1.bf16.xpose.msra.mxu0 0
        %941 = vmatprep.subr.bf16.mxu0 0
        %942 = vmatpush1.bf16.xpose.msra.mxu0 0
        %943 = vmatprep.mubr.bf16.mxu0 0
        %944 = vmatmul.mubr.bf16.gmra.mrb[0].mxu0 %v906
        %v945 = vpop.f32.mrb[0].mxu0
        %v946 = vadd.f32 %v611, %v945
        %v947 = vpop.f32.mrb[0].mxu0
        %v948 = vpop.f32.mrb[0].mxu0
        %v949 = vpop.f32.mrb[0].mxu0
        %950 = vdwg.mxu0
        %v951 = vsel %vm793, %v946, -inf
        %952 = vmax.xlane.f32.xlu0 %v951
        %v953 = vpop.xlane.xlu0 %952
        %v954 = vsub.f32 %v946, %v953
        %v955 = vmul.f32 %v954, 1.442695
        %v956 = vpow.pop %v955
        %v957 = vsel %vm793, %v956, 0.0
        %958 = vadd.xlane.f32.xlu0 %v957
        %v959 = vpop.xlane.xlu0 %958
        %v960 = vpack.c.bf16 %v956, %v956
        %962 = vrot.lane.b32.xlu0 %v792, 120
        %v963 = vpop.permute.xlu0 %962
        %v965 = vsel %vm793, %v960, 0
        %v968 = vsel %vm853, %v963, 0
        %970 = vmatprep.subr.bf16.mxu0 0
        %971 = vmatpush1.bf16.msra.mxu0 %v968
        %972 = vmatprep.subr.bf16.mxu0 0
        %973 = vmatpush1.bf16.msra.mxu0 0
        %974 = vmatprep.subr.bf16.mxu0 0
        %975 = vmatpush1.bf16.msra.mxu0 0
        %976 = vmatprep.subr.bf16.mxu0 0
        %977 = vmatpush1.bf16.msra.mxu0 0
        %978 = vmatprep.subr.bf16.mxu0 0
        %979 = vmatpush1.bf16.msra.mxu0 0
        %980 = vmatprep.subr.bf16.mxu0 0
        %981 = vmatpush1.bf16.msra.mxu0 0
        %982 = vmatprep.subr.bf16.mxu0 0
        %983 = vmatpush1.bf16.msra.mxu0 0
        %984 = vmatprep.subr.bf16.mxu0 0
        %985 = vmatpush1.bf16.msra.mxu0 0
        %986 = vmatprep.subr.bf16.mxu0 0
        %987 = vmatpush1.bf16.msra.mxu0 0
        %988 = vmatprep.subr.bf16.mxu0 0
        %989 = vmatpush1.bf16.msra.mxu0 0
        %990 = vmatprep.subr.bf16.mxu0 0
        %991 = vmatpush1.bf16.msra.mxu0 0
        %992 = vmatprep.subr.bf16.mxu0 0
        %993 = vmatpush1.bf16.msra.mxu0 0
        %994 = vmatprep.subr.bf16.mxu0 0
        %995 = vmatpush1.bf16.msra.mxu0 0
        %996 = vmatprep.subr.bf16.mxu0 0
        %997 = vmatpush1.bf16.msra.mxu0 0
        %998 = vmatprep.subr.bf16.mxu0 0
        %999 = vmatpush1.bf16.msra.mxu0 0
        %1000 = vmatprep.subr.bf16.mxu0 0
        %1001 = vmatpush1.bf16.msra.mxu0 0
        %1002 = vmatprep.mubr.bf16.mxu0 0
        %1003 = vmatmul.mubr.bf16.gmra.mrb[0].mxu0 %v965
        %v1004 = vpop.f32.mrb[0].mxu0
        %v1005 = vadd.f32 0.0, %v1004
        %v1006 = vpop.f32.mrb[0].mxu0
        %v1007 = vpop.f32.mrb[0].mxu0
        %v1008 = vpop.f32.mrb[0].mxu0
        %1009 = vdwg.mxu0
        %v1010 = vrcp.pop %v959
        %v1011 = vmul.f32 %v1005, %v1010
        %1012 = vrot.lane.b32.xlu0 %v675, 112
        %v1013 = vpop.permute.xlu0 %1012
        %1014 = vrot.lane.b32.xlu0 %v735, 112
        %v1015 = vpop.permute.xlu0 %1014
        %v1017 = vsel %vm793, %v1013, 0
        %v1020 = vsel %vm793, %v1015, 0
        %1022 = vmatprep.subr.bf16.mxu0 0
        %1023 = vmatpush1.bf16.xpose.msra.mxu0 %v1020
        %1024 = vmatprep.subr.bf16.mxu0 0
        %1025 = vmatpush1.bf16.xpose.msra.mxu0 0
        %1026 = vmatprep.subr.bf16.mxu0 0
        %1027 = vmatpush1.bf16.xpose.msra.mxu0 0
        %1028 = vmatprep.subr.bf16.mxu0 0
        %1029 = vmatpush1.bf16.xpose.msra.mxu0 0
        %1030 = vmatprep.subr.bf16.mxu0 0
        %1031 = vmatpush1.bf16.xpose.msra.mxu0 0
        %1032 = vmatprep.subr.bf16.mxu0 0
        %1033 = vmatpush1.bf16.xpose.msra.mxu0 0
        %1034 = vmatprep.subr.bf16.mxu0 0
        %1035 = vmatpush1.bf16.xpose.msra.mxu0 0
        %1036 = vmatprep.subr.bf16.mxu0 0
        %1037 = vmatpush1.bf16.xpose.msra.mxu0 0
        %1038 = vmatprep.subr.bf16.mxu0 0
        %1039 = vmatpush1.bf16.xpose.msra.mxu0 0
        %1040 = vmatprep.subr.bf16.mxu0 0
        %1041 = vmatpush1.bf16.xpose.msra.mxu0 0
        %1042 = vmatprep.subr.bf16.mxu0 0
        %1043 = vmatpush1.bf16.xpose.msra.mxu0 0
        %1044 = vmatprep.subr.bf16.mxu0 0
        %1045 = vmatpush1.bf16.xpose.msra.mxu0 0
        %1046 = vmatprep.subr.bf16.mxu0 0
        %1047 = vmatpush1.bf16.xpose.msra.mxu0 0
        %1048 = vmatprep.subr.bf16.mxu0 0
        %1049 = vmatpush1.bf16.xpose.msra.mxu0 0
        %1050 = vmatprep.subr.bf16.mxu0 0
        %1051 = vmatpush1.bf16.xpose.msra.mxu0 0
        %1052 = vmatprep.subr.bf16.mxu0 0
        %1053 = vmatpush1.bf16.xpose.msra.mxu0 0
        %1054 = vmatprep.mubr.bf16.mxu0 0
        %1055 = vmatmul.mubr.bf16.gmra.mrb[0].mxu0 %v1017
        %v1056 = vpop.f32.mrb[0].mxu0
        %v1057 = vadd.f32 %v611, %v1056
        %v1058 = vpop.f32.mrb[0].mxu0
        %v1059 = vpop.f32.mrb[0].mxu0
        %v1060 = vpop.f32.mrb[0].mxu0
        %1061 = vdwg.mxu0
        %v1062 = vsel %vm793, %v1057, -inf
        %1063 = vmax.xlane.f32.xlu0 %v1062
        %v1064 = vpop.xlane.xlu0 %1063
        %v1065 = vsub.f32 %v1057, %v1064
        %v1066 = vmul.f32 %v1065, 1.442695
        %v1067 = vpow.pop %v1066
        %v1068 = vsel %vm793, %v1067, 0.0
        %1069 = vadd.xlane.f32.xlu0 %v1068
        %v1070 = vpop.xlane.xlu0 %1069
        %v1071 = vpack.c.bf16 %v1067, %v1067
        %1072 = vrot.lane.b32.xlu0 %v792, 112
        %v1073 = vpop.permute.xlu0 %1072
        %v1075 = vsel %vm793, %v1071, 0
        %v1078 = vsel %vm853, %v1073, 0
        %1080 = vmatprep.subr.bf16.mxu0 0
        %1081 = vmatpush1.bf16.msra.mxu0 %v1078
        %1082 = vmatprep.subr.bf16.mxu0 0
        %1083 = vmatpush1.bf16.msra.mxu0 0
        %1084 = vmatprep.subr.bf16.mxu0 0
        %1085 = vmatpush1.bf16.msra.mxu0 0
        %1086 = vmatprep.subr.bf16.mxu0 0
        %1087 = vmatpush1.bf16.msra.mxu0 0
        %1088 = vmatprep.subr.bf16.mxu0 0
        %1089 = vmatpush1.bf16.msra.mxu0 0
        %1090 = vmatprep.subr.bf16.mxu0 0
        %1091 = vmatpush1.bf16.msra.mxu0 0
        %1092 = vmatprep.subr.bf16.mxu0 0
        %1093 = vmatpush1.bf16.msra.mxu0 0
        %1094 = vmatprep.subr.bf16.mxu0 0
        %1095 = vmatpush1.bf16.msra.mxu0 0
        %1096 = vmatprep.subr.bf16.mxu0 0
        %1097 = vmatpush1.bf16.msra.mxu0 0
        %1098 = vmatprep.subr.bf16.mxu0 0
        %1099 = vmatpush1.bf16.msra.mxu0 0
        %1100 = vmatprep.subr.bf16.mxu0 0
        %1101 = vmatpush1.bf16.msra.mxu0 0
        %1102 = vmatprep.subr.bf16.mxu0 0
        %1103 = vmatpush1.bf16.msra.mxu0 0
        %1104 = vmatprep.subr.bf16.mxu0 0
        %1105 = vmatpush1.bf16.msra.mxu0 0
        %1106 = vmatprep.subr.bf16.mxu0 0
        %1107 = vmatpush1.bf16.msra.mxu0 0
        %1108 = vmatprep.subr.bf16.mxu0 0
        %1109 = vmatpush1.bf16.msra.mxu0 0
        %1110 = vmatprep.subr.bf16.mxu0 0
        %1111 = vmatpush1.bf16.msra.mxu0 0
        %1112 = vmatprep.mubr.bf16.mxu0 0
        %1113 = vmatmul.mubr.bf16.gmra.mrb[0].mxu0 %v1075
        %v1114 = vpop.f32.mrb[0].mxu0
        %v1115 = vadd.f32 0.0, %v1114
        %v1116 = vpop.f32.mrb[0].mxu0
        %v1117 = vpop.f32.mrb[0].mxu0
        %v1118 = vpop.f32.mrb[0].mxu0
        %1119 = vdwg.mxu0
        %v1120 = vrcp.pop %v1070
        %v1121 = vmul.f32 %v1115, %v1120
        %1122 = vrot.lane.b32.xlu0 %v675, 104
        %v1123 = vpop.permute.xlu0 %1122
        %1124 = vrot.lane.b32.xlu0 %v735, 104
        %v1125 = vpop.permute.xlu0 %1124
        %v1127 = vsel %vm793, %v1123, 0
        %v1130 = vsel %vm793, %v1125, 0
        %1132 = vmatprep.subr.bf16.mxu0 0
        %1133 = vmatpush1.bf16.xpose.msra.mxu0 %v1130
        %1134 = vmatprep.subr.bf16.mxu0 0
        %1135 = vmatpush1.bf16.xpose.msra.mxu0 0
        %1136 = vmatprep.subr.bf16.mxu0 0
        %1137 = vmatpush1.bf16.xpose.msra.mxu0 0
        %1138 = vmatprep.subr.bf16.mxu0 0
        %1139 = vmatpush1.bf16.xpose.msra.mxu0 0
        %1140 = vmatprep.subr.bf16.mxu0 0
        %1141 = vmatpush1.bf16.xpose.msra.mxu0 0
        %1142 = vmatprep.subr.bf16.mxu0 0
        %1143 = vmatpush1.bf16.xpose.msra.mxu0 0
        %1144 = vmatprep.subr.bf16.mxu0 0
        %1145 = vmatpush1.bf16.xpose.msra.mxu0 0
        %1146 = vmatprep.subr.bf16.mxu0 0
        %1147 = vmatpush1.bf16.xpose.msra.mxu0 0
        %1148 = vmatprep.subr.bf16.mxu0 0
        %1149 = vmatpush1.bf16.xpose.msra.mxu0 0
        %1150 = vmatprep.subr.bf16.mxu0 0
        %1151 = vmatpush1.bf16.xpose.msra.mxu0 0
        %1152 = vmatprep.subr.bf16.mxu0 0
        %1153 = vmatpush1.bf16.xpose.msra.mxu0 0
        %1154 = vmatprep.subr.bf16.mxu0 0
        %1155 = vmatpush1.bf16.xpose.msra.mxu0 0
        %1156 = vmatprep.subr.bf16.mxu0 0
        %1157 = vmatpush1.bf16.xpose.msra.mxu0 0
        %1158 = vmatprep.subr.bf16.mxu0 0
        %1159 = vmatpush1.bf16.xpose.msra.mxu0 0
        %1160 = vmatprep.subr.bf16.mxu0 0
        %1161 = vmatpush1.bf16.xpose.msra.mxu0 0
        %1162 = vmatprep.subr.bf16.mxu0 0
        %1163 = vmatpush1.bf16.xpose.msra.mxu0 0
        %1164 = vmatprep.mubr.bf16.mxu0 0
        %1165 = vmatmul.mubr.bf16.gmra.mrb[0].mxu0 %v1127
        %v1166 = vpop.f32.mrb[0].mxu0
        %v1167 = vadd.f32 %v611, %v1166
        %v1168 = vpop.f32.mrb[0].mxu0
        %v1169 = vpop.f32.mrb[0].mxu0
        %v1170 = vpop.f32.mrb[0].mxu0
        %1171 = vdwg.mxu0
        %v1172 = vsel %vm793, %v1167, -inf
        %1173 = vmax.xlane.f32.xlu0 %v1172
        %v1174 = vpop.xlane.xlu0 %1173
        %v1175 = vsub.f32 %v1167, %v1174
        %v1176 = vmul.f32 %v1175, 1.442695
        %v1177 = vpow.pop %v1176
        %v1178 = vsel %vm793, %v1177, 0.0
        %1179 = vadd.xlane.f32.xlu0 %v1178
        %v1180 = vpop.xlane.xlu0 %1179
        %v1181 = vpack.c.bf16 %v1177, %v1177
        %1182 = vrot.lane.b32.xlu0 %v792, 104
        %v1183 = vpop.permute.xlu0 %1182
        %v1185 = vsel %vm793, %v1181, 0
        %v1188 = vsel %vm853, %v1183, 0
        %1190 = vmatprep.subr.bf16.mxu0 0
        %1191 = vmatpush1.bf16.msra.mxu0 %v1188
        %1192 = vmatprep.subr.bf16.mxu0 0
        %1193 = vmatpush1.bf16.msra.mxu0 0
        %1194 = vmatprep.subr.bf16.mxu0 0
        %1195 = vmatpush1.bf16.msra.mxu0 0
        %1196 = vmatprep.subr.bf16.mxu0 0
        %1197 = vmatpush1.bf16.msra.mxu0 0
        %1198 = vmatprep.subr.bf16.mxu0 0
        %1199 = vmatpush1.bf16.msra.mxu0 0
        %1200 = vmatprep.subr.bf16.mxu0 0
        %1201 = vmatpush1.bf16.msra.mxu0 0
        %1202 = vmatprep.subr.bf16.mxu0 0
        %1203 = vmatpush1.bf16.msra.mxu0 0
        %1204 = vmatprep.subr.bf16.mxu0 0
        %1205 = vmatpush1.bf16.msra.mxu0 0
        %1206 = vmatprep.subr.bf16.mxu0 0
        %1207 = vmatpush1.bf16.msra.mxu0 0
        %1208 = vmatprep.subr.bf16.mxu0 0
        %1209 = vmatpush1.bf16.msra.mxu0 0
        %1210 = vmatprep.subr.bf16.mxu0 0
        %1211 = vmatpush1.bf16.msra.mxu0 0
        %1212 = vmatprep.subr.bf16.mxu0 0
        %1213 = vmatpush1.bf16.msra.mxu0 0
        %1214 = vmatprep.subr.bf16.mxu0 0
        %1215 = vmatpush1.bf16.msra.mxu0 0
        %1216 = vmatprep.subr.bf16.mxu0 0
        %1217 = vmatpush1.bf16.msra.mxu0 0
        %1218 = vmatprep.subr.bf16.mxu0 0
        %1219 = vmatpush1.bf16.msra.mxu0 0
        %1220 = vmatprep.subr.bf16.mxu0 0
        %1221 = vmatpush1.bf16.msra.mxu0 0
        %1222 = vmatprep.mubr.bf16.mxu0 0
        %1223 = vmatmul.mubr.bf16.gmra.mrb[0].mxu0 %v1185
        %v1224 = vpop.f32.mrb[0].mxu0
        %v1225 = vadd.f32 0.0, %v1224
        %v1226 = vpop.f32.mrb[0].mxu0
        %v1227 = vpop.f32.mrb[0].mxu0
        %v1228 = vpop.f32.mrb[0].mxu0
        %1229 = vdwg.mxu0
        %v1230 = vrcp.pop %v1180
        %v1231 = vmul.f32 %v1225, %v1230
        %1233 = vrot.lane.b32.xlu0 %v1011, 8
        %v1234 = vpop.permute.xlu0 %1233
        %1237 = vrot.lane.b32.xlu0 %v1121, 16
        %v1238 = vpop.permute.xlu0 %1237
        %1241 = vrot.lane.b32.xlu0 %v1231, 24
        %v1242 = vpop.permute.xlu0 %1241
        %v1244 = vsel %vm793, %v898, %v1234
        %vm1245 = vcmask 130048
        %v1246 = vsel %vm1245, %v1244, %v1238
        %vm1247 = vcmask 195584
        %v1248 = vsel %vm1247, %v1246, %v1242
        %v1249 = vpack.c.bf16 %v1248, %v1248
        %v1250 = vld [vmem:[#allocation5] sm:$0xf]
        %v1251 = vld [vmem:[#allocation5 + $0x4] sm:$0xf]
        %v1252 = vld [vmem:[#allocation5 + $0x8] sm:$0xf]
        %v1253 = vld [vmem:[#allocation5 + $0xc] sm:$0xf]
        %v1254 = vld [vmem:[%s7] sm:$0x1]
        %v1256 = vlaneseq
        %v1257 = vshrl.u32 %v1256, 7
        %v1258 = vsub.s32 0, %v1257
        %v1259 = vrot.slane %v1254, %v1258
        %v1265 = vunpack.c.l.b16 %v1250
        %v1266 = vunpack.c.l.b16 %v1251
        %v1267 = vunpack.c.l.b16 %v1252
        %v1268 = vunpack.c.l.b16 %v1253
        %v1269 = vpack.c.b16 %v1266, %v1265
        %v1270 = vpack.c.b16 %v1268, %v1267
        %v1274 = vsel %vm630, %v1249, 0
        %1276 = vmatprep.subr.bf16.mxu0 0
        %1277 = vmatpush1.bf16.msra.mxu0 %v1269
        %1278 = vmatprep.subr.bf16.mxu0 0
        %1279 = vmatpush1.bf16.msra.mxu0 %v1270
        %1280 = vmatprep.subr.bf16.mxu0 0
        %1281 = vmatpush1.bf16.msra.mxu0 0
        %1282 = vmatprep.subr.bf16.mxu0 0
        %1283 = vmatpush1.bf16.msra.mxu0 0
        %1284 = vmatprep.subr.bf16.mxu0 0
        %1285 = vmatpush1.bf16.msra.mxu0 0
        %1286 = vmatprep.subr.bf16.mxu0 0
        %1287 = vmatpush1.bf16.msra.mxu0 0
        %1288 = vmatprep.subr.bf16.mxu0 0
        %1289 = vmatpush1.bf16.msra.mxu0 0
        %1290 = vmatprep.subr.bf16.mxu0 0
        %1291 = vmatpush1.bf16.msra.mxu0 0
        %1292 = vmatprep.subr.bf16.mxu0 0
        %1293 = vmatpush1.bf16.msra.mxu0 0
        %1294 = vmatprep.subr.bf16.mxu0 0
        %1295 = vmatpush1.bf16.msra.mxu0 0
        %1296 = vmatprep.subr.bf16.mxu0 0
        %1297 = vmatpush1.bf16.msra.mxu0 0
        %1298 = vmatprep.subr.bf16.mxu0 0
        %1299 = vmatpush1.bf16.msra.mxu0 0
        %1300 = vmatprep.subr.bf16.mxu0 0
        %1301 = vmatpush1.bf16.msra.mxu0 0
        %1302 = vmatprep.subr.bf16.mxu0 0
        %1303 = vmatpush1.bf16.msra.mxu0 0
        %1304 = vmatprep.subr.bf16.mxu0 0
        %1305 = vmatpush1.bf16.msra.mxu0 0
        %1306 = vmatprep.subr.bf16.mxu0 0
        %1307 = vmatpush1.bf16.msra.mxu0 0
        %1308 = vmatprep.mubr.bf16.mxu0 0
        %1309 = vmatmul.mubr.bf16.gmra.mrb[0].mxu0 %v1274
        %v1310 = vpop.f32.mrb[0].mxu0
        %v1311 = vadd.f32 %v1259, %v1310
        %v1312 = vpop.f32.mrb[0].mxu0
        %v1313 = vpop.f32.mrb[0].mxu0
        %v1314 = vpop.f32.mrb[0].mxu0
        %1315 = vdwg.mxu0
        %v1316 = vadd.f32 %v1311, %v607
        %v1317 = vld [vmem:[%s8] sm:$0x1]
        %v1318 = vld [vmem:[#allocation7] sm:$0x1]
        %v1319 = vsel %vm630, %v1316, 0.0
        %1320 = vadd.xlane.f32.xlu0 %v1319
        %v1321 = vpop.xlane.xlu0 %1320
        %v1322 = vrcp.pop 32.0
        %v1323 = vmul.f32 %v1321, %v1322
        %v1324 = vsub.f32 %v1316, %v1323
        %v1325 = vmul.f32 %v1324, %v1324
        %v1326 = vsel %vm630, %v1325, 0.0
        %1327 = vadd.xlane.f32.xlu0 %v1326
        %v1328 = vpop.xlane.xlu0 %1327
        %v1329 = vmul.f32 %v1328, %v1322
        %v1330 = vadd.f32 %v1329, 1e-05
        %v1331 = vrsqrt.pop %v1330
        %v1332 = vmul.f32 %v1324, %v1331
        %v1334 = vlaneseq
        %v1335 = vshrl.u32 %v1334, 7
        %v1336 = vsub.s32 0, %v1335
        %v1337 = vrot.slane %v1317, %v1336
        %v1339 = vmul.f32 %v1332, %v1337
        %v1341 = vlaneseq
        %v1342 = vshrl.u32 %v1341, 7
        %v1343 = vsub.s32 0, %v1342
        %v1344 = vrot.slane %v1318, %v1343
        %v1346 = vadd.f32 %v1339, %v1344
        %v1347 = vpack.c.bf16 %v1346, %v1346
        %v1348 = vld [vmem:[%s10] sm:$0xf]
        %v1349 = vld [vmem:[%s10 + $0x4] sm:$0xf]
        %v1350 = vld [vmem:[%s10 + $0x8] sm:$0xf]
        %v1351 = vld [vmem:[%s10 + $0xc] sm:$0xf]
        %v1352 = vld [vmem:[%s11] sm:$0x1]
        %v1354 = vlaneseq
        %v1355 = vshrl.u32 %v1354, 7
        %v1356 = vsub.s32 0, %v1355
        %v1357 = vrot.slane %v1352, %v1356
        %v1363 = vunpack.c.l.b16 %v1348
        %v1364 = vunpack.c.l.b16 %v1349
        %v1365 = vunpack.c.l.b16 %v1350
        %v1366 = vunpack.c.l.b16 %v1351
        %v1367 = vpack.c.b16 %v1364, %v1363
        %v1368 = vpack.c.b16 %v1366, %v1365
        %v1372 = vsel %vm630, %v1347, 0
        %1374 = vmatprep.subr.bf16.mxu0 0
        %1375 = vmatpush1.bf16.msra.mxu0 %v1367
        %1376 = vmatprep.subr.bf16.mxu0 0
        %1377 = vmatpush1.bf16.msra.mxu0 %v1368
        %1378 = vmatprep.subr.bf16.mxu0 0
        %1379 = vmatpush1.bf16.msra.mxu0 0
        %1380 = vmatprep.subr.bf16.mxu0 0
        %1381 = vmatpush1.bf16.msra.mxu0 0
        %1382 = vmatprep.subr.bf16.mxu0 0
        %1383 = vmatpush1.bf16.msra.mxu0 0
        %1384 = vmatprep.subr.bf16.mxu0 0
        %1385 = vmatpush1.bf16.msra.mxu0 0
        %1386 = vmatprep.subr.bf16.mxu0 0
        %1387 = vmatpush1.bf16.msra.mxu0 0
        %1388 = vmatprep.subr.bf16.mxu0 0
        %1389 = vmatpush1.bf16.msra.mxu0 0
        %1390 = vmatprep.subr.bf16.mxu0 0
        %1391 = vmatpush1.bf16.msra.mxu0 0
        %1392 = vmatprep.subr.bf16.mxu0 0
        %1393 = vmatpush1.bf16.msra.mxu0 0
        %1394 = vmatprep.subr.bf16.mxu0 0
        %1395 = vmatpush1.bf16.msra.mxu0 0
        %1396 = vmatprep.subr.bf16.mxu0 0
        %1397 = vmatpush1.bf16.msra.mxu0 0
        %1398 = vmatprep.subr.bf16.mxu0 0
        %1399 = vmatpush1.bf16.msra.mxu0 0
        %1400 = vmatprep.subr.bf16.mxu0 0
        %1401 = vmatpush1.bf16.msra.mxu0 0
        %1402 = vmatprep.subr.bf16.mxu0 0
        %1403 = vmatpush1.bf16.msra.mxu0 0
        %1404 = vmatprep.subr.bf16.mxu0 0
        %1405 = vmatpush1.bf16.msra.mxu0 0
        %1406 = vmatprep.mubr.bf16.mxu0 0
        %1407 = vmatmul.mubr.bf16.gmra.mrb[0].mxu0 %v1372
        %v1408 = vpop.f32.mrb[0].mxu0
        %v1409 = vadd.f32 %v1357, %v1408
        %v1410 = vpop.f32.mrb[0].mxu0
        %v1411 = vpop.f32.mrb[0].mxu0
        %v1412 = vpop.f32.mrb[0].mxu0
        %1413 = vdwg.mxu0
        %v1414 = vmax.f32 %v1409, 0.0
        %v1415 = vpack.c.bf16 %v1414, %v1414
        %v1416 = vld [vmem:[%s12] sm:$0xf]
        %v1417 = vld [vmem:[%s12 + $0x4] sm:$0xf]
        %v1418 = vld [vmem:[%s12 + $0x8] sm:$0xf]
        %v1419 = vld [vmem:[%s12 + $0xc] sm:$0xf]
        %v1420 = vld [vmem:[%s12 + $0x10] sm:$0xf]
        %v1421 = vld [vmem:[%s12 + $0x14] sm:$0xf]
        %v1422 = vld [vmem:[%s12 + $0x18] sm:$0xf]
        %v1423 = vld [vmem:[%s12 + $0x1c] sm:$0xf]
        %v1424 = vld [vmem:[%s12 + $0x20] sm:$0xf]
        %v1425 = vld [vmem:[%s12 + $0x24] sm:$0xf]
        %v1426 = vld [vmem:[%s12 + $0x28] sm:$0xf]
        %v1427 = vld [vmem:[%s12 + $0x2c] sm:$0xf]
        %v1428 = vld [vmem:[%s12 + $0x30] sm:$0xf]
        %v1429 = vld [vmem:[%s12 + $0x34] sm:$0xf]
        %v1430 = vld [vmem:[%s12 + $0x38] sm:$0xf]
        %v1431 = vld [vmem:[%s12 + $0x3c] sm:$0xf]
        %v1432 = vld [vmem:[%s13] sm:$0x1]
        %v1434 = vlaneseq
        %v1435 = vshrl.u32 %v1434, 7
        %v1436 = vsub.s32 0, %v1435
        %v1437 = vrot.slane %v1432, %v1436
        %v1455 = vunpack.c.l.b16 %v1416
        %v1456 = vunpack.c.l.b16 %v1417
        %v1457 = vunpack.c.l.b16 %v1418
        %v1458 = vunpack.c.l.b16 %v1419
        %v1459 = vunpack.c.l.b16 %v1420
        %v1460 = vunpack.c.l.b16 %v1421
        %v1461 = vunpack.c.l.b16 %v1422
        %v1462 = vunpack.c.l.b16 %v1423
        %v1463 = vunpack.c.l.b16 %v1424
        %v1464 = vunpack.c.l.b16 %v1425
        %v1465 = vunpack.c.l.b16 %v1426
        %v1466 = vunpack.c.l.b16 %v1427
        %v1467 = vunpack.c.l.b16 %v1428
        %v1468 = vunpack.c.l.b16 %v1429
        %v1469 = vunpack.c.l.b16 %v1430
        %v1470 = vunpack.c.l.b16 %v1431
        %v1471 = vpack.c.b16 %v1456, %v1455
        %v1472 = vpack.c.b16 %v1458, %v1457
        %v1473 = vpack.c.b16 %v1460, %v1459
        %v1474 = vpack.c.b16 %v1462, %v1461
        %v1475 = vpack.c.b16 %v1464, %v1463
        %v1476 = vpack.c.b16 %v1466, %v1465
        %v1477 = vpack.c.b16 %v1468, %v1467
        %v1478 = vpack.c.b16 %v1470, %v1469
        %1487 = vmatprep.subr.bf16.mxu0 0
        %1488 = vmatpush1.bf16.msra.mxu0 %v1471
        %1489 = vmatprep.subr.bf16.mxu0 0
        %1490 = vmatpush1.bf16.msra.mxu0 %v1472
        %1491 = vmatprep.subr.bf16.mxu0 0
        %1492 = vmatpush1.bf16.msra.mxu0 %v1473
        %1493 = vmatprep.subr.bf16.mxu0 0
        %1494 = vmatpush1.bf16.msra.mxu0 %v1474
        %1495 = vmatprep.subr.bf16.mxu0 0
        %1496 = vmatpush1.bf16.msra.mxu0 %v1475
        %1497 = vmatprep.subr.bf16.mxu0 0
        %1498 = vmatpush1.bf16.msra.mxu0 %v1476
        %1499 = vmatprep.subr.bf16.mxu0 0
        %1500 = vmatpush1.bf16.msra.mxu0 %v1477
        %1501 = vmatprep.subr.bf16.mxu0 0
        %1502 = vmatpush1.bf16.msra.mxu0 %v1478
        %1503 = vmatprep.subr.bf16.mxu0 0
        %1504 = vmatpush1.bf16.msra.mxu0 0
        %1505 = vmatprep.subr.bf16.mxu0 0
        %1506 = vmatpush1.bf16.msra.mxu0 0
        %1507 = vmatprep.subr.bf16.mxu0 0
        %1508 = vmatpush1.bf16.msra.mxu0 0
        %1509 = vmatprep.subr.bf16.mxu0 0
        %1510 = vmatpush1.bf16.msra.mxu0 0
        %1511 = vmatprep.subr.bf16.mxu0 0
        %1512 = vmatpush1.bf16.msra.mxu0 0
        %1513 = vmatprep.subr.bf16.mxu0 0
        %1514 = vmatpush1.bf16.msra.mxu0 0
        %1515 = vmatprep.subr.bf16.mxu0 0
        %1516 = vmatpush1.bf16.msra.mxu0 0
        %1517 = vmatprep.subr.bf16.mxu0 0
        %1518 = vmatpush1.bf16.msra.mxu0 0
        %1519 = vmatprep.mubr.bf16.mxu0 0
        %1520 = vmatmul.mubr.bf16.gmra.mrb[0].mxu0 %v1415
        %v1521 = vpop.f32.mrb[0].mxu0
        %v1522 = vadd.f32 %v1437, %v1521
        %v1523 = vpop.f32.mrb[0].mxu0
        %v1524 = vpop.f32.mrb[0].mxu0
        %v1525 = vpop.f32.mrb[0].mxu0
        %1526 = vdwg.mxu0
        %v1527 = vadd.f32 %v1522, %v1346
        %v1528 = vld [vmem:[%s14] sm:$0x1]
        %v1529 = vld [vmem:[%s15] sm:$0x1]
        %v1530 = vsel %vm630, %v1527, 0.0
        %1531 = vadd.xlane.f32.xlu0 %v1530
        %v1532 = vpop.xlane.xlu0 %1531
        %v1533 = vmul.f32 %v1532, %v1322
        %v1534 = vsub.f32 %v1527, %v1533
        %v1535 = vmul.f32 %v1534, %v1534
        %v1536 = vsel %vm630, %v1535, 0.0
        %1537 = vadd.xlane.f32.xlu0 %v1536
        %v1538 = vpop.xlane.xlu0 %1537
        %v1539 = vmul.f32 %v1538, %v1322
        %v1540 = vadd.f32 %v1539, 1e-05
        %v1541 = vrsqrt.pop %v1540
        %v1542 = vmul.f32 %v1534, %v1541
        %v1544 = vlaneseq
        %v1545 = vshrl.u32 %v1544, 7
        %v1546 = vsub.s32 0, %v1545
        %v1547 = vrot.slane %v1528, %v1546
        %v1549 = vmul.f32 %v1542, %v1547
        %v1551 = vlaneseq
        %v1552 = vshrl.u32 %v1551, 7
        %v1553 = vsub.s32 0, %v1552
        %v1554 = vrot.slane %v1529, %v1553
        %v1556 = vadd.f32 %v1549, %v1554
        %1557 = vst.msk [vmem:[%s594] sm:$0xff] %vm630, %v1556
        %s1558 = sand.u32 %s407, 1
        %s1559 = scalar_lea.sflag [#allocation4], %s1558
        %s1560 = sand.u32 %s407, 1
        %s1561 = smul.addr %s1560, 8
        %s1562 = scalar_lea.vmem [#allocation8], %s1561
        // Predicated region
        $region97: #{tpu_custom_call.1} parent=83 // pred_check
          %p1563 = pneg %p417
        $region98: #{tpu_custom_call.1} parent=83 // pred_check_branch
          %1565 = sbr.rel (%p1563) target = $region100
        $region99: #{tpu_custom_call.1} parent=83 // pred_region
          %s1567 = ssub.s32 128, 128
          %1568 = vsyncadd %s1559, %s1567
          %s1569 = sadd.s32 %s37, %s36
          %s1570 = smul.addr %s1569, 128
          %s1571 = scalar_lea.hbm %s16, %s1570
          %s1573 = sshll.u32 %s1562, 4
          %s1574 = int_to_ptr.vmem [resolvable:$true] %s1573
          %1576 = dma.vmem_to_hbm [thread:$0]  %s1574, 128, %s1571, %s1559
        $region100: #{tpu_custom_call.1} parent=83 // pred_fallthru
          _
      $region84: #{tpu_custom_call.1} parent=5 // pred_fallthru
        _
      %p1577 = scmp.le.s32.totalorder 2, %s27
      // Predicated region
      $region101: #{tpu_custom_call.1} parent=5 // pred_check
        %p1578 = pneg %p1577
      $region102: #{tpu_custom_call.1} parent=5 // pred_check_branch
        %1580 = sbr.rel (%p1578) target = $region104
      $region103: #{tpu_custom_call.1} parent=5 // pred_region
        %s1581 = ssub.s32 %s27, 2
        // Predicated region
        $region105: #{tpu_custom_call.1} parent=103 // pred_check
          %p1582 = pneg %p423
        $region106: #{tpu_custom_call.1} parent=103 // pred_check_branch
          %1584 = sbr.rel (%p1582) target = $region108
        $region107: #{tpu_custom_call.1} parent=103 // pred_region
          %s1585 = sand.u32 %s408, 1
          %s1586 = scalar_lea.sflag [#allocation4], %s1585
          %s1587 = sand.u32 %s408, 1
          %s1588 = smul.addr %s1587, 8
          %s1589 = scalar_lea.vmem [#allocation8], %s1588
          %1590 = dma.done %s1586, 128
        $region108: #{tpu_custom_call.1} parent=103 // pred_fallthru
          _
      $region104: #{tpu_custom_call.1} parent=5 // pred_fallthru
        _
    $region6: #{tpu_custom_call.1} parent=1 // loop_footer
      %s31 = sadd.s32 1, %s27
    $region7: #{tpu_custom_call.1} parent=1 // loop_footer_branch
      %26 = sbr.rel target = $region3
    $region8: #{tpu_custom_call.1} parent=1 // loop_exit
      _
    %1591 = vsyncpa [#allocation3], 1
    %s1592 = scalar_lea.sflag [#allocation3], 1
    %1593 = vsyncpa %s1592, 1
    %1594 = vsyncpa [#allocation6], 1
    %1595 = vsyncpa [#allocation4], 1
    %s1596 = scalar_lea.sflag [#allocation4], 1
    %1597 = vsyncpa %s1596, 1

// kernel: tpu_custom_call.1
$region0: #{tpu_custom_call.1}
  #allocation0 [shape = 'u32[]', space=smem, size = 0x4, offset = 0x4, fixed_abs, tag = 'smem constant byte address 0x4 - core index']
  #allocation1 [shape = 'u32[144,128]{1,0:T(1,128)}', space=vmem, size = 0x12000, scoped, tag = 'internal scratch']
  %s0 = inlined_call_operand.vmem [shape: f32[2,8,32], index: 0, kind: input, shape index: {}]
  %s1 = inlined_call_operand.vmem [shape: f32[2,8,32], index: 1, kind: input, shape index: {}]
  %s2 = inlined_call_operand.hbm [shape: f32[8,8], index: 2, kind: input, shape index: {}]
  %s3 = inlined_call_operand.vmem [shape: bf16[32,32], index: 3, kind: input, shape index: {}]
  %s4 = inlined_call_operand.vmem [shape: bf16[32,32], index: 4, kind: input, shape index: {}]
  %s5 = inlined_call_operand.vmem [shape: bf16[32,32], index: 5, kind: input, shape index: {}]
  %s6 = inlined_call_operand.hbm [shape: bf16[32,32], index: 6, kind: input, shape index: {}]
  %s7 = inlined_call_operand.vmem [shape: f32[1,32], index: 7, kind: input, shape index: {}]
  %s8 = inlined_call_operand.vmem [shape: f32[1,32], index: 8, kind: input, shape index: {}]
  %s9 = inlined_call_operand.hbm [shape: f32[1,32], index: 9, kind: input, shape index: {}]
  %s10 = inlined_call_operand.vmem [shape: bf16[32,128], index: 10, kind: input, shape index: {}]
  %s11 = inlined_call_operand.vmem [shape: f32[1,128], index: 11, kind: input, shape index: {}]
  %s12 = inlined_call_operand.vmem [shape: bf16[128,32], index: 12, kind: input, shape index: {}]
  %s13 = inlined_call_operand.vmem [shape: f32[1,32], index: 13, kind: input, shape index: {}]
  %s14 = inlined_call_operand.vmem [shape: f32[1,32], index: 14, kind: input, shape index: {}]
  %s15 = inlined_call_operand.vmem [shape: f32[1,32], index: 15, kind: input, shape index: {}]
  %s16 = inlined_call_operand.hbm [shape: f32[2,8,32], index: 16, kind: output, shape index: {}]
  %s17 = sld [smem:[#allocation0]]
  $region109: #{tpu_custom_call.1} parent=0
    _
  %s19 = ssub.s32 1, %s17
  %s20 = scalar_select 0, %s19, %s17
  $region1: #{tpu_custom_call.1} parent=0
    #allocation2 [shape = 'u8[4096]{0}', space=vmem, size = 0x1000, scoped, tag = 'input window, operand 2, single buffered']
    #allocation3 [shape = 's32[2]{0}', space=sflag, size = 0x8, scoped, tag = 'scoped memory for tpu_custom_call.1']
    #allocation4 [shape = 's32[2]{0}', space=sflag, size = 0x8, scoped, tag = 'scoped memory for tpu_custom_call.1']
    #allocation5 [shape = 'u8[8192]{0}', space=vmem, size = 0x2000, scoped, tag = 'input window, operand 6, single buffered']
    #allocation6 [shape = 's32[1]{0}', space=sflag, size = 0x4, scoped, tag = 'scoped memory for tpu_custom_call.1']
    #allocation7 [shape = 'u8[512]{0}', space=vmem, size = 0x400, scoped, tag = 'input window, operand 9, single buffered']
    #allocation8 [shape = 'u8[8192]{0}', space=vmem, size = 0x2000, scoped, tag = 'output window, operand 0']
    %21 = vsyncpa [#allocation3], 0
    %22 = vsyncpa [#allocation6], 0
    %23 = vsyncpa [#allocation4], 0
    %s24 = scalar_lea.sflag [#allocation4], 1
    %25 = vsyncpa %s24, 0
    loop: start=0, step=1, limit=4
    $region2: #{tpu_custom_call.1} parent=1 // loop_pre_header
      _
    $region3: #{tpu_custom_call.1} parent=1 // loop_header
      %s27 = sphi 0, %s31
      %p28 = scmp.ge.s32.totalorder %s27, 4
      %s34 = sphi 0, %s46
      %s35 = sphi 0, %s42
      %s36 = sphi 0, %s34
      %s37 = sphi 0, %s35
      %s38 = sphi 0, %s36
      %s39 = sphi 0, %s37
      %s51 = sphi 0, %s53
      %s54 = sphi 0, %s51
      %s55 = sphi 0, %s54
      %s71 = sphi 0, %s55
      %s77 = sphi 0, %s79
      %s80 = sphi 0, %s77
      %s81 = sphi 0, %s80
      %s97 = sphi 0, %s81
      %s103 = sphi 0, %s105
      %s106 = sphi 0, %s103
      %s107 = sphi 0, %s106
      %s123 = sphi 0, %s107
      %s127 = sphi 0, %s127
      %s129 = sphi 0, %s127
      %s130 = sphi 0, %s129
      %s144 = sphi 0, %s130
      %s148 = sphi 0, %s148
      %s150 = sphi 0, %s148
      %s151 = sphi 0, %s150
      %s165 = sphi 0, %s151
      %s169 = sphi 0, %s169
      %s171 = sphi 0, %s169
      %s172 = sphi 0, %s171
      %s186 = sphi 0, %s172
      %s190 = sphi 0, %s190
      %s192 = sphi 0, %s190
      %s193 = sphi 0, %s192
      %s207 = sphi 0, %s193
      %s211 = sphi 0, %s211
      %s213 = sphi 0, %s211
      %s214 = sphi 0, %s213
      %s228 = sphi 0, %s214
      %s232 = sphi 0, %s232
      %s234 = sphi 0, %s232
      %s235 = sphi 0, %s234
      %s249 = sphi 0, %s235
      %s253 = sphi 0, %s253
      %s255 = sphi 0, %s253
      %s256 = sphi 0, %s255
      %s270 = sphi 0, %s256
      %s274 = sphi 0, %s274
      %s276 = sphi 0, %s274
      %s277 = sphi 0, %s276
      %s291 = sphi 0, %s277
      %s295 = sphi 0, %s295
      %s297 = sphi 0, %s295
      %s298 = sphi 0, %s297
      %s312 = sphi 0, %s298
      %s316 = sphi 0, %s316
      %s318 = sphi 0, %s316
      %s319 = sphi 0, %s318
      %s333 = sphi 0, %s319
      %s337 = sphi 0, %s337
      %s339 = sphi 0, %s337
      %s340 = sphi 0, %s339
      %s354 = sphi 0, %s340
      %s358 = sphi 0, %s358
      %s360 = sphi 0, %s358
      %s361 = sphi 0, %s360
      %s375 = sphi 0, %s361
      %s379 = sphi 0, %s379
      %s381 = sphi 0, %s379
      %s382 = sphi 0, %s381
      %s396 = sphi 0, %s382
      %s404 = sphi 0, %s406
      %s407 = sphi 0, %s404
      %s408 = sphi 0, %s407
      %s424 = sphi 0, %s408
    $region4: #{tpu_custom_call.1} parent=1 // loop_header_branch
      %30 = sbr.rel (%p28) target = $region8
    $region5: #{tpu_custom_call.1} parent=1 // loop_body
      %s32 = ssub.s32 %s27, 1
      %s33 = ssub.s32 %s27, 2
      %s40 = sadd.s32 1, %s35
      %p41 = scmp.ge.s32.totalorder %s40, 1
      %s42 = scalar_select %p41, 0, %s40
      %s43 = sadd.s32 1, %s34
      %s44 = scalar_select %p41, %s43, %s34
      %p45 = scmp.ge.s32.totalorder %s44, 2
      %s46 = scalar_select %p45, 0, %s44
      %s47 = ssub.s32 %s34, %s46
      %s48 = ssub.s32 %s35, %s42
      %s49 = sor.u32 %s47, %s48
      %p50 = scmp.eq.s32.totalorder %s49, 0
      %s52 = sadd.s32 %s51, 1
      %s53 = scalar_select %p50, %s51, %s52
      %p56 = pneg %p50
      %p57 = scmp.eq.s32.totalorder %s27, 1
      %p58 = por %p56, %p57
      %p59 = scmp.ne.s32.totalorder %s51, %s54
      %p60 = scmp.eq.s32.totalorder %s27, 0
      %p61 = por %p59, %p60
      %p62 = scmp.ne.s32.totalorder %s51, %s54
      %p63 = scmp.eq.s32.totalorder %s32, 1
      %p64 = por %p62, %p63
      %p65 = scmp.ne.s32.totalorder %s54, %s55
      %p66 = scmp.eq.s32.totalorder %s32, 0
      %p67 = por %p65, %p66
      %p68 = scmp.ne.s32.totalorder %s54, %s55
      %p69 = scmp.eq.s32.totalorder %s33, 1
      %p70 = por %p68, %p69
      %p72 = scmp.ne.s32.totalorder %s55, %s71
      %p73 = scmp.eq.s32.totalorder %s33, 0
      %p74 = por %p72, %p73
      %s75 = ssub.s32 %s34, %s46
      %p76 = scmp.eq.s32.totalorder %s75, 0
      %s78 = sadd.s32 %s77, 1
      %s79 = scalar_select %p76, %s77, %s78
      %p82 = pneg %p76
      %p83 = scmp.eq.s32.totalorder %s27, 1
      %p84 = por %p82, %p83
      %p85 = scmp.ne.s32.totalorder %s77, %s80
      %p86 = scmp.eq.s32.totalorder %s27, 0
      %p87 = por %p85, %p86
      %p88 = scmp.ne.s32.totalorder %s77, %s80
      %p89 = scmp.eq.s32.totalorder %s32, 1
      %p90 = por %p88, %p89
      %p91 = scmp.ne.s32.totalorder %s80, %s81
      %p92 = scmp.eq.s32.totalorder %s32, 0
      %p93 = por %p91, %p92
      %p94 = scmp.ne.s32.totalorder %s80, %s81
      %p95 = scmp.eq.s32.totalorder %s33, 1
      %p96 = por %p94, %p95
      %p98 = scmp.ne.s32.totalorder %s81, %s97
      %p99 = scmp.eq.s32.totalorder %s33, 0
      %p100 = por %p98, %p99
      %s101 = ssub.s32 %s35, %s42
      %p102 = scmp.eq.s32.totalorder %s101, 0
      %s104 = sadd.s32 %s103, 1
      %s105 = scalar_select %p102, %s103, %s104
      %p108 = pneg %p102
      %p109 = scmp.eq.s32.totalorder %s27, 1
      %p110 = por %p108, %p109
      %p111 = scmp.ne.s32.totalorder %s103, %s106
      %p112 = scmp.eq.s32.totalorder %s27, 0
      %p113 = por %p111, %p112
      %p114 = scmp.ne.s32.totalorder %s103, %s106
      %p115 = scmp.eq.s32.totalorder %s32, 1
      %p116 = por %p114, %p115
      %p117 = scmp.ne.s32.totalorder %s106, %s107
      %p118 = scmp.eq.s32.totalorder %s32, 0
      %p119 = por %p117, %p118
      %p120 = scmp.ne.s32.totalorder %s106, %s107
      %p121 = scmp.eq.s32.totalorder %s33, 1
      %p122 = por %p120, %p121
      %p124 = scmp.ne.s32.totalorder %s107, %s123
      %p125 = scmp.eq.s32.totalorder %s33, 0
      %p126 = por %p124, %p125
      %s128 = sadd.s32 %s127, 1
      %p131 = scmp.eq.s32.totalorder %s27, 1
      %p132 = scmp.ne.s32.totalorder %s127, %s129
      %p133 = scmp.eq.s32.totalorder %s27, 0
      %p134 = por %p132, %p133
      %p135 = scmp.ne.s32.totalorder %s127, %s129
      %p136 = scmp.eq.s32.totalorder %s32, 1
      %p137 = por %p135, %p136
      %p138 = scmp.ne.s32.totalorder %s129, %s130
      %p139 = scmp.eq.s32.totalorder %s32, 0
      %p140 = por %p138, %p139
      %p141 = scmp.ne.s32.totalorder %s129, %s130
      %p142 = scmp.eq.s32.totalorder %s33, 1
      %p143 = por %p141, %p142
      %p145 = scmp.ne.s32.totalorder %s130, %s144
      %p146 = scmp.eq.s32.totalorder %s33, 0
      %p147 = por %p145, %p146
      %s149 = sadd.s32 %s148, 1
      %p152 = scmp.eq.s32.totalorder %s27, 1
      %p153 = scmp.ne.s32.totalorder %s148, %s150
      %p154 = scmp.eq.s32.totalorder %s27, 0
      %p155 = por %p153, %p154
      %p156 = scmp.ne.s32.totalorder %s148, %s150
      %p157 = scmp.eq.s32.totalorder %s32, 1
      %p158 = por %p156, %p157
      %p159 = scmp.ne.s32.totalorder %s150, %s151
      %p160 = scmp.eq.s32.totalorder %s32, 0
      %p161 = por %p159, %p160
      %p162 = scmp.ne.s32.totalorder %s150, %s151
      %p163 = scmp.eq.s32.totalorder %s33, 1
      %p164 = por %p162, %p163
      %p166 = scmp.ne.s32.totalorder %s151, %s165
      %p167 = scmp.eq.s32.totalorder %s33, 0
      %p168 = por %p166, %p167
      %s170 = sadd.s32 %s169, 1
      %p173 = scmp.eq.s32.totalorder %s27, 1
      %p174 = scmp.ne.s32.totalorder %s169, %s171
      %p175 = scmp.eq.s32.totalorder %s27, 0
      %p176 = por %p174, %p175
      %p177 = scmp.ne.s32.totalorder %s169, %s171
      %p178 = scmp.eq.s32.totalorder %s32, 1
      %p179 = por %p177, %p178
      %p180 = scmp.ne.s32.totalorder %s171, %s172
      %p181 = scmp.eq.s32.totalorder %s32, 0
      %p182 = por %p180, %p181
      %p183 = scmp.ne.s32.totalorder %s171, %s172
      %p184 = scmp.eq.s32.totalorder %s33, 1
      %p185 = por %p183, %p184
      %p187 = scmp.ne.s32.totalorder %s172, %s186
      %p188 = scmp.eq.s32.totalorder %s33, 0
      %p189 = por %p187, %p188
      %s191 = sadd.s32 %s190, 1
      %p194 = scmp.eq.s32.totalorder %s27, 1
      %p195 = scmp.ne.s32.totalorder %s190, %s192
      %p196 = scmp.eq.s32.totalorder %s27, 0
      %p197 = por %p195, %p196
      %p198 = scmp.ne.s32.totalorder %s190, %s192
      %p199 = scmp.eq.s32.totalorder %s32, 1
      %p200 = por %p198, %p199
      %p201 = scmp.ne.s32.totalorder %s192, %s193
      %p202 = scmp.eq.s32.totalorder %s32, 0
      %p203 = por %p201, %p202
      %p204 = scmp.ne.s32.totalorder %s192, %s193
      %p205 = scmp.eq.s32.totalorder %s33, 1
      %p206 = por %p204, %p205
      %p208 = scmp.ne.s32.totalorder %s193, %s207
      %p209 = scmp.eq.s32.totalorder %s33, 0
      %p210 = por %p208, %p209
      %s212 = sadd.s32 %s211, 1
      %p215 = scmp.eq.s32.totalorder %s27, 1
      %p216 = scmp.ne.s32.totalorder %s211, %s213
      %p217 = scmp.eq.s32.totalorder %s27, 0
      %p218 = por %p216, %p217
      %p219 = scmp.ne.s32.totalorder %s211, %s213
      %p220 = scmp.eq.s32.totalorder %s32, 1
      %p221 = por %p219, %p220
      %p222 = scmp.ne.s32.totalorder %s213, %s214
      %p223 = scmp.eq.s32.totalorder %s32, 0
      %p224 = por %p222, %p223
      %p225 = scmp.ne.s32.totalorder %s213, %s214
      %p226 = scmp.eq.s32.totalorder %s33, 1
      %p227 = por %p225, %p226
      %p229 = scmp.ne.s32.totalorder %s214, %s228
      %p230 = scmp.eq.s32.totalorder %s33, 0
      %p231 = por %p229, %p230
      %s233 = sadd.s32 %s232, 1
      %p236 = scmp.eq.s32.totalorder %s27, 1
      %p237 = scmp.ne.s32.totalorder %s232, %s234
      %p238 = scmp.eq.s32.totalorder %s27, 0
      %p239 = por %p237, %p238
      %p240 = scmp.ne.s32.totalorder %s232, %s234
      %p241 = scmp.eq.s32.totalorder %s32, 1
      %p242 = por %p240, %p241
      %p243 = scmp.ne.s32.totalorder %s234, %s235
      %p244 = scmp.eq.s32.totalorder %s32, 0
      %p245 = por %p243, %p244
      %p246 = scmp.ne.s32.totalorder %s234, %s235
      %p247 = scmp.eq.s32.totalorder %s33, 1
      %p248 = por %p246, %p247
      %p250 = scmp.ne.s32.totalorder %s235, %s249
      %p251 = scmp.eq.s32.totalorder %s33, 0
      %p252 = por %p250, %p251
      %s254 = sadd.s32 %s253, 1
      %p257 = scmp.eq.s32.totalorder %s27, 1
      %p258 = scmp.ne.s32.totalorder %s253, %s255
      %p259 = scmp.eq.s32.totalorder %s27, 0
      %p260 = por %p258, %p259
      %p261 = scmp.ne.s32.totalorder %s253, %s255
      %p262 = scmp.eq.s32.totalorder %s32, 1
      %p263 = por %p261, %p262
      %p264 = scmp.ne.s32.totalorder %s255, %s256
      %p265 = scmp.eq.s32.totalorder %s32, 0
      %p266 = por %p264, %p265
      %p267 = scmp.ne.s32.totalorder %s255, %s256
      %p268 = scmp.eq.s32.totalorder %s33, 1
      %p269 = por %p267, %p268
      %p271 = scmp.ne.s32.totalorder %s256, %s270
      %p272 = scmp.eq.s32.totalorder %s33, 0
      %p273 = por %p271, %p272
      %s275 = sadd.s32 %s274, 1
      %p278 = scmp.eq.s32.totalorder %s27, 1
      %p279 = scmp.ne.s32.totalorder %s274, %s276
      %p280 = scmp.eq.s32.totalorder %s27, 0
      %p281 = por %p279, %p280
      %p282 = scmp.ne.s32.totalorder %s274, %s276
      %p283 = scmp.eq.s32.totalorder %s32, 1
      %p284 = por %p282, %p283
      %p285 = scmp.ne.s32.totalorder %s276, %s277
      %p286 = scmp.eq.s32.totalorder %s32, 0
      %p287 = por %p285, %p286
      %p288 = scmp.ne.s32.totalorder %s276, %s277
      %p289 = scmp.eq.s32.totalorder %s33, 1
      %p290 = por %p288, %p289
      %p292 = scmp.ne.s32.totalorder %s277, %s291
      %p293 = scmp.eq.s32.totalorder %s33, 0
      %p294 = por %p292, %p293
      %s296 = sadd.s32 %s295, 1
      %p299 = scmp.eq.s32.totalorder %s27, 1
      %p300 = scmp.ne.s32.totalorder %s295, %s297
      %p301 = scmp.eq.s32.totalorder %s27, 0
      %p302 = por %p300, %p301
      %p303 = scmp.ne.s32.totalorder %s295, %s297
      %p304 = scmp.eq.s32.totalorder %s32, 1
      %p305 = por %p303, %p304
      %p306 = scmp.ne.s32.totalorder %s297, %s298
      %p307 = scmp.eq.s32.totalorder %s32, 0
      %p308 = por %p306, %p307
      %p309 = scmp.ne.s32.totalorder %s297, %s298
      %p310 = scmp.eq.s32.totalorder %s33, 1
      %p311 = por %p309, %p310
      %p313 = scmp.ne.s32.totalorder %s298, %s312
      %p314 = scmp.eq.s32.totalorder %s33, 0
      %p315 = por %p313, %p314
      %s317 = sadd.s32 %s316, 1
      %p320 = scmp.eq.s32.totalorder %s27, 1
      %p321 = scmp.ne.s32.totalorder %s316, %s318
      %p322 = scmp.eq.s32.totalorder %s27, 0
      %p323 = por %p321, %p322
      %p324 = scmp.ne.s32.totalorder %s316, %s318
      %p325 = scmp.eq.s32.totalorder %s32, 1
      %p326 = por %p324, %p325
      %p327 = scmp.ne.s32.totalorder %s318, %s319
      %p328 = scmp.eq.s32.totalorder %s32, 0
      %p329 = por %p327, %p328
      %p330 = scmp.ne.s32.totalorder %s318, %s319
      %p331 = scmp.eq.s32.totalorder %s33, 1
      %p332 = por %p330, %p331
      %p334 = scmp.ne.s32.totalorder %s319, %s333
      %p335 = scmp.eq.s32.totalorder %s33, 0
      %p336 = por %p334, %p335
      %s338 = sadd.s32 %s337, 1
      %p341 = scmp.eq.s32.totalorder %s27, 1
      %p342 = scmp.ne.s32.totalorder %s337, %s339
      %p343 = scmp.eq.s32.totalorder %s27, 0
      %p344 = por %p342, %p343
      %p345 = scmp.ne.s32.totalorder %s337, %s339
      %p346 = scmp.eq.s32.totalorder %s32, 1
      %p347 = por %p345, %p346
      %p348 = scmp.ne.s32.totalorder %s339, %s340
      %p349 = scmp.eq.s32.totalorder %s32, 0
      %p350 = por %p348, %p349
      %p351 = scmp.ne.s32.totalorder %s339, %s340
      %p352 = scmp.eq.s32.totalorder %s33, 1
      %p353 = por %p351, %p352
      %p355 = scmp.ne.s32.totalorder %s340, %s354
      %p356 = scmp.eq.s32.totalorder %s33, 0
      %p357 = por %p355, %p356
      %s359 = sadd.s32 %s358, 1
      %p362 = scmp.eq.s32.totalorder %s27, 1
      %p363 = scmp.ne.s32.totalorder %s358, %s360
      %p364 = scmp.eq.s32.totalorder %s27, 0
      %p365 = por %p363, %p364
      %p366 = scmp.ne.s32.totalorder %s358, %s360
      %p367 = scmp.eq.s32.totalorder %s32, 1
      %p368 = por %p366, %p367
      %p369 = scmp.ne.s32.totalorder %s360, %s361
      %p370 = scmp.eq.s32.totalorder %s32, 0
      %p371 = por %p369, %p370
      %p372 = scmp.ne.s32.totalorder %s360, %s361
      %p373 = scmp.eq.s32.totalorder %s33, 1
      %p374 = por %p372, %p373
      %p376 = scmp.ne.s32.totalorder %s361, %s375
      %p377 = scmp.eq.s32.totalorder %s33, 0
      %p378 = por %p376, %p377
      %s380 = sadd.s32 %s379, 1
      %p383 = scmp.eq.s32.totalorder %s27, 1
      %p384 = scmp.ne.s32.totalorder %s379, %s381
      %p385 = scmp.eq.s32.totalorder %s27, 0
      %p386 = por %p384, %p385
      %p387 = scmp.ne.s32.totalorder %s379, %s381
      %p388 = scmp.eq.s32.totalorder %s32, 1
      %p389 = por %p387, %p388
      %p390 = scmp.ne.s32.totalorder %s381, %s382
      %p391 = scmp.eq.s32.totalorder %s32, 0
      %p392 = por %p390, %p391
      %p393 = scmp.ne.s32.totalorder %s381, %s382
      %p394 = scmp.eq.s32.totalorder %s33, 1
      %p395 = por %p393, %p394
      %p397 = scmp.ne.s32.totalorder %s382, %s396
      %p398 = scmp.eq.s32.totalorder %s33, 0
      %p399 = por %p397, %p398
      %s400 = ssub.s32 %s34, %s46
      %s401 = ssub.s32 %s35, %s42
      %s402 = sor.u32 %s400, %s401
      %p403 = scmp.eq.s32.totalorder %s402, 0
      %s405 = sadd.s32 %s404, 1
      %s406 = scalar_select %p403, %s404, %s405
      %p409 = pneg %p403
      %p410 = scmp.eq.s32.totalorder %s27, 1
      %p411 = por %p409, %p410
      %p412 = scmp.ne.s32.totalorder %s404, %s407
      %p413 = scmp.eq.s32.totalorder %s27, 0
      %p414 = por %p412, %p413
      %p415 = scmp.ne.s32.totalorder %s404, %s407
      %p416 = scmp.eq.s32.totalorder %s32, 1
      %p417 = por %p415, %p416
      %p418 = scmp.ne.s32.totalorder %s407, %s408
      %p419 = scmp.eq.s32.totalorder %s32, 0
      %p420 = por %p418, %p419
      %p421 = scmp.ne.s32.totalorder %s407, %s408
      %p422 = scmp.eq.s32.totalorder %s33, 1
      %p423 = por %p421, %p422
      %p425 = scmp.ne.s32.totalorder %s408, %s424
      %p426 = scmp.eq.s32.totalorder %s33, 0
      %p427 = por %p425, %p426
      %p428 = scmp.le.s32.totalorder 1, %s27
      %p429 = scmp.lt.s32.totalorder %s27, 3
      %p430 = pnand %p428, %p429
      %p431 = pneg %p430
      // Predicated region
      $region9: #{tpu_custom_call.1} parent=5 // pred_check
        _
      $region10: #{tpu_custom_call.1} parent=5 // pred_check_branch
        %433 = sbr.rel (%p430) target = $region12
      $region11: #{tpu_custom_call.1} parent=5 // pred_region
        %s434 = ssub.s32 %s27, 1
        // Predicated region
        $region13: #{tpu_custom_call.1} parent=11 // pred_check
          %p435 = pneg %p119
        $region14: #{tpu_custom_call.1} parent=11 // pred_check_branch
          %437 = sbr.rel (%p435) target = $region16
        $region15: #{tpu_custom_call.1} parent=11 // pred_region
          %s439 = ssub.s32 128, 128
          %440 = vsyncadd [#allocation3], %s439
          %s441 = smul.addr %s37, 128
          %s442 = scalar_lea.hbm %s2, %s441
          %s444 = sshll.u32 [#allocation2], 4
          %s445 = int_to_ptr.vmem [resolvable:$true] %s444
          %447 = dma.hbm_to_vmem [thread:$0]  %s442, 128, %s445, [#allocation3]
        $region16: #{tpu_custom_call.1} parent=11 // pred_fallthru
          _
        // Predicated region
        $region17: #{tpu_custom_call.1} parent=11 // pred_check
          %p448 = pneg %p140
        $region18: #{tpu_custom_call.1} parent=11 // pred_check_branch
          %450 = sbr.rel (%p448) target = $region20
        $region19: #{tpu_custom_call.1} parent=11 // pred_region
          _
        $region20: #{tpu_custom_call.1} parent=11 // pred_fallthru
          _
        // Predicated region
        $region21: #{tpu_custom_call.1} parent=11 // pred_check
          %p451 = pneg %p161
        $region22: #{tpu_custom_call.1} parent=11 // pred_check_branch
          %453 = sbr.rel (%p451) target = $region24
        $region23: #{tpu_custom_call.1} parent=11 // pred_region
          _
        $region24: #{tpu_custom_call.1} parent=11 // pred_fallthru
          _
        // Predicated region
        $region25: #{tpu_custom_call.1} parent=11 // pred_check
          %p454 = pneg %p182
        $region26: #{tpu_custom_call.1} parent=11 // pred_check_branch
          %456 = sbr.rel (%p454) target = $region28
        $region27: #{tpu_custom_call.1} parent=11 // pred_region
          _
        $region28: #{tpu_custom_call.1} parent=11 // pred_fallthru
          _
        // Predicated region
        $region29: #{tpu_custom_call.1} parent=11 // pred_check
          %p457 = pneg %p203
        $region30: #{tpu_custom_call.1} parent=11 // pred_check_branch
          %459 = sbr.rel (%p457) target = $region32
        $region31: #{tpu_custom_call.1} parent=11 // pred_region
          %s461 = ssub.s32 256, 256
          %462 = vsyncadd [#allocation6], %s461
          %s463 = sshll.u32 [#allocation5], 4
          %s464 = int_to_ptr.vmem [resolvable:$true] %s463
          %469 = dma.hbm_to_vmem [thread:$0]  %s6, 256, %s464, [#allocation6], 64, 64, 4
        $region32: #{tpu_custom_call.1} parent=11 // pred_fallthru
          _
        // Predicated region
        $region33: #{tpu_custom_call.1} parent=11 // pred_check
          %p470 = pneg %p224
        $region34: #{tpu_custom_call.1} parent=11 // pred_check_branch
          %472 = sbr.rel (%p470) target = $region36
        $region35: #{tpu_custom_call.1} parent=11 // pred_region
          _
        $region36: #{tpu_custom_call.1} parent=11 // pred_fallthru
          _
        // Predicated region
        $region37: #{tpu_custom_call.1} parent=11 // pred_check
          %p473 = pneg %p245
        $region38: #{tpu_custom_call.1} parent=11 // pred_check_branch
          %475 = sbr.rel (%p473) target = $region40
        $region39: #{tpu_custom_call.1} parent=11 // pred_region
          _
        $region40: #{tpu_custom_call.1} parent=11 // pred_fallthru
          _
        // Predicated region
        $region41: #{tpu_custom_call.1} parent=11 // pred_check
          %p476 = pneg %p266
        $region42: #{tpu_custom_call.1} parent=11 // pred_check_branch
          %478 = sbr.rel (%p476) target = $region44
        $region43: #{tpu_custom_call.1} parent=11 // pred_region
          %s480 = ssub.s32 16, 16
          %481 = vsyncadd [#allocation6], %s480
          %s483 = sshll.u32 [#allocation7], 4
          %s484 = int_to_ptr.vmem [resolvable:$true] %s483
          %486 = dma.hbm_to_vmem [thread:$0]  %s9, 16, %s484, [#allocation6]
        $region44: #{tpu_custom_call.1} parent=11 // pred_fallthru
          _
        // Predicated region
        $region45: #{tpu_custom_call.1} parent=11 // pred_check
          %p487 = pneg %p287
        $region46: #{tpu_custom_call.1} parent=11 // pred_check_branch
          %489 = sbr.rel (%p487) target = $region48
        $region47: #{tpu_custom_call.1} parent=11 // pred_region
          _
        $region48: #{tpu_custom_call.1} parent=11 // pred_fallthru
          _
        // Predicated region
        $region49: #{tpu_custom_call.1} parent=11 // pred_check
          %p490 = pneg %p308
        $region50: #{tpu_custom_call.1} parent=11 // pred_check_branch
          %492 = sbr.rel (%p490) target = $region52
        $region51: #{tpu_custom_call.1} parent=11 // pred_region
          _
        $region52: #{tpu_custom_call.1} parent=11 // pred_fallthru
          _
        // Predicated region
        $region53: #{tpu_custom_call.1} parent=11 // pred_check
          %p493 = pneg %p329
        $region54: #{tpu_custom_call.1} parent=11 // pred_check_branch
          %495 = sbr.rel (%p493) target = $region56
        $region55: #{tpu_custom_call.1} parent=11 // pred_region
          _
        $region56: #{tpu_custom_call.1} parent=11 // pred_fallthru
          _
        // Predicated region
        $region57: #{tpu_custom_call.1} parent=11 // pred_check
          %p496 = pneg %p350
        $region58: #{tpu_custom_call.1} parent=11 // pred_check_branch
          %498 = sbr.rel (%p496) target = $region60
        $region59: #{tpu_custom_call.1} parent=11 // pred_region
          _
        $region60: #{tpu_custom_call.1} parent=11 // pred_fallthru
          _
        // Predicated region
        $region61: #{tpu_custom_call.1} parent=11 // pred_check
          %p499 = pneg %p371
        $region62: #{tpu_custom_call.1} parent=11 // pred_check_branch
          %501 = sbr.rel (%p499) target = $region64
        $region63: #{tpu_custom_call.1} parent=11 // pred_region
          _
        $region64: #{tpu_custom_call.1} parent=11 // pred_fallthru
          _
        // Predicated region
        $region65: #{tpu_custom_call.1} parent=11 // pred_check
          %p502 = pneg %p392
        $region66: #{tpu_custom_call.1} parent=11 // pred_check_branch
          %504 = sbr.rel (%p502) target = $region68
        $region67: #{tpu_custom_call.1} parent=11 // pred_region
          _
        $region68: #{tpu_custom_call.1} parent=11 // pred_fallthru
          _
      $region12: #{tpu_custom_call.1} parent=5 // pred_fallthru
        _
      %p505 = scmp.lt.s32.totalorder %s27, 2
      // Predicated region
      $region69: #{tpu_custom_call.1} parent=5 // pred_check
        %p506 = pneg %p505
      $region70: #{tpu_custom_call.1} parent=5 // pred_check_branch
        %508 = sbr.rel (%p506) target = $region72
      $region71: #{tpu_custom_call.1} parent=5 // pred_region
        // Predicated region
        $region73: #{tpu_custom_call.1} parent=71 // pred_check
          %p509 = pneg %p61
        $region74: #{tpu_custom_call.1} parent=71 // pred_check_branch
          %511 = sbr.rel (%p509) target = $region76
        $region75: #{tpu_custom_call.1} parent=71 // pred_region
          %p512 = scmp.lt.s32.totalorder %s34, 1
          %s513 = scalar_select %p512, %s34, 1
          %p514 = scmp.lt.s32.totalorder %s35, 0
          %s515 = scalar_select %p514, %s35, 0
          %s516 = sadd.s32 %s515, %s513
          %s517 = smul.addr %s516, 8
          %s518 = scalar_lea.vmem %s0, %s517
        $region76: #{tpu_custom_call.1} parent=71 // pred_fallthru
          _
        // Predicated region
        $region77: #{tpu_custom_call.1} parent=71 // pred_check
          %p519 = pneg %p87
        $region78: #{tpu_custom_call.1} parent=71 // pred_check_branch
          %521 = sbr.rel (%p519) target = $region80
        $region79: #{tpu_custom_call.1} parent=71 // pred_region
          %p522 = scmp.lt.s32.totalorder %s34, 1
          %s523 = scalar_select %p522, %s34, 1
          %s524 = smul.addr %s523, 8
          %s525 = scalar_lea.vmem %s1, %s524
        $region80: #{tpu_custom_call.1} parent=71 // pred_fallthru
          _
      $region72: #{tpu_custom_call.1} parent=5 // pred_fallthru
        _
      %p526 = scmp.le.s32.totalorder 1, %s27
      %p527 = scmp.lt.s32.totalorder %s27, 3
      %p528 = pnand %p526, %p527
      %p529 = pneg %p528
      // Predicated region
      $region81: #{tpu_custom_call.1} parent=5 // pred_check
        _
      $region82: #{tpu_custom_call.1} parent=5 // pred_check_branch
        %531 = sbr.rel (%p528) target = $region84
      $region83: #{tpu_custom_call.1} parent=5 // pred_region
        %s532 = ssub.s32 %s27, 1
        // Predicated region
        $region85: #{tpu_custom_call.1} parent=83 // pred_check
          %p533 = pneg %p119
        $region86: #{tpu_custom_call.1} parent=83 // pred_check_branch
          %535 = sbr.rel (%p533) target = $region88
        $region87: #{tpu_custom_call.1} parent=83 // pred_region
          %536 = dma.done [#allocation3], 128
        $region88: #{tpu_custom_call.1} parent=83 // pred_fallthru
          _
        // Predicated region
        $region89: #{tpu_custom_call.1} parent=83 // pred_check
          %p537 = pneg %p203
        $region90: #{tpu_custom_call.1} parent=83 // pred_check_branch
          %539 = sbr.rel (%p537) target = $region92
        $region91: #{tpu_custom_call.1} parent=83 // pred_region
          %540 = dma.done [#allocation6], 256
        $region92: #{tpu_custom_call.1} parent=83 // pred_fallthru
          _
        // Predicated region
        $region93: #{tpu_custom_call.1} parent=83 // pred_check
          %p541 = pneg %p266
        $region94: #{tpu_custom_call.1} parent=83 // pred_check_branch
          %543 = sbr.rel (%p541) target = $region96
        $region95: #{tpu_custom_call.1} parent=83 // pred_region
          %544 = dma.done [#allocation6], 16
        $region96: #{tpu_custom_call.1} parent=83 // pred_fallthru
          _
        %p545 = scmp.lt.s32.totalorder %s36, 1
        %s546 = scalar_select %p545, %s36, 1
        %p547 = scmp.lt.s32.totalorder %s37, 0
        %s548 = scalar_select %p547, %s37, 0
        %s549 = sadd.s32 %s548, %s546
        %s550 = smul.addr %s549, 8
        %s551 = scalar_lea.vmem %s0, %s550
        %p552 = pneg %p67
        %p553 = pneg %p64
        %p554 = scmp.lt.s32.totalorder %s36, 1
        %s555 = scalar_select %p554, %s36, 1
        %s556 = smul.addr %s555, 8
        %s557 = scalar_lea.vmem %s1, %s556
        %p558 = pneg %p93
        %p559 = pneg %p90
        %p560 = pneg %p119
        %p561 = pneg %p116
        %p562 = pneg %p140
        %p563 = pneg %p137
        %p564 = pneg %p161
        %p565 = pneg %p158
        %p566 = pneg %p182
        %p567 = pneg %p179
        %p568 = pneg %p203
        %p569 = pneg %p200
        %p570 = pneg %p224
        %p571 = pneg %p221
        %p572 = pneg %p245
        %p573 = pneg %p242
        %p574 = pneg %p266
        %p575 = pneg %p263
        %p576 = pneg %p287
        %p577 = pneg %p284
        %p578 = pneg %p308
        %p579 = pneg %p305
        %p580 = pneg %p329
        %p581 = pneg %p326
        %p582 = pneg %p350
        %p583 = pneg %p347
        %p584 = pneg %p371
        %p585 = pneg %p368
        %p586 = pneg %p392
        %p587 = pneg %p389
        %p588 = pneg %p420
        %p589 = pneg %p417
        %s590 = sand.u32 %s407, 1
        %s591 = scalar_lea.sflag [#allocation4], %s590
        %s592 = sand.u32 %s407, 1
        %s593 = smul.addr %s592, 8
        %s594 = scalar_lea.vmem [#allocation8], %s593
        %p595 = scmp.lt.s32.totalorder %s36, 1
        %s596 = scalar_select %p595, %s36, 1
        %p597 = scmp.lt.s32.totalorder %s37, 0
        %s598 = scalar_select %p597, %s37, 0
        %s599 = sadd.s32 %s598, %s596
        %s600 = smul.addr %s599, 8
        %s601 = scalar_lea.vmem %s0, %s600
        %p602 = scmp.lt.s32.totalorder %s36, 1
        %s603 = scalar_select %p602, %s36, 1
        %s604 = smul.addr %s603, 8
        %s605 = scalar_lea.vmem %s1, %s604
        %v607 = vld [vmem:[%s601] sm:$0xff]
        %v608 = vld [vmem:[%s605] sm:$0xff]
        %v609 = vld [vmem:[#allocation2] sm:$0xff]
        %vm610 = vcmp.eq.f32.partialorder %v609, 0.0
        %v611 = vsel %vm610, -1e+30, 0.0
        %v612 = vpack.c.bf16 %v607, %v607
        %v613 = vpack.c.bf16 %v608, %v608
        %v614 = vld [vmem:[%s3] sm:$0xf]
        %v615 = vld [vmem:[%s3 + $0x4] sm:$0xf]
        %v616 = vld [vmem:[%s3 + $0x8] sm:$0xf]
        %v617 = vld [vmem:[%s3 + $0xc] sm:$0xf]
        %v622 = vunpack.c.l.b16 %v614
        %v623 = vunpack.c.l.b16 %v615
        %v624 = vunpack.c.l.b16 %v616
        %v625 = vunpack.c.l.b16 %v617
        %v626 = vpack.c.b16 %v623, %v622
        %v627 = vpack.c.b16 %v625, %v624
        %vm630 = vcmask 261120
        %v632 = vsel %vm630, %v612, 0
        %634 = vmatprep.subr.bf16.mxu0 0
        %635 = vmatpush1.bf16.msra.mxu0 %v626
        %636 = vmatprep.subr.bf16.mxu0 0
        %637 = vmatpush1.bf16.msra.mxu0 %v627
        %638 = vmatprep.subr.bf16.mxu0 0
        %639 = vmatpush1.bf16.msra.mxu0 0
        %640 = vmatprep.subr.bf16.mxu0 0
        %641 = vmatpush1.bf16.msra.mxu0 0
        %642 = vmatprep.subr.bf16.mxu0 0
        %643 = vmatpush1.bf16.msra.mxu0 0
        %644 = vmatprep.subr.bf16.mxu0 0
        %645 = vmatpush1.bf16.msra.mxu0 0
        %646 = vmatprep.subr.bf16.mxu0 0
        %647 = vmatpush1.bf16.msra.mxu0 0
        %648 = vmatprep.subr.bf16.mxu0 0
        %649 = vmatpush1.bf16.msra.mxu0 0
        %650 = vmatprep.subr.bf16.mxu0 0
        %651 = vmatpush1.bf16.msra.mxu0 0
        %652 = vmatprep.subr.bf16.mxu0 0
        %653 = vmatpush1.bf16.msra.mxu0 0
        %654 = vmatprep.subr.bf16.mxu0 0
        %655 = vmatpush1.bf16.msra.mxu0 0
        %656 = vmatprep.subr.bf16.mxu0 0
        %657 = vmatpush1.bf16.msra.mxu0 0
        %658 = vmatprep.subr.bf16.mxu0 0
        %659 = vmatpush1.bf16.msra.mxu0 0
        %660 = vmatprep.subr.bf16.mxu0 0
        %661 = vmatpush1.bf16.msra.mxu0 0
        %662 = vmatprep.subr.bf16.mxu0 0
        %663 = vmatpush1.bf16.msra.mxu0 0
        %664 = vmatprep.subr.bf16.mxu0 0
        %665 = vmatpush1.bf16.msra.mxu0 0
        %666 = vmatprep.mubr.bf16.mxu0 0
        %667 = vmatmul.mubr.bf16.gmra.mrb[0].mxu0 %v632
        %v668 = vpop.f32.mrb[0].mxu0
        %v669 = vadd.f32 0.0, %v668
        %v670 = vpop.f32.mrb[0].mxu0
        %v671 = vpop.f32.mrb[0].mxu0
        %v672 = vpop.f32.mrb[0].mxu0
        %673 = vdwg.mxu0
        %v674 = vmul.f32 %v669, 0.35355338
        %v675 = vpack.c.bf16 %v674, %v674
        %v676 = vld [vmem:[%s4] sm:$0xf]
        %v677 = vld [vmem:[%s4 + $0x4] sm:$0xf]
        %v678 = vld [vmem:[%s4 + $0x8] sm:$0xf]
        %v679 = vld [vmem:[%s4 + $0xc] sm:$0xf]
        %v684 = vunpack.c.l.b16 %v676
        %v685 = vunpack.c.l.b16 %v677
        %v686 = vunpack.c.l.b16 %v678
        %v687 = vunpack.c.l.b16 %v679
        %v688 = vpack.c.b16 %v685, %v684
        %v689 = vpack.c.b16 %v687, %v686
        %v693 = vsel %vm630, %v613, 0
        %695 = vmatprep.subr.bf16.mxu0 0
        %696 = vmatpush1.bf16.msra.mxu0 %v688
        %697 = vmatprep.subr.bf16.mxu0 0
        %698 = vmatpush1.bf16.msra.mxu0 %v689
        %699 = vmatprep.subr.bf16.mxu0 0
        %700 = vmatpush1.bf16.msra.mxu0 0
        %701 = vmatprep.subr.bf16.mxu0 0
        %702 = vmatpush1.bf16.msra.mxu0 0
        %703 = vmatprep.subr.bf16.mxu0 0
        %704 = vmatpush1.bf16.msra.mxu0 0
        %705 = vmatprep.subr.bf16.mxu0 0
        %706 = vmatpush1.bf16.msra.mxu0 0
        %707 = vmatprep.subr.bf16.mxu0 0
        %708 = vmatpush1.bf16.msra.mxu0 0
        %709 = vmatprep.subr.bf16.mxu0 0
        %710 = vmatpush1.bf16.msra.mxu0 0
        %711 = vmatprep.subr.bf16.mxu0 0
        %712 = vmatpush1.bf16.msra.mxu0 0
        %713 = vmatprep.subr.bf16.mxu0 0
        %714 = vmatpush1.bf16.msra.mxu0 0
        %715 = vmatprep.subr.bf16.mxu0 0
        %716 = vmatpush1.bf16.msra.mxu0 0
        %717 = vmatprep.subr.bf16.mxu0 0
        %718 = vmatpush1.bf16.msra.mxu0 0
        %719 = vmatprep.subr.bf16.mxu0 0
        %720 = vmatpush1.bf16.msra.mxu0 0
        %721 = vmatprep.subr.bf16.mxu0 0
        %722 = vmatpush1.bf16.msra.mxu0 0
        %723 = vmatprep.subr.bf16.mxu0 0
        %724 = vmatpush1.bf16.msra.mxu0 0
        %725 = vmatprep.subr.bf16.mxu0 0
        %726 = vmatpush1.bf16.msra.mxu0 0
        %727 = vmatprep.mubr.bf16.mxu0 0
        %728 = vmatmul.mubr.bf16.gmra.mrb[0].mxu0 %v693
        %v729 = vpop.f32.mrb[0].mxu0
        %v730 = vadd.f32 0.0, %v729
        %v731 = vpop.f32.mrb[0].mxu0
        %v732 = vpop.f32.mrb[0].mxu0
        %v733 = vpop.f32.mrb[0].mxu0
        %734 = vdwg.mxu0
        %v735 = vpack.c.bf16 %v730, %v730
        %v736 = vld [vmem:[%s5] sm:$0xf]
        %v737 = vld [vmem:[%s5 + $0x4] sm:$0xf]
        %v738 = vld [vmem:[%s5 + $0x8] sm:$0xf]
        %v739 = vld [vmem:[%s5 + $0xc] sm:$0xf]
        %v744 = vunpack.c.l.b16 %v736
        %v745 = vunpack.c.l.b16 %v737
        %v746 = vunpack.c.l.b16 %v738
        %v747 = vunpack.c.l.b16 %v739
        %v748 = vpack.c.b16 %v745, %v744
        %v749 = vpack.c.b16 %v747, %v746
        %752 = vmatprep.subr.bf16.mxu0 0
        %753 = vmatpush1.bf16.msra.mxu0 %v748
        %754 = vmatprep.subr.bf16.mxu0 0
        %755 = vmatpush1.bf16.msra.mxu0 %v749
        %756 = vmatprep.subr.bf16.mxu0 0
        %757 = vmatpush1.bf16.msra.mxu0 0
        %758 = vmatprep.subr.bf16.mxu0 0
        %759 = vmatpush1.bf16.msra.mxu0 0
        %760 = vmatprep.subr.bf16.mxu0 0
        %761 = vmatpush1.bf16.msra.mxu0 0
        %762 = vmatprep.subr.bf16.mxu0 0
        %763 = vmatpush1.bf16.msra.mxu0 0
        %764 = vmatprep.subr.bf16.mxu0 0
        %765 = vmatpush1.bf16.msra.mxu0 0
        %766 = vmatprep.subr.bf16.mxu0 0
        %767 = vmatpush1.bf16.msra.mxu0 0
        %768 = vmatprep.subr.bf16.mxu0 0
        %769 = vmatpush1.bf16.msra.mxu0 0
        %770 = vmatprep.subr.bf16.mxu0 0
        %771 = vmatpush1.bf16.msra.mxu0 0
        %772 = vmatprep.subr.bf16.mxu0 0
        %773 = vmatpush1.bf16.msra.mxu0 0
        %774 = vmatprep.subr.bf16.mxu0 0
        %775 = vmatpush1.bf16.msra.mxu0 0
        %776 = vmatprep.subr.bf16.mxu0 0
        %777 = vmatpush1.bf16.msra.mxu0 0
        %778 = vmatprep.subr.bf16.mxu0 0
        %779 = vmatpush1.bf16.msra.mxu0 0
        %780 = vmatprep.subr.bf16.mxu0 0
        %781 = vmatpush1.bf16.msra.mxu0 0
        %782 = vmatprep.subr.bf16.mxu0 0
        %783 = vmatpush1.bf16.msra.mxu0 0
        %784 = vmatprep.mubr.bf16.mxu0 0
        %785 = vmatmul.mubr.bf16.gmra.mrb[0].mxu0 %v693
        %v786 = vpop.f32.mrb[0].mxu0
        %v787 = vadd.f32 0.0, %v786
        %v788 = vpop.f32.mrb[0].mxu0
        %v789 = vpop.f32.mrb[0].mxu0
        %v790 = vpop.f32.mrb[0].mxu0
        %791 = vdwg.mxu0
        %v792 = vpack.c.bf16 %v787, %v787
        %vm793 = vcmask 64512
        %v795 = vsel %vm793, %v675, 0
        %v798 = vsel %vm793, %v735, 0
        %800 = vmatprep.subr.bf16.mxu0 0
        %801 = vmatpush1.bf16.xpose.msra.mxu0 %v798
        %802 = vmatprep.subr.bf16.mxu0 0
        %803 = vmatpush1.bf16.xpose.msra.mxu0 0
        %804 = vmatprep.subr.bf16.mxu0 0
        %805 = vmatpush1.bf16.xpose.msra.mxu0 0
        %806 = vmatprep.subr.bf16.mxu0 0
        %807 = vmatpush1.bf16.xpose.msra.mxu0 0
        %808 = vmatprep.subr.bf16.mxu0 0
        %809 = vmatpush1.bf16.xpose.msra.mxu0 0
        %810 = vmatprep.subr.bf16.mxu0 0
        %811 = vmatpush1.bf16.xpose.msra.mxu0 0
        %812 = vmatprep.subr.bf16.mxu0 0
        %813 = vmatpush1.bf16.xpose.msra.mxu0 0
        %814 = vmatprep.subr.bf16.mxu0 0
        %815 = vmatpush1.bf16.xpose.msra.mxu0 0
        %816 = vmatprep.subr.bf16.mxu0 0
        %817 = vmatpush1.bf16.xpose.msra.mxu0 0
        %818 = vmatprep.subr.bf16.mxu0 0
        %819 = vmatpush1.bf16.xpose.msra.mxu0 0
        %820 = vmatprep.subr.bf16.mxu0 0
        %821 = vmatpush1.bf16.xpose.msra.mxu0 0
        %822 = vmatprep.subr.bf16.mxu0 0
        %823 = vmatpush1.bf16.xpose.msra.mxu0 0
        %824 = vmatprep.subr.bf16.mxu0 0
        %825 = vmatpush1.bf16.xpose.msra.mxu0 0
        %826 = vmatprep.subr.bf16.mxu0 0
        %827 = vmatpush1.bf16.xpose.msra.mxu0 0
        %828 = vmatprep.subr.bf16.mxu0 0
        %829 = vmatpush1.bf16.xpose.msra.mxu0 0
        %830 = vmatprep.subr.bf16.mxu0 0
        %831 = vmatpush1.bf16.xpose.msra.mxu0 0
        %832 = vmatprep.mubr.bf16.mxu0 0
        %833 = vmatmul.mubr.bf16.gmra.mrb[0].mxu0 %v795
        %v834 = vpop.f32.mrb[0].mxu0
        %v835 = vadd.f32 %v611, %v834
        %v836 = vpop.f32.mrb[0].mxu0
        %v837 = vpop.f32.mrb[0].mxu0
        %v838 = vpop.f32.mrb[0].mxu0
        %839 = vdwg.mxu0
        %v840 = vsel %vm793, %v835, -inf
        %841 = vmax.xlane.f32.xlu0 %v840
        %v842 = vpop.xlane.xlu0 %841
        %v843 = vsub.f32 %v835, %v842
        %v844 = vmul.f32 %v843, 1.442695
        %v845 = vpow.pop %v844
        %v846 = vsel %vm793, %v845, 0.0
        %847 = vadd.xlane.f32.xlu0 %v846
        %v848 = vpop.xlane.xlu0 %847
        %v849 = vpack.c.bf16 %v845, %v845
        %v851 = vsel %vm793, %v849, 0
        %vm853 = vcmask 1043456
        %v855 = vsel %vm853, %v792, 0
        %857 = vmatprep.subr.bf16.mxu0 0
        %858 = vmatpush1.bf16.msra.mxu0 %v855
        %859 = vmatprep.subr.bf16.mxu0 0
        %860 = vmatpush1.bf16.msra.mxu0 0
        %861 = vmatprep.subr.bf16.mxu0 0
        %862 = vmatpush1.bf16.msra.mxu0 0
        %863 = vmatprep.subr.bf16.mxu0 0
        %864 = vmatpush1.bf16.msra.mxu0 0
        %865 = vmatprep.subr.bf16.mxu0 0
        %866 = vmatpush1.bf16.msra.mxu0 0
        %867 = vmatprep.subr.bf16.mxu0 0
        %868 = vmatpush1.bf16.msra.mxu0 0
        %869 = vmatprep.subr.bf16.mxu0 0
        %870 = vmatpush1.bf16.msra.mxu0 0
        %871 = vmatprep.subr.bf16.mxu0 0
        %872 = vmatpush1.bf16.msra.mxu0 0
        %873 = vmatprep.subr.bf16.mxu0 0
        %874 = vmatpush1.bf16.msra.mxu0 0
        %875 = vmatprep.subr.bf16.mxu0 0
        %876 = vmatpush1.bf16.msra.mxu0 0
        %877 = vmatprep.subr.bf16.mxu0 0
        %878 = vmatpush1.bf16.msra.mxu0 0
        %879 = vmatprep.subr.bf16.mxu0 0
        %880 = vmatpush1.bf16.msra.mxu0 0
        %881 = vmatprep.subr.bf16.mxu0 0
        %882 = vmatpush1.bf16.msra.mxu0 0
        %883 = vmatprep.subr.bf16.mxu0 0
        %884 = vmatpush1.bf16.msra.mxu0 0
        %885 = vmatprep.subr.bf16.mxu0 0
        %886 = vmatpush1.bf16.msra.mxu0 0
        %887 = vmatprep.subr.bf16.mxu0 0
        %888 = vmatpush1.bf16.msra.mxu0 0
        %889 = vmatprep.mubr.bf16.mxu0 0
        %890 = vmatmul.mubr.bf16.gmra.mrb[0].mxu0 %v851
        %v891 = vpop.f32.mrb[0].mxu0
        %v892 = vadd.f32 0.0, %v891
        %v893 = vpop.f32.mrb[0].mxu0
        %v894 = vpop.f32.mrb[0].mxu0
        %v895 = vpop.f32.mrb[0].mxu0
        %896 = vdwg.mxu0
        %v897 = vrcp.pop %v848
        %v898 = vmul.f32 %v892, %v897
        %900 = vrot.lane.b32.xlu0 %v675, 120
        %v901 = vpop.permute.xlu0 %900
        %903 = vrot.lane.b32.xlu0 %v735, 120
        %v904 = vpop.permute.xlu0 %903
        %v906 = vsel %vm793, %v901, 0
        %v909 = vsel %vm793, %v904, 0
        %911 = vmatprep.subr.bf16.mxu0 0
        %912 = vmatpush1.bf16.xpose.msra.mxu0 %v909
        %913 = vmatprep.subr.bf16.mxu0 0
        %914 = vmatpush1.bf16.xpose.msra.mxu0 0
        %915 = vmatprep.subr.bf16.mxu0 0
        %916 = vmatpush1.bf16.xpose.msra.mxu0 0
        %917 = vmatprep.subr.bf16.mxu0 0
        %918 = vmatpush1.bf16.xpose.msra.mxu0 0
        %919 = vmatprep.subr.bf16.mxu0 0
        %920 = vmatpush1.bf16.xpose.msra.mxu0 0
        %921 = vmatprep.subr.bf16.mxu0 0
        %922 = vmatpush1.bf16.xpose.msra.mxu0 0
        %923 = vmatprep.subr.bf16.mxu0 0
        %924 = vmatpush1.bf16.xpose.msra.mxu0 0
        %925 = vmatprep.subr.bf16.mxu0 0
        %926 = vmatpush1.bf16.xpose.msra.mxu0 0
        %927 = vmatprep.subr.bf16.mxu0 0
        %928 = vmatpush1.bf16.xpose.msra.mxu0 0
        %929 = vmatprep.subr.bf16.mxu0 0
        %930 = vmatpush1.bf16.xpose.msra.mxu0 0
        %931 = vmatprep.subr.bf16.mxu0 0
        %932 = vmatpush1.bf16.xpose.msra.mxu0 0
        %933 = vmatprep.subr.bf16.mxu0 0
        %934 = vmatpush1.bf16.xpose.msra.mxu0 0
        %935 = vmatprep.subr.bf16.mxu0 0
        %936 = vmatpush1.bf16.xpose.msra.mxu0 0
        %937 = vmatprep.subr.bf16.mxu0 0
        %938 = vmatpush1.bf16.xpose.msra.mxu0 0
        %939 = vmatprep.subr.bf16.mxu0 0
        %940 = vmatpush1.bf16.xpose.msra.mxu0 0
        %941 = vmatprep.subr.bf16.mxu0 0
        %942 = vmatpush1.bf16.xpose.msra.mxu0 0
        %943 = vmatprep.mubr.bf16.mxu0 0
        %944 = vmatmul.mubr.bf16.gmra.mrb[0].mxu0 %v906
        %v945 = vpop.f32.mrb[0].mxu0
        %v946 = vadd.f32 %v611, %v945
        %v947 = vpop.f32.mrb[0].mxu0
        %v948 = vpop.f32.mrb[0].mxu0
        %v949 = vpop.f32.mrb[0].mxu0
        %950 = vdwg.mxu0
        %v951 = vsel %vm793, %v946, -inf
        %952 = vmax.xlane.f32.xlu0 %v951
        %v953 = vpop.xlane.xlu0 %952
        %v954 = vsub.f32 %v946, %v953
        %v955 = vmul.f32 %v954, 1.442695
        %v956 = vpow.pop %v955
        %v957 = vsel %vm793, %v956, 0.0
        %958 = vadd.xlane.f32.xlu0 %v957
        %v959 = vpop.xlane.xlu0 %958
        %v960 = vpack.c.bf16 %v956, %v956
        %962 = vrot.lane.b32.xlu0 %v792, 120
        %v963 = vpop.permute.xlu0 %962
        %v965 = vsel %vm793, %v960, 0
        %v968 = vsel %vm853, %v963, 0
        %970 = vmatprep.subr.bf16.mxu0 0
        %971 = vmatpush1.bf16.msra.mxu0 %v968
        %972 = vmatprep.subr.bf16.mxu0 0
        %973 = vmatpush1.bf16.msra.mxu0 0
        %974 = vmatprep.subr.bf16.mxu0 0
        %975 = vmatpush1.bf16.msra.mxu0 0
        %976 = vmatprep.subr.bf16.mxu0 0
        %977 = vmatpush1.bf16.msra.mxu0 0
        %978 = vmatprep.subr.bf16.mxu0 0
        %979 = vmatpush1.bf16.msra.mxu0 0
        %980 = vmatprep.subr.bf16.mxu0 0
        %981 = vmatpush1.bf16.msra.mxu0 0
        %982 = vmatprep.subr.bf16.mxu0 0
        %983 = vmatpush1.bf16.msra.mxu0 0
        %984 = vmatprep.subr.bf16.mxu0 0
        %985 = vmatpush1.bf16.msra.mxu0 0
        %986 = vmatprep.subr.bf16.mxu0 0
        %987 = vmatpush1.bf16.msra.mxu0 0
        %988 = vmatprep.subr.bf16.mxu0 0
        %989 = vmatpush1.bf16.msra.mxu0 0
        %990 = vmatprep.subr.bf16.mxu0 0
        %991 = vmatpush1.bf16.msra.mxu0 0
        %992 = vmatprep.subr.bf16.mxu0 0
        %993 = vmatpush1.bf16.msra.mxu0 0
        %994 = vmatprep.subr.bf16.mxu0 0
        %995 = vmatpush1.bf16.msra.mxu0 0
        %996 = vmatprep.subr.bf16.mxu0 0
        %997 = vmatpush1.bf16.msra.mxu0 0
        %998 = vmatprep.subr.bf16.mxu0 0
        %999 = vmatpush1.bf16.msra.mxu0 0
        %1000 = vmatprep.subr.bf16.mxu0 0
        %1001 = vmatpush1.bf16.msra.mxu0 0
        %1002 = vmatprep.mubr.bf16.mxu0 0
        %1003 = vmatmul.mubr.bf16.gmra.mrb[0].mxu0 %v965
        %v1004 = vpop.f32.mrb[0].mxu0
        %v1005 = vadd.f32 0.0, %v1004
        %v1006 = vpop.f32.mrb[0].mxu0
        %v1007 = vpop.f32.mrb[0].mxu0
        %v1008 = vpop.f32.mrb[0].mxu0
        %1009 = vdwg.mxu0
        %v1010 = vrcp.pop %v959
        %v1011 = vmul.f32 %v1005, %v1010
        %1012 = vrot.lane.b32.xlu0 %v675, 112
        %v1013 = vpop.permute.xlu0 %1012
        %1014 = vrot.lane.b32.xlu0 %v735, 112
        %v1015 = vpop.permute.xlu0 %1014
        %v1017 = vsel %vm793, %v1013, 0
        %v1020 = vsel %vm793, %v1015, 0
        %1022 = vmatprep.subr.bf16.mxu0 0
        %1023 = vmatpush1.bf16.xpose.msra.mxu0 %v1020
        %1024 = vmatprep.subr.bf16.mxu0 0
        %1025 = vmatpush1.bf16.xpose.msra.mxu0 0
        %1026 = vmatprep.subr.bf16.mxu0 0
        %1027 = vmatpush1.bf16.xpose.msra.mxu0 0
        %1028 = vmatprep.subr.bf16.mxu0 0
        %1029 = vmatpush1.bf16.xpose.msra.mxu0 0
        %1030 = vmatprep.subr.bf16.mxu0 0
        %1031 = vmatpush1.bf16.xpose.msra.mxu0 0
        %1032 = vmatprep.subr.bf16.mxu0 0
        %1033 = vmatpush1.bf16.xpose.msra.mxu0 0
        %1034 = vmatprep.subr.bf16.mxu0 0
        %1035 = vmatpush1.bf16.xpose.msra.mxu0 0
        %1036 = vmatprep.subr.bf16.mxu0 0
        %1037 = vmatpush1.bf16.xpose.msra.mxu0 0
        %1038 = vmatprep.subr.bf16.mxu0 0
        %1039 = vmatpush1.bf16.xpose.msra.mxu0 0
        %1040 = vmatprep.subr.bf16.mxu0 0
        %1041 = vmatpush1.bf16.xpose.msra.mxu0 0
        %1042 = vmatprep.subr.bf16.mxu0 0
        %1043 = vmatpush1.bf16.xpose.msra.mxu0 0
        %1044 = vmatprep.subr.bf16.mxu0 0
        %1045 = vmatpush1.bf16.xpose.msra.mxu0 0
        %1046 = vmatprep.subr.bf16.mxu0 0
        %1047 = vmatpush1.bf16.xpose.msra.mxu0 0
        %1048 = vmatprep.subr.bf16.mxu0 0
        %1049 = vmatpush1.bf16.xpose.msra.mxu0 0
        %1050 = vmatprep.subr.bf16.mxu0 0
        %1051 = vmatpush1.bf16.xpose.msra.mxu0 0
        %1052 = vmatprep.subr.bf16.mxu0 0
        %1053 = vmatpush1.bf16.xpose.msra.mxu0 0
        %1054 = vmatprep.mubr.bf16.mxu0 0
        %1055 = vmatmul.mubr.bf16.gmra.mrb[0].mxu0 %v1017
        %v1056 = vpop.f32.mrb[0].mxu0
        %v1057 = vadd.f32 %v611, %v1056
        %v1058 = vpop.f32.mrb[0].mxu0
        %v1059 = vpop.f32.mrb[0].mxu0
        %v1060 = vpop.f32.mrb[0].mxu0
        %1061 = vdwg.mxu0
        %v1062 = vsel %vm793, %v1057, -inf
        %1063 = vmax.xlane.f32.xlu0 %v1062
        %v1064 = vpop.xlane.xlu0 %1063
        %v1065 = vsub.f32 %v1057, %v1064
        %v1066 = vmul.f32 %v1065, 1.442695
        %v1067 = vpow.pop %v1066
        %v1068 = vsel %vm793, %v1067, 0.0
        %1069 = vadd.xlane.f32.xlu0 %v1068
        %v1070 = vpop.xlane.xlu0 %1069
        %v1071 = vpack.c.bf16 %v1067, %v1067
        %1072 = vrot.lane.b32.xlu0 %v792, 112
        %v1073 = vpop.permute.xlu0 %1072
        %v1075 = vsel %vm793, %v1071, 0
        %v1078 = vsel %vm853, %v1073, 0
        %1080 = vmatprep.subr.bf16.mxu0 0
        %1081 = vmatpush1.bf16.msra.mxu0 %v1078
        %1082 = vmatprep.subr.bf16.mxu0 0
        %1083 = vmatpush1.bf16.msra.mxu0 0
        %1084 = vmatprep.subr.bf16.mxu0 0
        %1085 = vmatpush1.bf16.msra.mxu0 0
        %1086 = vmatprep.subr.bf16.mxu0 0
        %1087 = vmatpush1.bf16.msra.mxu0 0
        %1088 = vmatprep.subr.bf16.mxu0 0
        %1089 = vmatpush1.bf16.msra.mxu0 0
        %1090 = vmatprep.subr.bf16.mxu0 0
        %1091 = vmatpush1.bf16.msra.mxu0 0
        %1092 = vmatprep.subr.bf16.mxu0 0
        %1093 = vmatpush1.bf16.msra.mxu0 0
        %1094 = vmatprep.subr.bf16.mxu0 0
        %1095 = vmatpush1.bf16.msra.mxu0 0
        %1096 = vmatprep.subr.bf16.mxu0 0
        %1097 = vmatpush1.bf16.msra.mxu0 0
        %1098 = vmatprep.subr.bf16.mxu0 0
        %1099 = vmatpush1.bf16.msra.mxu0 0
        %1100 = vmatprep.subr.bf16.mxu0 0
        %1101 = vmatpush1.bf16.msra.mxu0 0
        %1102 = vmatprep.subr.bf16.mxu0 0
        %1103 = vmatpush1.bf16.msra.mxu0 0
        %1104 = vmatprep.subr.bf16.mxu0 0
        %1105 = vmatpush1.bf16.msra.mxu0 0
        %1106 = vmatprep.subr.bf16.mxu0 0
        %1107 = vmatpush1.bf16.msra.mxu0 0
        %1108 = vmatprep.subr.bf16.mxu0 0
        %1109 = vmatpush1.bf16.msra.mxu0 0
        %1110 = vmatprep.subr.bf16.mxu0 0
        %1111 = vmatpush1.bf16.msra.mxu0 0
        %1112 = vmatprep.mubr.bf16.mxu0 0
        %1113 = vmatmul.mubr.bf16.gmra.mrb[0].mxu0 %v1075
        %v1114 = vpop.f32.mrb[0].mxu0
        %v1115 = vadd.f32 0.0, %v1114
        %v1116 = vpop.f32.mrb[0].mxu0
        %v1117 = vpop.f32.mrb[0].mxu0
        %v1118 = vpop.f32.mrb[0].mxu0
        %1119 = vdwg.mxu0
        %v1120 = vrcp.pop %v1070
        %v1121 = vmul.f32 %v1115, %v1120
        %1122 = vrot.lane.b32.xlu0 %v675, 104
        %v1123 = vpop.permute.xlu0 %1122
        %1124 = vrot.lane.b32.xlu0 %v735, 104
        %v1125 = vpop.permute.xlu0 %1124
        %v1127 = vsel %vm793, %v1123, 0
        %v1130 = vsel %vm793, %v1125, 0
        %1132 = vmatprep.subr.bf16.mxu0 0
        %1133 = vmatpush1.bf16.xpose.msra.mxu0 %v1130
        %1134 = vmatprep.subr.bf16.mxu0 0
        %1135 = vmatpush1.bf16.xpose.msra.mxu0 0
        %1136 = vmatprep.subr.bf16.mxu0 0
        %1137 = vmatpush1.bf16.xpose.msra.mxu0 0
        %1138 = vmatprep.subr.bf16.mxu0 0
        %1139 = vmatpush1.bf16.xpose.msra.mxu0 0
        %1140 = vmatprep.subr.bf16.mxu0 0
        %1141 = vmatpush1.bf16.xpose.msra.mxu0 0
        %1142 = vmatprep.subr.bf16.mxu0 0
        %1143 = vmatpush1.bf16.xpose.msra.mxu0 0
        %1144 = vmatprep.subr.bf16.mxu0 0
        %1145 = vmatpush1.bf16.xpose.msra.mxu0 0
        %1146 = vmatprep.subr.bf16.mxu0 0
        %1147 = vmatpush1.bf16.xpose.msra.mxu0 0
        %1148 = vmatprep.subr.bf16.mxu0 0
        %1149 = vmatpush1.bf16.xpose.msra.mxu0 0
        %1150 = vmatprep.subr.bf16.mxu0 0
        %1151 = vmatpush1.bf16.xpose.msra.mxu0 0
        %1152 = vmatprep.subr.bf16.mxu0 0
        %1153 = vmatpush1.bf16.xpose.msra.mxu0 0
        %1154 = vmatprep.subr.bf16.mxu0 0
        %1155 = vmatpush1.bf16.xpose.msra.mxu0 0
        %1156 = vmatprep.subr.bf16.mxu0 0
        %1157 = vmatpush1.bf16.xpose.msra.mxu0 0
        %1158 = vmatprep.subr.bf16.mxu0 0
        %1159 = vmatpush1.bf16.xpose.msra.mxu0 0
        %1160 = vmatprep.subr.bf16.mxu0 0
        %1161 = vmatpush1.bf16.xpose.msra.mxu0 0
        %1162 = vmatprep.subr.bf16.mxu0 0
        %1163 = vmatpush1.bf16.xpose.msra.mxu0 0
        %1164 = vmatprep.mubr.bf16.mxu0 0
        %1165 = vmatmul.mubr.bf16.gmra.mrb[0].mxu0 %v1127
        %v1166 = vpop.f32.mrb[0].mxu0
        %v1167 = vadd.f32 %v611, %v1166
        %v1168 = vpop.f32.mrb[0].mxu0
        %v1169 = vpop.f32.mrb[0].mxu0
        %v1170 = vpop.f32.mrb[0].mxu0
        %1171 = vdwg.mxu0
        %v1172 = vsel %vm793, %v1167, -inf
        %1173 = vmax.xlane.f32.xlu0 %v1172
        %v1174 = vpop.xlane.xlu0 %1173
        %v1175 = vsub.f32 %v1167, %v1174
        %v1176 = vmul.f32 %v1175, 1.442695
        %v1177 = vpow.pop %v1176
        %v1178 = vsel %vm793, %v1177, 0.0
        %1179 = vadd.xlane.f32.xlu0 %v1178
        %v1180 = vpop.xlane.xlu0 %1179
        %v1181 = vpack.c.bf16 %v1177, %v1177
        %1182 = vrot.lane.b32.xlu0 %v792, 104
        %v1183 = vpop.permute.xlu0 %1182
        %v1185 = vsel %vm793, %v1181, 0
        %v1188 = vsel %vm853, %v1183, 0
        %1190 = vmatprep.subr.bf16.mxu0 0
        %1191 = vmatpush1.bf16.msra.mxu0 %v1188
        %1192 = vmatprep.subr.bf16.mxu0 0
        %1193 = vmatpush1.bf16.msra.mxu0 0
        %1194 = vmatprep.subr.bf16.mxu0 0
        %1195 = vmatpush1.bf16.msra.mxu0 0
        %1196 = vmatprep.subr.bf16.mxu0 0
        %1197 = vmatpush1.bf16.msra.mxu0 0
        %1198 = vmatprep.subr.bf16.mxu0 0
        %1199 = vmatpush1.bf16.msra.mxu0 0
        %1200 = vmatprep.subr.bf16.mxu0 0
        %1201 = vmatpush1.bf16.msra.mxu0 0
        %1202 = vmatprep.subr.bf16.mxu0 0
        %1203 = vmatpush1.bf16.msra.mxu0 0
        %1204 = vmatprep.subr.bf16.mxu0 0
        %1205 = vmatpush1.bf16.msra.mxu0 0
        %1206 = vmatprep.subr.bf16.mxu0 0
        %1207 = vmatpush1.bf16.msra.mxu0 0
        %1208 = vmatprep.subr.bf16.mxu0 0
        %1209 = vmatpush1.bf16.msra.mxu0 0
        %1210 = vmatprep.subr.bf16.mxu0 0
        %1211 = vmatpush1.bf16.msra.mxu0 0
        %1212 = vmatprep.subr.bf16.mxu0 0
        %1213 = vmatpush1.bf16.msra.mxu0 0
        %1214 = vmatprep.subr.bf16.mxu0 0
        %1215 = vmatpush1.bf16.msra.mxu0 0
        %1216 = vmatprep.subr.bf16.mxu0 0
        %1217 = vmatpush1.bf16.msra.mxu0 0
        %1218 = vmatprep.subr.bf16.mxu0 0
        %1219 = vmatpush1.bf16.msra.mxu0 0
        %1220 = vmatprep.subr.bf16.mxu0 0
        %1221 = vmatpush1.bf16.msra.mxu0 0
        %1222 = vmatprep.mubr.bf16.mxu0 0
        %1223 = vmatmul.mubr.bf16.gmra.mrb[0].mxu0 %v1185
        %v1224 = vpop.f32.mrb[0].mxu0
        %v1225 = vadd.f32 0.0, %v1224
        %v1226 = vpop.f32.mrb[0].mxu0
        %v1227 = vpop.f32.mrb[0].mxu0
        %v1228 = vpop.f32.mrb[0].mxu0
        %1229 = vdwg.mxu0
        %v1230 = vrcp.pop %v1180
        %v1231 = vmul.f32 %v1225, %v1230
        %1233 = vrot.lane.b32.xlu0 %v1011, 8
        %v1234 = vpop.permute.xlu0 %1233
        %1237 = vrot.lane.b32.xlu0 %v1121, 16
        %v1238 = vpop.permute.xlu0 %1237
        %1241 = vrot.lane.b32.xlu0 %v1231, 24
        %v1242 = vpop.permute.xlu0 %1241
        %v1244 = vsel %vm793, %v898, %v1234
        %vm1245 = vcmask 130048
        %v1246 = vsel %vm1245, %v1244, %v1238
        %vm1247 = vcmask 195584
        %v1248 = vsel %vm1247, %v1246, %v1242
        %v1249 = vpack.c.bf16 %v1248, %v1248
        %v1250 = vld [vmem:[#allocation5] sm:$0xf]
        %v1251 = vld [vmem:[#allocation5 + $0x4] sm:$0xf]
        %v1252 = vld [vmem:[#allocation5 + $0x8] sm:$0xf]
        %v1253 = vld [vmem:[#allocation5 + $0xc] sm:$0xf]
        %v1254 = vld [vmem:[%s7] sm:$0x1]
        %v1256 = vlaneseq
        %v1257 = vshrl.u32 %v1256, 7
        %v1258 = vsub.s32 0, %v1257
        %v1259 = vrot.slane %v1254, %v1258
        %v1265 = vunpack.c.l.b16 %v1250
        %v1266 = vunpack.c.l.b16 %v1251
        %v1267 = vunpack.c.l.b16 %v1252
        %v1268 = vunpack.c.l.b16 %v1253
        %v1269 = vpack.c.b16 %v1266, %v1265
        %v1270 = vpack.c.b16 %v1268, %v1267
        %v1274 = vsel %vm630, %v1249, 0
        %1276 = vmatprep.subr.bf16.mxu0 0
        %1277 = vmatpush1.bf16.msra.mxu0 %v1269
        %1278 = vmatprep.subr.bf16.mxu0 0
        %1279 = vmatpush1.bf16.msra.mxu0 %v1270
        %1280 = vmatprep.subr.bf16.mxu0 0
        %1281 = vmatpush1.bf16.msra.mxu0 0
        %1282 = vmatprep.subr.bf16.mxu0 0
        %1283 = vmatpush1.bf16.msra.mxu0 0
        %1284 = vmatprep.subr.bf16.mxu0 0
        %1285 = vmatpush1.bf16.msra.mxu0 0
        %1286 = vmatprep.subr.bf16.mxu0 0
        %1287 = vmatpush1.bf16.msra.mxu0 0
        %1288 = vmatprep.subr.bf16.mxu0 0
        %1289 = vmatpush1.bf16.msra.mxu0 0
        %1290 = vmatprep.subr.bf16.mxu0 0
        %1291 = vmatpush1.bf16.msra.mxu0 0
        %1292 = vmatprep.subr.bf16.mxu0 0
        %1293 = vmatpush1.bf16.msra.mxu0 0
        %1294 = vmatprep.subr.bf16.mxu0 0
        %1295 = vmatpush1.bf16.msra.mxu0 0
        %1296 = vmatprep.subr.bf16.mxu0 0
        %1297 = vmatpush1.bf16.msra.mxu0 0
        %1298 = vmatprep.subr.bf16.mxu0 0
        %1299 = vmatpush1.bf16.msra.mxu0 0
        %1300 = vmatprep.subr.bf16.mxu0 0
        %1301 = vmatpush1.bf16.msra.mxu0 0
        %1302 = vmatprep.subr.bf16.mxu0 0
        %1303 = vmatpush1.bf16.msra.mxu0 0
        %1304 = vmatprep.subr.bf16.mxu0 0
        %1305 = vmatpush1.bf16.msra.mxu0 0
        %1306 = vmatprep.subr.bf16.mxu0 0
        %1307 = vmatpush1.bf16.msra.mxu0 0
        %1308 = vmatprep.mubr.bf16.mxu0 0
        %1309 = vmatmul.mubr.bf16.gmra.mrb[0].mxu0 %v1274
        %v1310 = vpop.f32.mrb[0].mxu0
        %v1311 = vadd.f32 %v1259, %v1310
        %v1312 = vpop.f32.mrb[0].mxu0
        %v1313 = vpop.f32.mrb[0].mxu0
        %v1314 = vpop.f32.mrb[0].mxu0
        %1315 = vdwg.mxu0
        %v1316 = vadd.f32 %v1311, %v607
        %v1317 = vld [vmem:[%s8] sm:$0x1]
        %v1318 = vld [vmem:[#allocation7] sm:$0x1]
        %v1319 = vsel %vm630, %v1316, 0.0
        %1320 = vadd.xlane.f32.xlu0 %v1319
        %v1321 = vpop.xlane.xlu0 %1320
        %v1322 = vrcp.pop 32.0
        %v1323 = vmul.f32 %v1321, %v1322
        %v1324 = vsub.f32 %v1316, %v1323
        %v1325 = vmul.f32 %v1324, %v1324
        %v1326 = vsel %vm630, %v1325, 0.0
        %1327 = vadd.xlane.f32.xlu0 %v1326
        %v1328 = vpop.xlane.xlu0 %1327
        %v1329 = vmul.f32 %v1328, %v1322
        %v1330 = vadd.f32 %v1329, 1e-05
        %v1331 = vrsqrt.pop %v1330
        %v1332 = vmul.f32 %v1324, %v1331
        %v1334 = vlaneseq
        %v1335 = vshrl.u32 %v1334, 7
        %v1336 = vsub.s32 0, %v1335
        %v1337 = vrot.slane %v1317, %v1336
        %v1339 = vmul.f32 %v1332, %v1337
        %v1341 = vlaneseq
        %v1342 = vshrl.u32 %v1341, 7
        %v1343 = vsub.s32 0, %v1342
        %v1344 = vrot.slane %v1318, %v1343
        %v1346 = vadd.f32 %v1339, %v1344
        %v1347 = vpack.c.bf16 %v1346, %v1346
        %v1348 = vld [vmem:[%s10] sm:$0xf]
        %v1349 = vld [vmem:[%s10 + $0x4] sm:$0xf]
        %v1350 = vld [vmem:[%s10 + $0x8] sm:$0xf]
        %v1351 = vld [vmem:[%s10 + $0xc] sm:$0xf]
        %v1352 = vld [vmem:[%s11] sm:$0x1]
        %v1354 = vlaneseq
        %v1355 = vshrl.u32 %v1354, 7
        %v1356 = vsub.s32 0, %v1355
        %v1357 = vrot.slane %v1352, %v1356
        %v1363 = vunpack.c.l.b16 %v1348
        %v1364 = vunpack.c.l.b16 %v1349
        %v1365 = vunpack.c.l.b16 %v1350
        %v1366 = vunpack.c.l.b16 %v1351
        %v1367 = vpack.c.b16 %v1364, %v1363
        %v1368 = vpack.c.b16 %v1366, %v1365
        %v1372 = vsel %vm630, %v1347, 0
        %1374 = vmatprep.subr.bf16.mxu0 0
        %1375 = vmatpush1.bf16.msra.mxu0 %v1367
        %1376 = vmatprep.subr.bf16.mxu0 0
        %1377 = vmatpush1.bf16.msra.mxu0 %v1368
        %1378 = vmatprep.subr.bf16.mxu0 0
        %1379 = vmatpush1.bf16.msra.mxu0 0
        %1380 = vmatprep.subr.bf16.mxu0 0
        %1381 = vmatpush1.bf16.msra.mxu0 0
        %1382 = vmatprep.subr.bf16.mxu0 0
        %1383 = vmatpush1.bf16.msra.mxu0 0
        %1384 = vmatprep.subr.bf16.mxu0 0
        %1385 = vmatpush1.bf16.msra.mxu0 0
        %1386 = vmatprep.subr.bf16.mxu0 0
        %1387 = vmatpush1.bf16.msra.mxu0 0
        %1388 = vmatprep.subr.bf16.mxu0 0
        %1389 = vmatpush1.bf16.msra.mxu0 0
        %1390 = vmatprep.subr.bf16.mxu0 0
        %1391 = vmatpush1.bf16.msra.mxu0 0
        %1392 = vmatprep.subr.bf16.mxu0 0
        %1393 = vmatpush1.bf16.msra.mxu0 0
        %1394 = vmatprep.subr.bf16.mxu0 0
        %1395 = vmatpush1.bf16.msra.mxu0 0
        %1396 = vmatprep.subr.bf16.mxu0 0
        %1397 = vmatpush1.bf16.msra.mxu0 0
        %1398 = vmatprep.subr.bf16.mxu0 0
        %1399 = vmatpush1.bf16.msra.mxu0 0
        %1400 = vmatprep.subr.bf16.mxu0 0
        %1401 = vmatpush1.bf16.msra.mxu0 0
        %1402 = vmatprep.subr.bf16.mxu0 0
        %1403 = vmatpush1.bf16.msra.mxu0 0
        %1404 = vmatprep.subr.bf16.mxu0 0
        %1405 = vmatpush1.bf16.msra.mxu0 0
        %1406 = vmatprep.mubr.bf16.mxu0 0
        %1407 = vmatmul.mubr.bf16.gmra.mrb[0].mxu0 %v1372
        %v1408 = vpop.f32.mrb[0].mxu0
        %v1409 = vadd.f32 %v1357, %v1408
        %v1410 = vpop.f32.mrb[0].mxu0
        %v1411 = vpop.f32.mrb[0].mxu0
        %v1412 = vpop.f32.mrb[0].mxu0
        %1413 = vdwg.mxu0
        %v1414 = vmax.f32 %v1409, 0.0
        %v1415 = vpack.c.bf16 %v1414, %v1414
        %v1416 = vld [vmem:[%s12] sm:$0xf]
        %v1417 = vld [vmem:[%s12 + $0x4] sm:$0xf]
        %v1418 = vld [vmem:[%s12 + $0x8] sm:$0xf]
        %v1419 = vld [vmem:[%s12 + $0xc] sm:$0xf]
        %v1420 = vld [vmem:[%s12 + $0x10] sm:$0xf]
        %v1421 = vld [vmem:[%s12 + $0x14] sm:$0xf]
        %v1422 = vld [vmem:[%s12 + $0x18] sm:$0xf]
        %v1423 = vld [vmem:[%s12 + $0x1c] sm:$0xf]
        %v1424 = vld [vmem:[%s12 + $0x20] sm:$0xf]
        %v1425 = vld [vmem:[%s12 + $0x24] sm:$0xf]
        %v1426 = vld [vmem:[%s12 + $0x28] sm:$0xf]
        %v1427 = vld [vmem:[%s12 + $0x2c] sm:$0xf]
        %v1428 = vld [vmem:[%s12 + $0x30] sm:$0xf]
        %v1429 = vld [vmem:[%s12 + $0x34] sm:$0xf]
        %v1430 = vld [vmem:[%s12 + $0x38] sm:$0xf]
        %v1431 = vld [vmem:[%s12 + $0x3c] sm:$0xf]
        %v1432 = vld [vmem:[%s13] sm:$0x1]
        %v1434 = vlaneseq
        %v1435 = vshrl.u32 %v1434, 7
        %v1436 = vsub.s32 0, %v1435
        %v1437 = vrot.slane %v1432, %v1436
        %v1455 = vunpack.c.l.b16 %v1416
        %v1456 = vunpack.c.l.b16 %v1417
        %v1457 = vunpack.c.l.b16 %v1418
        %v1458 = vunpack.c.l.b16 %v1419
        %v1459 = vunpack.c.l.b16 %v1420
        %v1460 = vunpack.c.l.b16 %v1421
        %v1461 = vunpack.c.l.b16 %v1422
        %v1462 = vunpack.c.l.b16 %v1423
        %v1463 = vunpack.c.l.b16 %v1424
        %v1464 = vunpack.c.l.b16 %v1425
        %v1465 = vunpack.c.l.b16 %v1426
        %v1466 = vunpack.c.l.b16 %v1427
        %v1467 = vunpack.c.l.b16 %v1428
        %v1468 = vunpack.c.l.b16 %v1429
        %v1469 = vunpack.c.l.b16 %v1430
        %v1470 = vunpack.c.l.b16 %v1431
        %v1471 = vpack.c.b16 %v1456, %v1455
        %v1472 = vpack.c.b16 %v1458, %v1457
        %v1473 = vpack.c.b16 %v1460, %v1459
        %v1474 = vpack.c.b16 %v1462, %v1461
        %v1475 = vpack.c.b16 %v1464, %v1463
        %v1476 = vpack.c.b16 %v1466, %v1465
        %v1477 = vpack.c.b16 %v1468, %v1467
        %v1478 = vpack.c.b16 %v1470, %v1469
        %1487 = vmatprep.subr.bf16.mxu0 0
        %1488 = vmatpush1.bf16.msra.mxu0 %v1471
        %1489 = vmatprep.subr.bf16.mxu0 0
        %1490 = vmatpush1.bf16.msra.mxu0 %v1472
        %1491 = vmatprep.subr.bf16.mxu0 0
        %1492 = vmatpush1.bf16.msra.mxu0 %v1473
        %1493 = vmatprep.subr.bf16.mxu0 0
        %1494 = vmatpush1.bf16.msra.mxu0 %v1474
        %1495 = vmatprep.subr.bf16.mxu0 0
        %1496 = vmatpush1.bf16.msra.mxu0 %v1475
        %1497 = vmatprep.subr.bf16.mxu0 0
        %1498 = vmatpush1.bf16.msra.mxu0 %v1476
        %1499 = vmatprep.subr.bf16.mxu0 0
        %1500 = vmatpush1.bf16.msra.mxu0 %v1477
        %1501 = vmatprep.subr.bf16.mxu0 0
        %1502 = vmatpush1.bf16.msra.mxu0 %v1478
        %1503 = vmatprep.subr.bf16.mxu0 0
        %1504 = vmatpush1.bf16.msra.mxu0 0
        %1505 = vmatprep.subr.bf16.mxu0 0
        %1506 = vmatpush1.bf16.msra.mxu0 0
        %1507 = vmatprep.subr.bf16.mxu0 0
        %1508 = vmatpush1.bf16.msra.mxu0 0
        %1509 = vmatprep.subr.bf16.mxu0 0
        %1510 = vmatpush1.bf16.msra.mxu0 0
        %1511 = vmatprep.subr.bf16.mxu0 0
        %1512 = vmatpush1.bf16.msra.mxu0 0
        %1513 = vmatprep.subr.bf16.mxu0 0
        %1514 = vmatpush1.bf16.msra.mxu0 0
        %1515 = vmatprep.subr.bf16.mxu0 0
        %1516 = vmatpush1.bf16.msra.mxu0 0
        %1517 = vmatprep.subr.bf16.mxu0 0
        %1518 = vmatpush1.bf16.msra.mxu0 0
        %1519 = vmatprep.mubr.bf16.mxu0 0
        %1520 = vmatmul.mubr.bf16.gmra.mrb[0].mxu0 %v1415
        %v1521 = vpop.f32.mrb[0].mxu0
        %v1522 = vadd.f32 %v1437, %v1521
        %v1523 = vpop.f32.mrb[0].mxu0
        %v1524 = vpop.f32.mrb[0].mxu0
        %v1525 = vpop.f32.mrb[0].mxu0
        %1526 = vdwg.mxu0
        %v1527 = vadd.f32 %v1522, %v1346
        %v1528 = vld [vmem:[%s14] sm:$0x1]
        %v1529 = vld [vmem:[%s15] sm:$0x1]
        %v1530 = vsel %vm630, %v1527, 0.0
        %1531 = vadd.xlane.f32.xlu0 %v1530
        %v1532 = vpop.xlane.xlu0 %1531
        %v1533 = vmul.f32 %v1532, %v1322
        %v1534 = vsub.f32 %v1527, %v1533
        %v1535 = vmul.f32 %v1534, %v1534
        %v1536 = vsel %vm630, %v1535, 0.0
        %1537 = vadd.xlane.f32.xlu0 %v1536
        %v1538 = vpop.xlane.xlu0 %1537
        %v1539 = vmul.f32 %v1538, %v1322
        %v1540 = vadd.f32 %v1539, 1e-05
        %v1541 = vrsqrt.pop %v1540
        %v1542 = vmul.f32 %v1534, %v1541
        %v1544 = vlaneseq
        %v1545 = vshrl.u32 %v1544, 7
        %v1546 = vsub.s32 0, %v1545
        %v1547 = vrot.slane %v1528, %v1546
        %v1549 = vmul.f32 %v1542, %v1547
        %v1551 = vlaneseq
        %v1552 = vshrl.u32 %v1551, 7
        %v1553 = vsub.s32 0, %v1552
        %v1554 = vrot.slane %v1529, %v1553
        %v1556 = vadd.f32 %v1549, %v1554
        %1557 = vst.msk [vmem:[%s594] sm:$0xff] %vm630, %v1556
        %s1558 = sand.u32 %s407, 1
        %s1559 = scalar_lea.sflag [#allocation4], %s1558
        %s1560 = sand.u32 %s407, 1
        %s1561 = smul.addr %s1560, 8
        %s1562 = scalar_lea.vmem [#allocation8], %s1561
        // Predicated region
        $region97: #{tpu_custom_call.1} parent=83 // pred_check
          %p1563 = pneg %p417
        $region98: #{tpu_custom_call.1} parent=83 // pred_check_branch
          %1565 = sbr.rel (%p1563) target = $region100
        $region99: #{tpu_custom_call.1} parent=83 // pred_region
          %s1567 = ssub.s32 128, 128
          %1568 = vsyncadd %s1559, %s1567
          %s1569 = sadd.s32 %s37, %s36
          %s1570 = smul.addr %s1569, 128
          %s1571 = scalar_lea.hbm %s16, %s1570
          %s1573 = sshll.u32 %s1562, 4
          %s1574 = int_to_ptr.vmem [resolvable:$true] %s1573
          %1576 = dma.vmem_to_hbm [thread:$0]  %s1574, 128, %s1571, %s1559
        $region100: #{tpu_custom_call.1} parent=83 // pred_fallthru
          _
      $region84: #{tpu_custom_call.1} parent=5 // pred_fallthru
        _
      %p1577 = scmp.le.s32.totalorder 2, %s27
      // Predicated region
      $region101: #{tpu_custom_call.1} parent=5 // pred_check
        %p1578 = pneg %p1577
      $region102: #{tpu_custom_call.1} parent=5 // pred_check_branch
        %1580 = sbr.rel (%p1578) target = $region104
      $region103: #{tpu_custom_call.1} parent=5 // pred_region
        %s1581 = ssub.s32 %s27, 2
        // Predicated region
        $region105: #{tpu_custom_call.1} parent=103 // pred_check
          %p1582 = pneg %p423
        $region106: #{tpu_custom_call.1} parent=103 // pred_check_branch
          %1584 = sbr.rel (%p1582) target = $region108
        $region107: #{tpu_custom_call.1} parent=103 // pred_region
          %s1585 = sand.u32 %s408, 1
          %s1586 = scalar_lea.sflag [#allocation4], %s1585
          %s1587 = sand.u32 %s408, 1
          %s1588 = smul.addr %s1587, 8
          %s1589 = scalar_lea.vmem [#allocation8], %s1588
          %1590 = dma.done %s1586, 128
        $region108: #{tpu_custom_call.1} parent=103 // pred_fallthru
          _
      $region104: #{tpu_custom_call.1} parent=5 // pred_fallthru
        _
    $region6: #{tpu_custom_call.1} parent=1 // loop_footer
      %s31 = sadd.s32 1, %s27
    $region7: #{tpu_custom_call.1} parent=1 // loop_footer_branch
      %26 = sbr.rel target = $region3
    $region8: #{tpu_custom_call.1} parent=1 // loop_exit
      _
    %1591 = vsyncpa [#allocation3], 1
    %s1592 = scalar_lea.sflag [#allocation3], 1
    %1593 = vsyncpa %s1592, 1
    %1594 = vsyncpa [#allocation6], 1
    %1595 = vsyncpa [#allocation4], 1
    %s1596 = scalar_lea.sflag [#allocation4], 1
    %1597 = vsyncpa %s1596, 1

</llo_original>
